<compile_context>
chip_gen: v6e
topology: v6e:2x2x1
jax: 0.10.0
libtpu: 0.0.40
codegen_flags: <defaults>
</compile_context>

<pallas_src>
import jax
import jax.numpy as jnp
from jax import lax
from jax.experimental import pallas as pl
from jax.experimental.pallas import tpu as pltpu


# ---------------------------------------------------------------------------
# Fused kernel: channel attention + spatial attention for a block of Bt images
# ---------------------------------------------------------------------------
def block_attention_kernel(x_ref, w0_ref, w1_ref, cw_ref, o_ref,
                           mmp_ref, gfl_ref):
    # x_ref:  (Bt, C, HW)   lane-dense input block
    # w0_ref: (Hd, C), w1_ref: (C, Hd)
    # cw_ref: (98,) conv weights in SMEM
    # o_ref:  (Bt, C, HW)   lane-dense output block
    # mmp_ref: (2, H+6, W+6) VMEM scratch -> zero-padded [mean_c, max_c] maps
    # gfl_ref: (1, HW)       VMEM scratch -> flattened spatial gate
    Bt, C, HW = x_ref.shape
    H = mmp_ref.shape[1] - 6
    W = mmp_ref.shape[2] - 6

    x = x_ref[...].astype(jnp.float32)          # (Bt, C, HW)
    w0 = w0_ref[...]                            # (Hd, C)
    w1 = w1_ref[...]                            # (C, Hd)

    # ---- channel attention: pack all Bt (avg, max) vectors into ONE MLP ----
    xb = [x[b] for b in range(Bt)]              # Bt x (C, HW)
    cols = ([jnp.mean(v, axis=1, keepdims=True) for v in xb] +   # avg pools
            [jnp.max(v, axis=1, keepdims=True) for v in xb])     # max pools
    V = jnp.concatenate(cols, axis=1)           # (C, 2*Bt)
    Hh = jnp.maximum(
        jnp.dot(w0, V, preferred_element_type=jnp.float32), 0.0)  # (Hd, 2Bt)
    O = jnp.dot(w1, Hh, preferred_element_type=jnp.float32)       # (C, 2Bt)

    # Zero the padded conv-input scratch once per grid step; the 3-pixel
    # border stays zero, the interior is fully overwritten for every image.
    mmp_ref[...] = jnp.zeros_like(mmp_ref)

    for b in range(Bt):
        attn = jax.nn.sigmoid(O[:, b:b + 1] + O[:, Bt + b:Bt + b + 1])  # (C,1)
        y = xb[b] * attn                                                 # (C,HW)

        # ---- spatial attention ----
        mean_m = jnp.mean(y, axis=0, keepdims=True)   # (1, HW)
        max_m = jnp.max(y, axis=0, keepdims=True)     # (1, HW)

        # in-kernel zero padding: write the maps into the scratch interior
        for h in range(H):
            row_a = mean_m[:, h * W:(h + 1) * W][:, None, :]   # (1,1,W)
            row_m = max_m[:, h * W:(h + 1) * W][:, None, :]    # (1,1,W)
            mmp_ref[0:1, 3 + h:4 + h, 3:3 + W] = row_a
            mmp_ref[1:2, 3 + h:4 + h, 3:3 + W] = row_m
        mmp = mmp_ref[...]                                     # (2, H+6, W+6)

        # 7x7 cross-correlation over 2 channels; kw lane-shifts hoisted
        acc = jnp.zeros((H, W), jnp.float32)
        for c in range(2):
            for kw in range(7):
                col = mmp[c, :, kw:kw + W]                     # (H+6, W)
                for kh in range(7):
                    w_sc = cw_ref[c * 49 + kh * 7 + kw]        # SMEM scalar
                    acc = acc + col[kh:kh + H, :] * w_sc
        gate2d = jax.nn.sigmoid(acc)                           # (H, W)

        # flatten the gate to (1, HW) so the final multiply/store is lane-dense
        for h in range(H):
            gfl_ref[:, h * W:(h + 1) * W] = gate2d[h:h + 1, :]
        gate = gfl_ref[...]                                    # (1, HW)

        o_ref[b] = (y * gate).astype(o_ref.dtype)              # full lane-dense store


# ---------------------------------------------------------------------------
# Wrapper
# ---------------------------------------------------------------------------
def _pick_block_batch(B, C, HW, max_unroll=8, vmem_budget=24 << 20):
    """Largest divisor of B that fits (unroll & VMEM), preferring >=2 steps."""
    per_b = C * HW * 4 * 4          # in + out blocks, double-buffered, f32
    divs = [d for d in range(1, B + 1)
            if B % d == 0 and d <= max_unroll and d * per_b <= vmem_budget]
    for d in reversed(divs):
        if B // d >= 2:             # keep both v7x TensorCores busy
            return d
    return divs[-1]


def block_attention(x, w0, w1, conv_w):
    B, C, H, W = x.shape
    HW = H * W
    Hd = w0.shape[0]

    x_flat = x.reshape(B, C, HW)
    cw = conv_w.reshape(-1).astype(jnp.float32)        # (98,) -> SMEM

    Bt = _pick_block_batch(B, C, HW)
    grid = (B // Bt,)

    out_flat = pl.pallas_call(
        block_attention_kernel,
        grid=grid,
        in_specs=[
            pl.BlockSpec((Bt, C, HW), lambda i: (i, 0, 0)),
            pl.BlockSpec((Hd, C), lambda i: (0, 0)),
            pl.BlockSpec((C, Hd), lambda i: (0, 0)),
            pl.BlockSpec(memory_space=pltpu.MemorySpace.SMEM),
        ],
        out_specs=pl.BlockSpec((Bt, C, HW), lambda i: (i, 0, 0)),
        out_shape=jax.ShapeDtypeStruct((B, C, HW), x.dtype),
        scratch_shapes=[
            pltpu.VMEM((2, H + 6, W + 6), jnp.float32),   # padded mean/max maps
            pltpu.VMEM((1, HW), jnp.float32),             # flattened gate
        ],
        compiler_params=pltpu.CompilerParams(
            dimension_semantics=("parallel",),
            vmem_limit_bytes=32 << 20,
        ),
    )(x_flat, w0, w1, cw)

    return out_flat.reshape(B, C, H, W)


# ---------------------------------------------------------------------------
# Pure-JAX reference (mirrors the PyTorch forward exactly)
# ---------------------------------------------------------------------------
def block_attention_ref(x, w0, w1, conv_w):
    avg = x.mean(axis=(2, 3))                     # (B, C)
    mx = x.max(axis=(2, 3))                       # (B, C)

    def mlp(v):
        return jnp.maximum(v @ w0.T, 0.0) @ w1.T

    attn = jax.nn.sigmoid(mlp(avg) + mlp(mx))[:, :, None, None]
    y = x * attn

    mean_c = y.mean(axis=1, keepdims=True)
    max_c = y.max(axis=1, keepdims=True)
    s = jnp.concatenate([mean_c, max_c], axis=1)  # (B, 2, H, W)
    conv = lax.conv_general_dilated(
        s, conv_w, window_strides=(1, 1), padding=[(3, 3), (3, 3)],
        dimension_numbers=("NCHW", "OIHW", "NCHW"))
    gate = jax.nn.sigmoid(conv)                   # (B, 1, H, W)
    return y * gate


if __name__ == "__main__":
    B, C, H, W = 2, 4, 16, 16
    hidden = 8

    key = jax.random.PRNGKey(0)
    kx, k0, k1, kc = jax.random.split(key, 4)

    x = jax.random.normal(kx, (B, C, H, W), dtype=jnp.float32)
    w0 = jax.random.normal(k0, (hidden, C), dtype=jnp.float32) * 0.3
    w1 = jax.random.normal(k1, (C, hidden), dtype=jnp.float32) * 0.3
    conv_w = jax.random.normal(kc, (1, 2, 7, 7), dtype=jnp.float32) * 0.1

    out = block_attention(x, w0, w1, conv_w)
    out = jax.block_until_ready(out)

    ref = block_attention_ref(x, w0, w1, conv_w)
    assert out.shape == (B, C, H, W)
    assert jnp.allclose(out, ref, rtol=1e-4, atol=1e-5), "mismatch vs reference"

    print("KERNEL_OK")
</pallas_src>

<mosaic_0001>
module attributes {stable_mosaic.version = 11 : i64} {
  func.func @block_attention_kernel(%arg0: i32, %arg1: memref<1x4x256xf32, #tpu.memory_space<vmem>>, %arg2: memref<8x4xf32, #tpu.memory_space<vmem>>, %arg3: memref<4x8xf32, #tpu.memory_space<vmem>>, %arg4: memref<98xf32, #tpu.memory_space<smem>>, %arg5: memref<1x4x256xf32, #tpu.memory_space<vmem>>, %arg6: memref<2x22x22xf32, #tpu.memory_space<vmem>>, %arg7: memref<1x256xf32, #tpu.memory_space<vmem>>) attributes {dimension_semantics = [#tpu.dimension_semantics<parallel>], iteration_bounds = array<i64: 2>, scalar_prefetch = 0 : i64, scratch_operands = 2 : i64, tpu.core_type = #tpu.core_type<tc>, window_params = [{transform_indices = @transform_0, window_bounds = array<i64: 1, 4, 256>}, {pipeline_mode = #tpu.pipeline_mode<synchronous>, transform_indices = @transform_1, window_bounds = array<i64: 8, 4>}, {pipeline_mode = #tpu.pipeline_mode<synchronous>, transform_indices = @transform_2, window_bounds = array<i64: 4, 8>}, {transform_indices = @transform_3, window_bounds = array<i64: 98>}, {transform_indices = @transform_4, window_bounds = array<i64: 1, 4, 256>}]} {
    %c0 = arith.constant 0 : index
    %c0_0 = arith.constant 0 : index
    %c0_1 = arith.constant 0 : index
    %0 = vector.load %arg1[%c0, %c0_0, %c0_1] : memref<1x4x256xf32, #tpu.memory_space<vmem>>, vector<1x4x256xf32>
    %c0_2 = arith.constant 0 : index
    %c0_3 = arith.constant 0 : index
    %1 = vector.load %arg2[%c0_2, %c0_3] : memref<8x4xf32, #tpu.memory_space<vmem>>, vector<8x4xf32>
    %c0_4 = arith.constant 0 : index
    %c0_5 = arith.constant 0 : index
    %2 = vector.load %arg3[%c0_4, %c0_5] : memref<4x8xf32, #tpu.memory_space<vmem>>, vector<4x8xf32>
    %3 = vector.shape_cast %0 : vector<1x4x256xf32> to vector<4x256xf32>
    %cst = arith.constant dense<0.000000e+00> : vector<4xf32>
    %4 = vector.multi_reduction <add>, %3, %cst [1] : vector<4x256xf32> to vector<4xf32>
    %5 = vector.shape_cast %4 : vector<4xf32> to vector<4x1xf32>
    %cst_6 = arith.constant 2.560000e+02 : f32
    %6 = vector.broadcast %cst_6 : f32 to vector<4x1xf32>
    %7 = arith.divf %5, %6 : vector<4x1xf32>
    %cst_7 = arith.constant dense<0xFF800000> : vector<4xf32>
    %8 = vector.multi_reduction <maximumf>, %3, %cst_7 [1] : vector<4x256xf32> to vector<4xf32>
    %9 = vector.shape_cast %8 : vector<4xf32> to vector<4x1xf32>
    %10 = tpu.concatenate %7, %9 in 1 : vector<4x1xf32>, vector<4x1xf32> -> vector<4x2xf32>
    %cst_8 = arith.constant dense<0.000000e+00> : vector<8x2xf32>
    %11 = tpu.matmul %1, %10, %cst_8 {dimension_numbers = #tpu.dot_dimension_numbers<[1], [0], [0], [1], [0, 0, 1, 1], [], []>} : vector<8x4xf32>, vector<4x2xf32>, vector<8x2xf32> -> vector<8x2xf32>
    %cst_9 = arith.constant 0.000000e+00 : f32
    %12 = vector.broadcast %cst_9 : f32 to vector<8x2xf32>
    %13 = arith.maximumf %11, %12 : vector<8x2xf32>
    %cst_10 = arith.constant dense<0.000000e+00> : vector<4x2xf32>
    %14 = tpu.matmul %2, %13, %cst_10 {dimension_numbers = #tpu.dot_dimension_numbers<[1], [0], [0], [1], [0, 0, 1, 1], [], []>} : vector<4x8xf32>, vector<8x2xf32>, vector<4x2xf32> -> vector<4x2xf32>
    %cst_11 = arith.constant 0.000000e+00 : f32
    %15 = vector.broadcast %cst_11 : f32 to vector<2x22x22xf32>
    %c0_12 = arith.constant 0 : index
    %c0_13 = arith.constant 0 : index
    %c0_14 = arith.constant 0 : index
    %16 = vector.load %arg6[%c0_12, %c0_13, %c0_14] : memref<2x22x22xf32, #tpu.memory_space<vmem>>, vector<2x22x22xf32>
    tpu.vector_store %arg6[%c0_12, %c0_13, %c0_14], %15 {strides = array<i32>} : memref<2x22x22xf32, #tpu.memory_space<vmem>>, vector<2x22x22xf32>,
    %17 = vector.extract_strided_slice %14 {offsets = [0, 0], sizes = [4, 1], strides = [1, 1]} : vector<4x2xf32> to vector<4x1xf32>
    %18 = vector.extract_strided_slice %14 {offsets = [0, 1], sizes = [4, 1], strides = [1, 1]} : vector<4x2xf32> to vector<4x1xf32>
    %19 = arith.addf %17, %18 : vector<4x1xf32>
    %20 = arith.negf %19 : vector<4x1xf32>
    %21 = math.exp %20 : vector<4x1xf32>
    %cst_15 = arith.constant 1.000000e+00 : f32
    %22 = vector.broadcast %cst_15 : f32 to vector<4x1xf32>
    %23 = arith.addf %22, %21 : vector<4x1xf32>
    %24 = arith.divf %22, %23 : vector<4x1xf32>
    %25 = vector.broadcast %24 : vector<4x1xf32> to vector<4x256xf32>
    %26 = arith.mulf %3, %25 : vector<4x256xf32>
    %cst_16 = arith.constant dense<0.000000e+00> : vector<256xf32>
    %27 = vector.multi_reduction <add>, %26, %cst_16 [0] : vector<4x256xf32> to vector<256xf32>
    %28 = vector.shape_cast %27 : vector<256xf32> to vector<1x256xf32>
    %cst_17 = arith.constant 4.000000e+00 : f32
    %29 = vector.broadcast %cst_17 : f32 to vector<1x256xf32>
    %30 = arith.divf %28, %29 : vector<1x256xf32>
    %cst_18 = arith.constant dense<0xFF800000> : vector<256xf32>
    %31 = vector.multi_reduction <maximumf>, %26, %cst_18 [0] : vector<4x256xf32> to vector<256xf32>
    %32 = vector.shape_cast %31 : vector<256xf32> to vector<1x256xf32>
    %33 = vector.extract_strided_slice %30 {offsets = [0, 0], sizes = [1, 16], strides = [1, 1]} : vector<1x256xf32> to vector<1x16xf32>
    %34 = vector.shape_cast %33 : vector<1x16xf32> to vector<1x1x16xf32>
    %35 = vector.extract_strided_slice %32 {offsets = [0, 0], sizes = [1, 16], strides = [1, 1]} : vector<1x256xf32> to vector<1x16xf32>
    %36 = vector.shape_cast %35 : vector<1x16xf32> to vector<1x1x16xf32>
    %c0_19 = arith.constant 0 : index
    %c3 = arith.constant 3 : index
    %c3_20 = arith.constant 3 : index
    %37 = vector.load %arg6[%c0_19, %c3, %c3_20] : memref<2x22x22xf32, #tpu.memory_space<vmem>>, vector<1x1x16xf32>
    tpu.vector_store %arg6[%c0_19, %c3, %c3_20], %34 {strides = array<i32>} : memref<2x22x22xf32, #tpu.memory_space<vmem>>, vector<1x1x16xf32>,
    %c1 = arith.constant 1 : index
    %c3_21 = arith.constant 3 : index
    %c3_22 = arith.constant 3 : index
    %38 = vector.load %arg6[%c1, %c3_21, %c3_22] : memref<2x22x22xf32, #tpu.memory_space<vmem>>, vector<1x1x16xf32>
    tpu.vector_store %arg6[%c1, %c3_21, %c3_22], %36 {strides = array<i32>} : memref<2x22x22xf32, #tpu.memory_space<vmem>>, vector<1x1x16xf32>,
    %39 = vector.extract_strided_slice %30 {offsets = [0, 16], sizes = [1, 16], strides = [1, 1]} : vector<1x256xf32> to vector<1x16xf32>
    %40 = vector.shape_cast %39 : vector<1x16xf32> to vector<1x1x16xf32>
    %41 = vector.extract_strided_slice %32 {offsets = [0, 16], sizes = [1, 16], strides = [1, 1]} : vector<1x256xf32> to vector<1x16xf32>
    %42 = vector.shape_cast %41 : vector<1x16xf32> to vector<1x1x16xf32>
    %c0_23 = arith.constant 0 : index
    %c4 = arith.constant 4 : index
    %c3_24 = arith.constant 3 : index
    %43 = vector.load %arg6[%c0_23, %c4, %c3_24] : memref<2x22x22xf32, #tpu.memory_space<vmem>>, vector<1x1x16xf32>
    tpu.vector_store %arg6[%c0_23, %c4, %c3_24], %40 {strides = array<i32>} : memref<2x22x22xf32, #tpu.memory_space<vmem>>, vector<1x1x16xf32>,
    %c1_25 = arith.constant 1 : index
    %c4_26 = arith.constant 4 : index
    %c3_27 = arith.constant 3 : index
    %44 = vector.load %arg6[%c1_25, %c4_26, %c3_27] : memref<2x22x22xf32, #tpu.memory_space<vmem>>, vector<1x1x16xf32>
    tpu.vector_store %arg6[%c1_25, %c4_26, %c3_27], %42 {strides = array<i32>} : memref<2x22x22xf32, #tpu.memory_space<vmem>>, vector<1x1x16xf32>,
    %45 = vector.extract_strided_slice %30 {offsets = [0, 32], sizes = [1, 16], strides = [1, 1]} : vector<1x256xf32> to vector<1x16xf32>
    %46 = vector.shape_cast %45 : vector<1x16xf32> to vector<1x1x16xf32>
    %47 = vector.extract_strided_slice %32 {offsets = [0, 32], sizes = [1, 16], strides = [1, 1]} : vector<1x256xf32> to vector<1x16xf32>
    %48 = vector.shape_cast %47 : vector<1x16xf32> to vector<1x1x16xf32>
    %c0_28 = arith.constant 0 : index
    %c5 = arith.constant 5 : index
    %c3_29 = arith.constant 3 : index
    %49 = vector.load %arg6[%c0_28, %c5, %c3_29] : memref<2x22x22xf32, #tpu.memory_space<vmem>>, vector<1x1x16xf32>
    tpu.vector_store %arg6[%c0_28, %c5, %c3_29], %46 {strides = array<i32>} : memref<2x22x22xf32, #tpu.memory_space<vmem>>, vector<1x1x16xf32>,
    %c1_30 = arith.constant 1 : index
    %c5_31 = arith.constant 5 : index
    %c3_32 = arith.constant 3 : index
    %50 = vector.load %arg6[%c1_30, %c5_31, %c3_32] : memref<2x22x22xf32, #tpu.memory_space<vmem>>, vector<1x1x16xf32>
    tpu.vector_store %arg6[%c1_30, %c5_31, %c3_32], %48 {strides = array<i32>} : memref<2x22x22xf32, #tpu.memory_space<vmem>>, vector<1x1x16xf32>,
    %51 = vector.extract_strided_slice %30 {offsets = [0, 48], sizes = [1, 16], strides = [1, 1]} : vector<1x256xf32> to vector<1x16xf32>
    %52 = vector.shape_cast %51 : vector<1x16xf32> to vector<1x1x16xf32>
    %53 = vector.extract_strided_slice %32 {offsets = [0, 48], sizes = [1, 16], strides = [1, 1]} : vector<1x256xf32> to vector<1x16xf32>
    %54 = vector.shape_cast %53 : vector<1x16xf32> to vector<1x1x16xf32>
    %c0_33 = arith.constant 0 : index
    %c6 = arith.constant 6 : index
    %c3_34 = arith.constant 3 : index
    %55 = vector.load %arg6[%c0_33, %c6, %c3_34] : memref<2x22x22xf32, #tpu.memory_space<vmem>>, vector<1x1x16xf32>
    tpu.vector_store %arg6[%c0_33, %c6, %c3_34], %52 {strides = array<i32>} : memref<2x22x22xf32, #tpu.memory_space<vmem>>, vector<1x1x16xf32>,
    %c1_35 = arith.constant 1 : index
    %c6_36 = arith.constant 6 : index
    %c3_37 = arith.constant 3 : index
    %56 = vector.load %arg6[%c1_35, %c6_36, %c3_37] : memref<2x22x22xf32, #tpu.memory_space<vmem>>, vector<1x1x16xf32>
    tpu.vector_store %arg6[%c1_35, %c6_36, %c3_37], %54 {strides = array<i32>} : memref<2x22x22xf32, #tpu.memory_space<vmem>>, vector<1x1x16xf32>,
    %57 = vector.extract_strided_slice %30 {offsets = [0, 64], sizes = [1, 16], strides = [1, 1]} : vector<1x256xf32> to vector<1x16xf32>
    %58 = vector.shape_cast %57 : vector<1x16xf32> to vector<1x1x16xf32>
    %59 = vector.extract_strided_slice %32 {offsets = [0, 64], sizes = [1, 16], strides = [1, 1]} : vector<1x256xf32> to vector<1x16xf32>
    %60 = vector.shape_cast %59 : vector<1x16xf32> to vector<1x1x16xf32>
    %c0_38 = arith.constant 0 : index
    %c7 = arith.constant 7 : index
    %c3_39 = arith.constant 3 : index
    %61 = vector.load %arg6[%c0_38, %c7, %c3_39] : memref<2x22x22xf32, #tpu.memory_space<vmem>>, vector<1x1x16xf32>
    tpu.vector_store %arg6[%c0_38, %c7, %c3_39], %58 {strides = array<i32>} : memref<2x22x22xf32, #tpu.memory_space<vmem>>, vector<1x1x16xf32>,
    %c1_40 = arith.constant 1 : index
    %c7_41 = arith.constant 7 : index
    %c3_42 = arith.constant 3 : index
    %62 = vector.load %arg6[%c1_40, %c7_41, %c3_42] : memref<2x22x22xf32, #tpu.memory_space<vmem>>, vector<1x1x16xf32>
    tpu.vector_store %arg6[%c1_40, %c7_41, %c3_42], %60 {strides = array<i32>} : memref<2x22x22xf32, #tpu.memory_space<vmem>>, vector<1x1x16xf32>,
    %63 = vector.extract_strided_slice %30 {offsets = [0, 80], sizes = [1, 16], strides = [1, 1]} : vector<1x256xf32> to vector<1x16xf32>
    %64 = vector.shape_cast %63 : vector<1x16xf32> to vector<1x1x16xf32>
    %65 = vector.extract_strided_slice %32 {offsets = [0, 80], sizes = [1, 16], strides = [1, 1]} : vector<1x256xf32> to vector<1x16xf32>
    %66 = vector.shape_cast %65 : vector<1x16xf32> to vector<1x1x16xf32>
    %c0_43 = arith.constant 0 : index
    %c8 = arith.constant 8 : index
    %c3_44 = arith.constant 3 : index
    %67 = vector.load %arg6[%c0_43, %c8, %c3_44] : memref<2x22x22xf32, #tpu.memory_space<vmem>>, vector<1x1x16xf32>
    tpu.vector_store %arg6[%c0_43, %c8, %c3_44], %64 {strides = array<i32>} : memref<2x22x22xf32, #tpu.memory_space<vmem>>, vector<1x1x16xf32>,
    %c1_45 = arith.constant 1 : index
    %c8_46 = arith.constant 8 : index
    %c3_47 = arith.constant 3 : index
    %68 = vector.load %arg6[%c1_45, %c8_46, %c3_47] : memref<2x22x22xf32, #tpu.memory_space<vmem>>, vector<1x1x16xf32>
    tpu.vector_store %arg6[%c1_45, %c8_46, %c3_47], %66 {strides = array<i32>} : memref<2x22x22xf32, #tpu.memory_space<vmem>>, vector<1x1x16xf32>,
    %69 = vector.extract_strided_slice %30 {offsets = [0, 96], sizes = [1, 16], strides = [1, 1]} : vector<1x256xf32> to vector<1x16xf32>
    %70 = vector.shape_cast %69 : vector<1x16xf32> to vector<1x1x16xf32>
    %71 = vector.extract_strided_slice %32 {offsets = [0, 96], sizes = [1, 16], strides = [1, 1]} : vector<1x256xf32> to vector<1x16xf32>
    %72 = vector.shape_cast %71 : vector<1x16xf32> to vector<1x1x16xf32>
    %c0_48 = arith.constant 0 : index
    %c9 = arith.constant 9 : index
    %c3_49 = arith.constant 3 : index
    %73 = vector.load %arg6[%c0_48, %c9, %c3_49] : memref<2x22x22xf32, #tpu.memory_space<vmem>>, vector<1x1x16xf32>
    tpu.vector_store %arg6[%c0_48, %c9, %c3_49], %70 {strides = array<i32>} : memref<2x22x22xf32, #tpu.memory_space<vmem>>, vector<1x1x16xf32>,
    %c1_50 = arith.constant 1 : index
    %c9_51 = arith.constant 9 : index
    %c3_52 = arith.constant 3 : index
    %74 = vector.load %arg6[%c1_50, %c9_51, %c3_52] : memref<2x22x22xf32, #tpu.memory_space<vmem>>, vector<1x1x16xf32>
    tpu.vector_store %arg6[%c1_50, %c9_51, %c3_52], %72 {strides = array<i32>} : memref<2x22x22xf32, #tpu.memory_space<vmem>>, vector<1x1x16xf32>,
    %75 = vector.extract_strided_slice %30 {offsets = [0, 112], sizes = [1, 16], strides = [1, 1]} : vector<1x256xf32> to vector<1x16xf32>
    %76 = vector.shape_cast %75 : vector<1x16xf32> to vector<1x1x16xf32>
    %77 = vector.extract_strided_slice %32 {offsets = [0, 112], sizes = [1, 16], strides = [1, 1]} : vector<1x256xf32> to vector<1x16xf32>
    %78 = vector.shape_cast %77 : vector<1x16xf32> to vector<1x1x16xf32>
    %c0_53 = arith.constant 0 : index
    %c10 = arith.constant 10 : index
    %c3_54 = arith.constant 3 : index
    %79 = vector.load %arg6[%c0_53, %c10, %c3_54] : memref<2x22x22xf32, #tpu.memory_space<vmem>>, vector<1x1x16xf32>
    tpu.vector_store %arg6[%c0_53, %c10, %c3_54], %76 {strides = array<i32>} : memref<2x22x22xf32, #tpu.memory_space<vmem>>, vector<1x1x16xf32>,
    %c1_55 = arith.constant 1 : index
    %c10_56 = arith.constant 10 : index
    %c3_57 = arith.constant 3 : index
    %80 = vector.load %arg6[%c1_55, %c10_56, %c3_57] : memref<2x22x22xf32, #tpu.memory_space<vmem>>, vector<1x1x16xf32>
    tpu.vector_store %arg6[%c1_55, %c10_56, %c3_57], %78 {strides = array<i32>} : memref<2x22x22xf32, #tpu.memory_space<vmem>>, vector<1x1x16xf32>,
    %81 = vector.extract_strided_slice %30 {offsets = [0, 128], sizes = [1, 16], strides = [1, 1]} : vector<1x256xf32> to vector<1x16xf32>
    %82 = vector.shape_cast %81 : vector<1x16xf32> to vector<1x1x16xf32>
    %83 = vector.extract_strided_slice %32 {offsets = [0, 128], sizes = [1, 16], strides = [1, 1]} : vector<1x256xf32> to vector<1x16xf32>
    %84 = vector.shape_cast %83 : vector<1x16xf32> to vector<1x1x16xf32>
    %c0_58 = arith.constant 0 : index
    %c11 = arith.constant 11 : index
    %c3_59 = arith.constant 3 : index
    %85 = vector.load %arg6[%c0_58, %c11, %c3_59] : memref<2x22x22xf32, #tpu.memory_space<vmem>>, vector<1x1x16xf32>
    tpu.vector_store %arg6[%c0_58, %c11, %c3_59], %82 {strides = array<i32>} : memref<2x22x22xf32, #tpu.memory_space<vmem>>, vector<1x1x16xf32>,
    %c1_60 = arith.constant 1 : index
    %c11_61 = arith.constant 11 : index
    %c3_62 = arith.constant 3 : index
    %86 = vector.load %arg6[%c1_60, %c11_61, %c3_62] : memref<2x22x22xf32, #tpu.memory_space<vmem>>, vector<1x1x16xf32>
    tpu.vector_store %arg6[%c1_60, %c11_61, %c3_62], %84 {strides = array<i32>} : memref<2x22x22xf32, #tpu.memory_space<vmem>>, vector<1x1x16xf32>,
    %87 = vector.extract_strided_slice %30 {offsets = [0, 144], sizes = [1, 16], strides = [1, 1]} : vector<1x256xf32> to vector<1x16xf32>
    %88 = vector.shape_cast %87 : vector<1x16xf32> to vector<1x1x16xf32>
    %89 = vector.extract_strided_slice %32 {offsets = [0, 144], sizes = [1, 16], strides = [1, 1]} : vector<1x256xf32> to vector<1x16xf32>
    %90 = vector.shape_cast %89 : vector<1x16xf32> to vector<1x1x16xf32>
    %c0_63 = arith.constant 0 : index
    %c12 = arith.constant 12 : index
    %c3_64 = arith.constant 3 : index
    %91 = vector.load %arg6[%c0_63, %c12, %c3_64] : memref<2x22x22xf32, #tpu.memory_space<vmem>>, vector<1x1x16xf32>
    tpu.vector_store %arg6[%c0_63, %c12, %c3_64], %88 {strides = array<i32>} : memref<2x22x22xf32, #tpu.memory_space<vmem>>, vector<1x1x16xf32>,
    %c1_65 = arith.constant 1 : index
    %c12_66 = arith.constant 12 : index
    %c3_67 = arith.constant 3 : index
    %92 = vector.load %arg6[%c1_65, %c12_66, %c3_67] : memref<2x22x22xf32, #tpu.memory_space<vmem>>, vector<1x1x16xf32>
    tpu.vector_store %arg6[%c1_65, %c12_66, %c3_67], %90 {strides = array<i32>} : memref<2x22x22xf32, #tpu.memory_space<vmem>>, vector<1x1x16xf32>,
    %93 = vector.extract_strided_slice %30 {offsets = [0, 160], sizes = [1, 16], strides = [1, 1]} : vector<1x256xf32> to vector<1x16xf32>
    %94 = vector.shape_cast %93 : vector<1x16xf32> to vector<1x1x16xf32>
    %95 = vector.extract_strided_slice %32 {offsets = [0, 160], sizes = [1, 16], strides = [1, 1]} : vector<1x256xf32> to vector<1x16xf32>
    %96 = vector.shape_cast %95 : vector<1x16xf32> to vector<1x1x16xf32>
    %c0_68 = arith.constant 0 : index
    %c13 = arith.constant 13 : index
    %c3_69 = arith.constant 3 : index
    %97 = vector.load %arg6[%c0_68, %c13, %c3_69] : memref<2x22x22xf32, #tpu.memory_space<vmem>>, vector<1x1x16xf32>
    tpu.vector_store %arg6[%c0_68, %c13, %c3_69], %94 {strides = array<i32>} : memref<2x22x22xf32, #tpu.memory_space<vmem>>, vector<1x1x16xf32>,
    %c1_70 = arith.constant 1 : index
    %c13_71 = arith.constant 13 : index
    %c3_72 = arith.constant 3 : index
    %98 = vector.load %arg6[%c1_70, %c13_71, %c3_72] : memref<2x22x22xf32, #tpu.memory_space<vmem>>, vector<1x1x16xf32>
    tpu.vector_store %arg6[%c1_70, %c13_71, %c3_72], %96 {strides = array<i32>} : memref<2x22x22xf32, #tpu.memory_space<vmem>>, vector<1x1x16xf32>,
    %99 = vector.extract_strided_slice %30 {offsets = [0, 176], sizes = [1, 16], strides = [1, 1]} : vector<1x256xf32> to vector<1x16xf32>
    %100 = vector.shape_cast %99 : vector<1x16xf32> to vector<1x1x16xf32>
    %101 = vector.extract_strided_slice %32 {offsets = [0, 176], sizes = [1, 16], strides = [1, 1]} : vector<1x256xf32> to vector<1x16xf32>
    %102 = vector.shape_cast %101 : vector<1x16xf32> to vector<1x1x16xf32>
    %c0_73 = arith.constant 0 : index
    %c14 = arith.constant 14 : index
    %c3_74 = arith.constant 3 : index
    %103 = vector.load %arg6[%c0_73, %c14, %c3_74] : memref<2x22x22xf32, #tpu.memory_space<vmem>>, vector<1x1x16xf32>
    tpu.vector_store %arg6[%c0_73, %c14, %c3_74], %100 {strides = array<i32>} : memref<2x22x22xf32, #tpu.memory_space<vmem>>, vector<1x1x16xf32>,
    %c1_75 = arith.constant 1 : index
    %c14_76 = arith.constant 14 : index
    %c3_77 = arith.constant 3 : index
    %104 = vector.load %arg6[%c1_75, %c14_76, %c3_77] : memref<2x22x22xf32, #tpu.memory_space<vmem>>, vector<1x1x16xf32>
    tpu.vector_store %arg6[%c1_75, %c14_76, %c3_77], %102 {strides = array<i32>} : memref<2x22x22xf32, #tpu.memory_space<vmem>>, vector<1x1x16xf32>,
    %105 = vector.extract_strided_slice %30 {offsets = [0, 192], sizes = [1, 16], strides = [1, 1]} : vector<1x256xf32> to vector<1x16xf32>
    %106 = vector.shape_cast %105 : vector<1x16xf32> to vector<1x1x16xf32>
    %107 = vector.extract_strided_slice %32 {offsets = [0, 192], sizes = [1, 16], strides = [1, 1]} : vector<1x256xf32> to vector<1x16xf32>
    %108 = vector.shape_cast %107 : vector<1x16xf32> to vector<1x1x16xf32>
    %c0_78 = arith.constant 0 : index
    %c15 = arith.constant 15 : index
    %c3_79 = arith.constant 3 : index
    %109 = vector.load %arg6[%c0_78, %c15, %c3_79] : memref<2x22x22xf32, #tpu.memory_space<vmem>>, vector<1x1x16xf32>
    tpu.vector_store %arg6[%c0_78, %c15, %c3_79], %106 {strides = array<i32>} : memref<2x22x22xf32, #tpu.memory_space<vmem>>, vector<1x1x16xf32>,
    %c1_80 = arith.constant 1 : index
    %c15_81 = arith.constant 15 : index
    %c3_82 = arith.constant 3 : index
    %110 = vector.load %arg6[%c1_80, %c15_81, %c3_82] : memref<2x22x22xf32, #tpu.memory_space<vmem>>, vector<1x1x16xf32>
    tpu.vector_store %arg6[%c1_80, %c15_81, %c3_82], %108 {strides = array<i32>} : memref<2x22x22xf32, #tpu.memory_space<vmem>>, vector<1x1x16xf32>,
    %111 = vector.extract_strided_slice %30 {offsets = [0, 208], sizes = [1, 16], strides = [1, 1]} : vector<1x256xf32> to vector<1x16xf32>
    %112 = vector.shape_cast %111 : vector<1x16xf32> to vector<1x1x16xf32>
    %113 = vector.extract_strided_slice %32 {offsets = [0, 208], sizes = [1, 16], strides = [1, 1]} : vector<1x256xf32> to vector<1x16xf32>
    %114 = vector.shape_cast %113 : vector<1x16xf32> to vector<1x1x16xf32>
    %c0_83 = arith.constant 0 : index
    %c16 = arith.constant 16 : index
    %c3_84 = arith.constant 3 : index
    %115 = vector.load %arg6[%c0_83, %c16, %c3_84] : memref<2x22x22xf32, #tpu.memory_space<vmem>>, vector<1x1x16xf32>
    tpu.vector_store %arg6[%c0_83, %c16, %c3_84], %112 {strides = array<i32>} : memref<2x22x22xf32, #tpu.memory_space<vmem>>, vector<1x1x16xf32>,
    %c1_85 = arith.constant 1 : index
    %c16_86 = arith.constant 16 : index
    %c3_87 = arith.constant 3 : index
    %116 = vector.load %arg6[%c1_85, %c16_86, %c3_87] : memref<2x22x22xf32, #tpu.memory_space<vmem>>, vector<1x1x16xf32>
    tpu.vector_store %arg6[%c1_85, %c16_86, %c3_87], %114 {strides = array<i32>} : memref<2x22x22xf32, #tpu.memory_space<vmem>>, vector<1x1x16xf32>,
    %117 = vector.extract_strided_slice %30 {offsets = [0, 224], sizes = [1, 16], strides = [1, 1]} : vector<1x256xf32> to vector<1x16xf32>
    %118 = vector.shape_cast %117 : vector<1x16xf32> to vector<1x1x16xf32>
    %119 = vector.extract_strided_slice %32 {offsets = [0, 224], sizes = [1, 16], strides = [1, 1]} : vector<1x256xf32> to vector<1x16xf32>
    %120 = vector.shape_cast %119 : vector<1x16xf32> to vector<1x1x16xf32>
    %c0_88 = arith.constant 0 : index
    %c17 = arith.constant 17 : index
    %c3_89 = arith.constant 3 : index
    %121 = vector.load %arg6[%c0_88, %c17, %c3_89] : memref<2x22x22xf32, #tpu.memory_space<vmem>>, vector<1x1x16xf32>
    tpu.vector_store %arg6[%c0_88, %c17, %c3_89], %118 {strides = array<i32>} : memref<2x22x22xf32, #tpu.memory_space<vmem>>, vector<1x1x16xf32>,
    %c1_90 = arith.constant 1 : index
    %c17_91 = arith.constant 17 : index
    %c3_92 = arith.constant 3 : index
    %122 = vector.load %arg6[%c1_90, %c17_91, %c3_92] : memref<2x22x22xf32, #tpu.memory_space<vmem>>, vector<1x1x16xf32>
    tpu.vector_store %arg6[%c1_90, %c17_91, %c3_92], %120 {strides = array<i32>} : memref<2x22x22xf32, #tpu.memory_space<vmem>>, vector<1x1x16xf32>,
    %123 = vector.extract_strided_slice %30 {offsets = [0, 240], sizes = [1, 16], strides = [1, 1]} : vector<1x256xf32> to vector<1x16xf32>
    %124 = vector.shape_cast %123 : vector<1x16xf32> to vector<1x1x16xf32>
    %125 = vector.extract_strided_slice %32 {offsets = [0, 240], sizes = [1, 16], strides = [1, 1]} : vector<1x256xf32> to vector<1x16xf32>
    %126 = vector.shape_cast %125 : vector<1x16xf32> to vector<1x1x16xf32>
    %c0_93 = arith.constant 0 : index
    %c18 = arith.constant 18 : index
    %c3_94 = arith.constant 3 : index
    %127 = vector.load %arg6[%c0_93, %c18, %c3_94] : memref<2x22x22xf32, #tpu.memory_space<vmem>>, vector<1x1x16xf32>
    tpu.vector_store %arg6[%c0_93, %c18, %c3_94], %124 {strides = array<i32>} : memref<2x22x22xf32, #tpu.memory_space<vmem>>, vector<1x1x16xf32>,
    %c1_95 = arith.constant 1 : index
    %c18_96 = arith.constant 18 : index
    %c3_97 = arith.constant 3 : index
    %128 = vector.load %arg6[%c1_95, %c18_96, %c3_97] : memref<2x22x22xf32, #tpu.memory_space<vmem>>, vector<1x1x16xf32>
    tpu.vector_store %arg6[%c1_95, %c18_96, %c3_97], %126 {strides = array<i32>} : memref<2x22x22xf32, #tpu.memory_space<vmem>>, vector<1x1x16xf32>,
    %c0_98 = arith.constant 0 : index
    %c0_99 = arith.constant 0 : index
    %c0_100 = arith.constant 0 : index
    %129 = vector.load %arg6[%c0_98, %c0_99, %c0_100] : memref<2x22x22xf32, #tpu.memory_space<vmem>>, vector<2x22x22xf32>
    %cst_101 = arith.constant 0.000000e+00 : f32
    %130 = vector.broadcast %cst_101 : f32 to vector<16x16xf32>
    %131 = vector.extract_strided_slice %129 {offsets = [0, 0, 0], sizes = [1, 22, 16], strides = [1, 1, 1]} : vector<2x22x22xf32> to vector<1x22x16xf32>
    %132 = vector.shape_cast %131 : vector<1x22x16xf32> to vector<22x16xf32>
    %c0_102 = arith.constant 0 : index
    %133 = memref.load %arg4[%c0_102] : memref<98xf32, #tpu.memory_space<smem>>
    %134 = vector.extract_strided_slice %132 {offsets = [0, 0], sizes = [16, 16], strides = [1, 1]} : vector<22x16xf32> to vector<16x16xf32>
    %135 = vector.broadcast %133 : f32 to vector<16x16xf32>
    %136 = arith.mulf %134, %135 : vector<16x16xf32>
    %137 = arith.addf %130, %136 : vector<16x16xf32>
    %c7_103 = arith.constant 7 : index
    %138 = memref.load %arg4[%c7_103] : memref<98xf32, #tpu.memory_space<smem>>
    %139 = vector.extract_strided_slice %132 {offsets = [1, 0], sizes = [16, 16], strides = [1, 1]} : vector<22x16xf32> to vector<16x16xf32>
    %140 = vector.broadcast %138 : f32 to vector<16x16xf32>
    %141 = arith.mulf %139, %140 : vector<16x16xf32>
    %142 = arith.addf %137, %141 : vector<16x16xf32>
    %c14_104 = arith.constant 14 : index
    %143 = memref.load %arg4[%c14_104] : memref<98xf32, #tpu.memory_space<smem>>
    %144 = vector.extract_strided_slice %132 {offsets = [2, 0], sizes = [16, 16], strides = [1, 1]} : vector<22x16xf32> to vector<16x16xf32>
    %145 = vector.broadcast %143 : f32 to vector<16x16xf32>
    %146 = arith.mulf %144, %145 : vector<16x16xf32>
    %147 = arith.addf %142, %146 : vector<16x16xf32>
    %c21 = arith.constant 21 : index
    %148 = memref.load %arg4[%c21] : memref<98xf32, #tpu.memory_space<smem>>
    %149 = vector.extract_strided_slice %132 {offsets = [3, 0], sizes = [16, 16], strides = [1, 1]} : vector<22x16xf32> to vector<16x16xf32>
    %150 = vector.broadcast %148 : f32 to vector<16x16xf32>
    %151 = arith.mulf %149, %150 : vector<16x16xf32>
    %152 = arith.addf %147, %151 : vector<16x16xf32>
    %c28 = arith.constant 28 : index
    %153 = memref.load %arg4[%c28] : memref<98xf32, #tpu.memory_space<smem>>
    %154 = vector.extract_strided_slice %132 {offsets = [4, 0], sizes = [16, 16], strides = [1, 1]} : vector<22x16xf32> to vector<16x16xf32>
    %155 = vector.broadcast %153 : f32 to vector<16x16xf32>
    %156 = arith.mulf %154, %155 : vector<16x16xf32>
    %157 = arith.addf %152, %156 : vector<16x16xf32>
    %c35 = arith.constant 35 : index
    %158 = memref.load %arg4[%c35] : memref<98xf32, #tpu.memory_space<smem>>
    %159 = vector.extract_strided_slice %132 {offsets = [5, 0], sizes = [16, 16], strides = [1, 1]} : vector<22x16xf32> to vector<16x16xf32>
    %160 = vector.broadcast %158 : f32 to vector<16x16xf32>
    %161 = arith.mulf %159, %160 : vector<16x16xf32>
    %162 = arith.addf %157, %161 : vector<16x16xf32>
    %c42 = arith.constant 42 : index
    %163 = memref.load %arg4[%c42] : memref<98xf32, #tpu.memory_space<smem>>
    %164 = vector.extract_strided_slice %132 {offsets = [6, 0], sizes = [16, 16], strides = [1, 1]} : vector<22x16xf32> to vector<16x16xf32>
    %165 = vector.broadcast %163 : f32 to vector<16x16xf32>
    %166 = arith.mulf %164, %165 : vector<16x16xf32>
    %167 = arith.addf %162, %166 : vector<16x16xf32>
    %168 = vector.extract_strided_slice %129 {offsets = [0, 0, 1], sizes = [1, 22, 16], strides = [1, 1, 1]} : vector<2x22x22xf32> to vector<1x22x16xf32>
    %169 = vector.shape_cast %168 : vector<1x22x16xf32> to vector<22x16xf32>
    %c1_105 = arith.constant 1 : index
    %170 = memref.load %arg4[%c1_105] : memref<98xf32, #tpu.memory_space<smem>>
    %171 = vector.extract_strided_slice %169 {offsets = [0, 0], sizes = [16, 16], strides = [1, 1]} : vector<22x16xf32> to vector<16x16xf32>
    %172 = vector.broadcast %170 : f32 to vector<16x16xf32>
    %173 = arith.mulf %171, %172 : vector<16x16xf32>
    %174 = arith.addf %167, %173 : vector<16x16xf32>
    %c8_106 = arith.constant 8 : index
    %175 = memref.load %arg4[%c8_106] : memref<98xf32, #tpu.memory_space<smem>>
    %176 = vector.extract_strided_slice %169 {offsets = [1, 0], sizes = [16, 16], strides = [1, 1]} : vector<22x16xf32> to vector<16x16xf32>
    %177 = vector.broadcast %175 : f32 to vector<16x16xf32>
    %178 = arith.mulf %176, %177 : vector<16x16xf32>
    %179 = arith.addf %174, %178 : vector<16x16xf32>
    %c15_107 = arith.constant 15 : index
    %180 = memref.load %arg4[%c15_107] : memref<98xf32, #tpu.memory_space<smem>>
    %181 = vector.extract_strided_slice %169 {offsets = [2, 0], sizes = [16, 16], strides = [1, 1]} : vector<22x16xf32> to vector<16x16xf32>
    %182 = vector.broadcast %180 : f32 to vector<16x16xf32>
    %183 = arith.mulf %181, %182 : vector<16x16xf32>
    %184 = arith.addf %179, %183 : vector<16x16xf32>
    %c22 = arith.constant 22 : index
    %185 = memref.load %arg4[%c22] : memref<98xf32, #tpu.memory_space<smem>>
    %186 = vector.extract_strided_slice %169 {offsets = [3, 0], sizes = [16, 16], strides = [1, 1]} : vector<22x16xf32> to vector<16x16xf32>
    %187 = vector.broadcast %185 : f32 to vector<16x16xf32>
    %188 = arith.mulf %186, %187 : vector<16x16xf32>
    %189 = arith.addf %184, %188 : vector<16x16xf32>
    %c29 = arith.constant 29 : index
    %190 = memref.load %arg4[%c29] : memref<98xf32, #tpu.memory_space<smem>>
    %191 = vector.extract_strided_slice %169 {offsets = [4, 0], sizes = [16, 16], strides = [1, 1]} : vector<22x16xf32> to vector<16x16xf32>
    %192 = vector.broadcast %190 : f32 to vector<16x16xf32>
    %193 = arith.mulf %191, %192 : vector<16x16xf32>
    %194 = arith.addf %189, %193 : vector<16x16xf32>
    %c36 = arith.constant 36 : index
    %195 = memref.load %arg4[%c36] : memref<98xf32, #tpu.memory_space<smem>>
    %196 = vector.extract_strided_slice %169 {offsets = [5, 0], sizes = [16, 16], strides = [1, 1]} : vector<22x16xf32> to vector<16x16xf32>
    %197 = vector.broadcast %195 : f32 to vector<16x16xf32>
    %198 = arith.mulf %196, %197 : vector<16x16xf32>
    %199 = arith.addf %194, %198 : vector<16x16xf32>
    %c43 = arith.constant 43 : index
    %200 = memref.load %arg4[%c43] : memref<98xf32, #tpu.memory_space<smem>>
    %201 = vector.extract_strided_slice %169 {offsets = [6, 0], sizes = [16, 16], strides = [1, 1]} : vector<22x16xf32> to vector<16x16xf32>
    %202 = vector.broadcast %200 : f32 to vector<16x16xf32>
    %203 = arith.mulf %201, %202 : vector<16x16xf32>
    %204 = arith.addf %199, %203 : vector<16x16xf32>
    %205 = vector.extract_strided_slice %129 {offsets = [0, 0, 2], sizes = [1, 22, 16], strides = [1, 1, 1]} : vector<2x22x22xf32> to vector<1x22x16xf32>
    %206 = vector.shape_cast %205 : vector<1x22x16xf32> to vector<22x16xf32>
    %c2 = arith.constant 2 : index
    %207 = memref.load %arg4[%c2] : memref<98xf32, #tpu.memory_space<smem>>
    %208 = vector.extract_strided_slice %206 {offsets = [0, 0], sizes = [16, 16], strides = [1, 1]} : vector<22x16xf32> to vector<16x16xf32>
    %209 = vector.broadcast %207 : f32 to vector<16x16xf32>
    %210 = arith.mulf %208, %209 : vector<16x16xf32>
    %211 = arith.addf %204, %210 : vector<16x16xf32>
    %c9_108 = arith.constant 9 : index
    %212 = memref.load %arg4[%c9_108] : memref<98xf32, #tpu.memory_space<smem>>
    %213 = vector.extract_strided_slice %206 {offsets = [1, 0], sizes = [16, 16], strides = [1, 1]} : vector<22x16xf32> to vector<16x16xf32>
    %214 = vector.broadcast %212 : f32 to vector<16x16xf32>
    %215 = arith.mulf %213, %214 : vector<16x16xf32>
    %216 = arith.addf %211, %215 : vector<16x16xf32>
    %c16_109 = arith.constant 16 : index
    %217 = memref.load %arg4[%c16_109] : memref<98xf32, #tpu.memory_space<smem>>
    %218 = vector.extract_strided_slice %206 {offsets = [2, 0], sizes = [16, 16], strides = [1, 1]} : vector<22x16xf32> to vector<16x16xf32>
    %219 = vector.broadcast %217 : f32 to vector<16x16xf32>
    %220 = arith.mulf %218, %219 : vector<16x16xf32>
    %221 = arith.addf %216, %220 : vector<16x16xf32>
    %c23 = arith.constant 23 : index
    %222 = memref.load %arg4[%c23] : memref<98xf32, #tpu.memory_space<smem>>
    %223 = vector.extract_strided_slice %206 {offsets = [3, 0], sizes = [16, 16], strides = [1, 1]} : vector<22x16xf32> to vector<16x16xf32>
    %224 = vector.broadcast %222 : f32 to vector<16x16xf32>
    %225 = arith.mulf %223, %224 : vector<16x16xf32>
    %226 = arith.addf %221, %225 : vector<16x16xf32>
    %c30 = arith.constant 30 : index
    %227 = memref.load %arg4[%c30] : memref<98xf32, #tpu.memory_space<smem>>
    %228 = vector.extract_strided_slice %206 {offsets = [4, 0], sizes = [16, 16], strides = [1, 1]} : vector<22x16xf32> to vector<16x16xf32>
    %229 = vector.broadcast %227 : f32 to vector<16x16xf32>
    %230 = arith.mulf %228, %229 : vector<16x16xf32>
    %231 = arith.addf %226, %230 : vector<16x16xf32>
    %c37 = arith.constant 37 : index
    %232 = memref.load %arg4[%c37] : memref<98xf32, #tpu.memory_space<smem>>
    %233 = vector.extract_strided_slice %206 {offsets = [5, 0], sizes = [16, 16], strides = [1, 1]} : vector<22x16xf32> to vector<16x16xf32>
    %234 = vector.broadcast %232 : f32 to vector<16x16xf32>
    %235 = arith.mulf %233, %234 : vector<16x16xf32>
    %236 = arith.addf %231, %235 : vector<16x16xf32>
    %c44 = arith.constant 44 : index
    %237 = memref.load %arg4[%c44] : memref<98xf32, #tpu.memory_space<smem>>
    %238 = vector.extract_strided_slice %206 {offsets = [6, 0], sizes = [16, 16], strides = [1, 1]} : vector<22x16xf32> to vector<16x16xf32>
    %239 = vector.broadcast %237 : f32 to vector<16x16xf32>
    %240 = arith.mulf %238, %239 : vector<16x16xf32>
    %241 = arith.addf %236, %240 : vector<16x16xf32>
    %242 = vector.extract_strided_slice %129 {offsets = [0, 0, 3], sizes = [1, 22, 16], strides = [1, 1, 1]} : vector<2x22x22xf32> to vector<1x22x16xf32>
    %243 = vector.shape_cast %242 : vector<1x22x16xf32> to vector<22x16xf32>
    %c3_110 = arith.constant 3 : index
    %244 = memref.load %arg4[%c3_110] : memref<98xf32, #tpu.memory_space<smem>>
    %245 = vector.extract_strided_slice %243 {offsets = [0, 0], sizes = [16, 16], strides = [1, 1]} : vector<22x16xf32> to vector<16x16xf32>
    %246 = vector.broadcast %244 : f32 to vector<16x16xf32>
    %247 = arith.mulf %245, %246 : vector<16x16xf32>
    %248 = arith.addf %241, %247 : vector<16x16xf32>
    %c10_111 = arith.constant 10 : index
    %249 = memref.load %arg4[%c10_111] : memref<98xf32, #tpu.memory_space<smem>>
    %250 = vector.extract_strided_slice %243 {offsets = [1, 0], sizes = [16, 16], strides = [1, 1]} : vector<22x16xf32> to vector<16x16xf32>
    %251 = vector.broadcast %249 : f32 to vector<16x16xf32>
    %252 = arith.mulf %250, %251 : vector<16x16xf32>
    %253 = arith.addf %248, %252 : vector<16x16xf32>
    %c17_112 = arith.constant 17 : index
    %254 = memref.load %arg4[%c17_112] : memref<98xf32, #tpu.memory_space<smem>>
    %255 = vector.extract_strided_slice %243 {offsets = [2, 0], sizes = [16, 16], strides = [1, 1]} : vector<22x16xf32> to vector<16x16xf32>
    %256 = vector.broadcast %254 : f32 to vector<16x16xf32>
    %257 = arith.mulf %255, %256 : vector<16x16xf32>
    %258 = arith.addf %253, %257 : vector<16x16xf32>
    %c24 = arith.constant 24 : index
    %259 = memref.load %arg4[%c24] : memref<98xf32, #tpu.memory_space<smem>>
    %260 = vector.extract_strided_slice %243 {offsets = [3, 0], sizes = [16, 16], strides = [1, 1]} : vector<22x16xf32> to vector<16x16xf32>
    %261 = vector.broadcast %259 : f32 to vector<16x16xf32>
    %262 = arith.mulf %260, %261 : vector<16x16xf32>
    %263 = arith.addf %258, %262 : vector<16x16xf32>
    %c31 = arith.constant 31 : index
    %264 = memref.load %arg4[%c31] : memref<98xf32, #tpu.memory_space<smem>>
    %265 = vector.extract_strided_slice %243 {offsets = [4, 0], sizes = [16, 16], strides = [1, 1]} : vector<22x16xf32> to vector<16x16xf32>
    %266 = vector.broadcast %264 : f32 to vector<16x16xf32>
    %267 = arith.mulf %265, %266 : vector<16x16xf32>
    %268 = arith.addf %263, %267 : vector<16x16xf32>
    %c38 = arith.constant 38 : index
    %269 = memref.load %arg4[%c38] : memref<98xf32, #tpu.memory_space<smem>>
    %270 = vector.extract_strided_slice %243 {offsets = [5, 0], sizes = [16, 16], strides = [1, 1]} : vector<22x16xf32> to vector<16x16xf32>
    %271 = vector.broadcast %269 : f32 to vector<16x16xf32>
    %272 = arith.mulf %270, %271 : vector<16x16xf32>
    %273 = arith.addf %268, %272 : vector<16x16xf32>
    %c45 = arith.constant 45 : index
    %274 = memref.load %arg4[%c45] : memref<98xf32, #tpu.memory_space<smem>>
    %275 = vector.extract_strided_slice %243 {offsets = [6, 0], sizes = [16, 16], strides = [1, 1]} : vector<22x16xf32> to vector<16x16xf32>
    %276 = vector.broadcast %274 : f32 to vector<16x16xf32>
    %277 = arith.mulf %275, %276 : vector<16x16xf32>
    %278 = arith.addf %273, %277 : vector<16x16xf32>
    %279 = vector.extract_strided_slice %129 {offsets = [0, 0, 4], sizes = [1, 22, 16], strides = [1, 1, 1]} : vector<2x22x22xf32> to vector<1x22x16xf32>
    %280 = vector.shape_cast %279 : vector<1x22x16xf32> to vector<22x16xf32>
    %c4_113 = arith.constant 4 : index
    %281 = memref.load %arg4[%c4_113] : memref<98xf32, #tpu.memory_space<smem>>
    %282 = vector.extract_strided_slice %280 {offsets = [0, 0], sizes = [16, 16], strides = [1, 1]} : vector<22x16xf32> to vector<16x16xf32>
    %283 = vector.broadcast %281 : f32 to vector<16x16xf32>
    %284 = arith.mulf %282, %283 : vector<16x16xf32>
    %285 = arith.addf %278, %284 : vector<16x16xf32>
    %c11_114 = arith.constant 11 : index
    %286 = memref.load %arg4[%c11_114] : memref<98xf32, #tpu.memory_space<smem>>
    %287 = vector.extract_strided_slice %280 {offsets = [1, 0], sizes = [16, 16], strides = [1, 1]} : vector<22x16xf32> to vector<16x16xf32>
    %288 = vector.broadcast %286 : f32 to vector<16x16xf32>
    %289 = arith.mulf %287, %288 : vector<16x16xf32>
    %290 = arith.addf %285, %289 : vector<16x16xf32>
    %c18_115 = arith.constant 18 : index
    %291 = memref.load %arg4[%c18_115] : memref<98xf32, #tpu.memory_space<smem>>
    %292 = vector.extract_strided_slice %280 {offsets = [2, 0], sizes = [16, 16], strides = [1, 1]} : vector<22x16xf32> to vector<16x16xf32>
    %293 = vector.broadcast %291 : f32 to vector<16x16xf32>
    %294 = arith.mulf %292, %293 : vector<16x16xf32>
    %295 = arith.addf %290, %294 : vector<16x16xf32>
    %c25 = arith.constant 25 : index
    %296 = memref.load %arg4[%c25] : memref<98xf32, #tpu.memory_space<smem>>
    %297 = vector.extract_strided_slice %280 {offsets = [3, 0], sizes = [16, 16], strides = [1, 1]} : vector<22x16xf32> to vector<16x16xf32>
    %298 = vector.broadcast %296 : f32 to vector<16x16xf32>
    %299 = arith.mulf %297, %298 : vector<16x16xf32>
    %300 = arith.addf %295, %299 : vector<16x16xf32>
    %c32 = arith.constant 32 : index
    %301 = memref.load %arg4[%c32] : memref<98xf32, #tpu.memory_space<smem>>
    %302 = vector.extract_strided_slice %280 {offsets = [4, 0], sizes = [16, 16], strides = [1, 1]} : vector<22x16xf32> to vector<16x16xf32>
    %303 = vector.broadcast %301 : f32 to vector<16x16xf32>
    %304 = arith.mulf %302, %303 : vector<16x16xf32>
    %305 = arith.addf %300, %304 : vector<16x16xf32>
    %c39 = arith.constant 39 : index
    %306 = memref.load %arg4[%c39] : memref<98xf32, #tpu.memory_space<smem>>
    %307 = vector.extract_strided_slice %280 {offsets = [5, 0], sizes = [16, 16], strides = [1, 1]} : vector<22x16xf32> to vector<16x16xf32>
    %308 = vector.broadcast %306 : f32 to vector<16x16xf32>
    %309 = arith.mulf %307, %308 : vector<16x16xf32>
    %310 = arith.addf %305, %309 : vector<16x16xf32>
    %c46 = arith.constant 46 : index
    %311 = memref.load %arg4[%c46] : memref<98xf32, #tpu.memory_space<smem>>
    %312 = vector.extract_strided_slice %280 {offsets = [6, 0], sizes = [16, 16], strides = [1, 1]} : vector<22x16xf32> to vector<16x16xf32>
    %313 = vector.broadcast %311 : f32 to vector<16x16xf32>
    %314 = arith.mulf %312, %313 : vector<16x16xf32>
    %315 = arith.addf %310, %314 : vector<16x16xf32>
    %316 = vector.extract_strided_slice %129 {offsets = [0, 0, 5], sizes = [1, 22, 16], strides = [1, 1, 1]} : vector<2x22x22xf32> to vector<1x22x16xf32>
    %317 = vector.shape_cast %316 : vector<1x22x16xf32> to vector<22x16xf32>
    %c5_116 = arith.constant 5 : index
    %318 = memref.load %arg4[%c5_116] : memref<98xf32, #tpu.memory_space<smem>>
    %319 = vector.extract_strided_slice %317 {offsets = [0, 0], sizes = [16, 16], strides = [1, 1]} : vector<22x16xf32> to vector<16x16xf32>
    %320 = vector.broadcast %318 : f32 to vector<16x16xf32>
    %321 = arith.mulf %319, %320 : vector<16x16xf32>
    %322 = arith.addf %315, %321 : vector<16x16xf32>
    %c12_117 = arith.constant 12 : index
    %323 = memref.load %arg4[%c12_117] : memref<98xf32, #tpu.memory_space<smem>>
    %324 = vector.extract_strided_slice %317 {offsets = [1, 0], sizes = [16, 16], strides = [1, 1]} : vector<22x16xf32> to vector<16x16xf32>
    %325 = vector.broadcast %323 : f32 to vector<16x16xf32>
    %326 = arith.mulf %324, %325 : vector<16x16xf32>
    %327 = arith.addf %322, %326 : vector<16x16xf32>
    %c19 = arith.constant 19 : index
    %328 = memref.load %arg4[%c19] : memref<98xf32, #tpu.memory_space<smem>>
    %329 = vector.extract_strided_slice %317 {offsets = [2, 0], sizes = [16, 16], strides = [1, 1]} : vector<22x16xf32> to vector<16x16xf32>
    %330 = vector.broadcast %328 : f32 to vector<16x16xf32>
    %331 = arith.mulf %329, %330 : vector<16x16xf32>
    %332 = arith.addf %327, %331 : vector<16x16xf32>
    %c26 = arith.constant 26 : index
    %333 = memref.load %arg4[%c26] : memref<98xf32, #tpu.memory_space<smem>>
    %334 = vector.extract_strided_slice %317 {offsets = [3, 0], sizes = [16, 16], strides = [1, 1]} : vector<22x16xf32> to vector<16x16xf32>
    %335 = vector.broadcast %333 : f32 to vector<16x16xf32>
    %336 = arith.mulf %334, %335 : vector<16x16xf32>
    %337 = arith.addf %332, %336 : vector<16x16xf32>
    %c33 = arith.constant 33 : index
    %338 = memref.load %arg4[%c33] : memref<98xf32, #tpu.memory_space<smem>>
    %339 = vector.extract_strided_slice %317 {offsets = [4, 0], sizes = [16, 16], strides = [1, 1]} : vector<22x16xf32> to vector<16x16xf32>
    %340 = vector.broadcast %338 : f32 to vector<16x16xf32>
    %341 = arith.mulf %339, %340 : vector<16x16xf32>
    %342 = arith.addf %337, %341 : vector<16x16xf32>
    %c40 = arith.constant 40 : index
    %343 = memref.load %arg4[%c40] : memref<98xf32, #tpu.memory_space<smem>>
    %344 = vector.extract_strided_slice %317 {offsets = [5, 0], sizes = [16, 16], strides = [1, 1]} : vector<22x16xf32> to vector<16x16xf32>
    %345 = vector.broadcast %343 : f32 to vector<16x16xf32>
    %346 = arith.mulf %344, %345 : vector<16x16xf32>
    %347 = arith.addf %342, %346 : vector<16x16xf32>
    %c47 = arith.constant 47 : index
    %348 = memref.load %arg4[%c47] : memref<98xf32, #tpu.memory_space<smem>>
    %349 = vector.extract_strided_slice %317 {offsets = [6, 0], sizes = [16, 16], strides = [1, 1]} : vector<22x16xf32> to vector<16x16xf32>
    %350 = vector.broadcast %348 : f32 to vector<16x16xf32>
    %351 = arith.mulf %349, %350 : vector<16x16xf32>
    %352 = arith.addf %347, %351 : vector<16x16xf32>
    %353 = vector.extract_strided_slice %129 {offsets = [0, 0, 6], sizes = [1, 22, 16], strides = [1, 1, 1]} : vector<2x22x22xf32> to vector<1x22x16xf32>
    %354 = vector.shape_cast %353 : vector<1x22x16xf32> to vector<22x16xf32>
    %c6_118 = arith.constant 6 : index
    %355 = memref.load %arg4[%c6_118] : memref<98xf32, #tpu.memory_space<smem>>
    %356 = vector.extract_strided_slice %354 {offsets = [0, 0], sizes = [16, 16], strides = [1, 1]} : vector<22x16xf32> to vector<16x16xf32>
    %357 = vector.broadcast %355 : f32 to vector<16x16xf32>
    %358 = arith.mulf %356, %357 : vector<16x16xf32>
    %359 = arith.addf %352, %358 : vector<16x16xf32>
    %c13_119 = arith.constant 13 : index
    %360 = memref.load %arg4[%c13_119] : memref<98xf32, #tpu.memory_space<smem>>
    %361 = vector.extract_strided_slice %354 {offsets = [1, 0], sizes = [16, 16], strides = [1, 1]} : vector<22x16xf32> to vector<16x16xf32>
    %362 = vector.broadcast %360 : f32 to vector<16x16xf32>
    %363 = arith.mulf %361, %362 : vector<16x16xf32>
    %364 = arith.addf %359, %363 : vector<16x16xf32>
    %c20 = arith.constant 20 : index
    %365 = memref.load %arg4[%c20] : memref<98xf32, #tpu.memory_space<smem>>
    %366 = vector.extract_strided_slice %354 {offsets = [2, 0], sizes = [16, 16], strides = [1, 1]} : vector<22x16xf32> to vector<16x16xf32>
    %367 = vector.broadcast %365 : f32 to vector<16x16xf32>
    %368 = arith.mulf %366, %367 : vector<16x16xf32>
    %369 = arith.addf %364, %368 : vector<16x16xf32>
    %c27 = arith.constant 27 : index
    %370 = memref.load %arg4[%c27] : memref<98xf32, #tpu.memory_space<smem>>
    %371 = vector.extract_strided_slice %354 {offsets = [3, 0], sizes = [16, 16], strides = [1, 1]} : vector<22x16xf32> to vector<16x16xf32>
    %372 = vector.broadcast %370 : f32 to vector<16x16xf32>
    %373 = arith.mulf %371, %372 : vector<16x16xf32>
    %374 = arith.addf %369, %373 : vector<16x16xf32>
    %c34 = arith.constant 34 : index
    %375 = memref.load %arg4[%c34] : memref<98xf32, #tpu.memory_space<smem>>
    %376 = vector.extract_strided_slice %354 {offsets = [4, 0], sizes = [16, 16], strides = [1, 1]} : vector<22x16xf32> to vector<16x16xf32>
    %377 = vector.broadcast %375 : f32 to vector<16x16xf32>
    %378 = arith.mulf %376, %377 : vector<16x16xf32>
    %379 = arith.addf %374, %378 : vector<16x16xf32>
    %c41 = arith.constant 41 : index
    %380 = memref.load %arg4[%c41] : memref<98xf32, #tpu.memory_space<smem>>
    %381 = vector.extract_strided_slice %354 {offsets = [5, 0], sizes = [16, 16], strides = [1, 1]} : vector<22x16xf32> to vector<16x16xf32>
    %382 = vector.broadcast %380 : f32 to vector<16x16xf32>
    %383 = arith.mulf %381, %382 : vector<16x16xf32>
    %384 = arith.addf %379, %383 : vector<16x16xf32>
    %c48 = arith.constant 48 : index
    %385 = memref.load %arg4[%c48] : memref<98xf32, #tpu.memory_space<smem>>
    %386 = vector.extract_strided_slice %354 {offsets = [6, 0], sizes = [16, 16], strides = [1, 1]} : vector<22x16xf32> to vector<16x16xf32>
    %387 = vector.broadcast %385 : f32 to vector<16x16xf32>
    %388 = arith.mulf %386, %387 : vector<16x16xf32>
    %389 = arith.addf %384, %388 : vector<16x16xf32>
    %390 = vector.extract_strided_slice %129 {offsets = [1, 0, 0], sizes = [1, 22, 16], strides = [1, 1, 1]} : vector<2x22x22xf32> to vector<1x22x16xf32>
    %391 = vector.shape_cast %390 : vector<1x22x16xf32> to vector<22x16xf32>
    %c49 = arith.constant 49 : index
    %392 = memref.load %arg4[%c49] : memref<98xf32, #tpu.memory_space<smem>>
    %393 = vector.extract_strided_slice %391 {offsets = [0, 0], sizes = [16, 16], strides = [1, 1]} : vector<22x16xf32> to vector<16x16xf32>
    %394 = vector.broadcast %392 : f32 to vector<16x16xf32>
    %395 = arith.mulf %393, %394 : vector<16x16xf32>
    %396 = arith.addf %389, %395 : vector<16x16xf32>
    %c56 = arith.constant 56 : index
    %397 = memref.load %arg4[%c56] : memref<98xf32, #tpu.memory_space<smem>>
    %398 = vector.extract_strided_slice %391 {offsets = [1, 0], sizes = [16, 16], strides = [1, 1]} : vector<22x16xf32> to vector<16x16xf32>
    %399 = vector.broadcast %397 : f32 to vector<16x16xf32>
    %400 = arith.mulf %398, %399 : vector<16x16xf32>
    %401 = arith.addf %396, %400 : vector<16x16xf32>
    %c63 = arith.constant 63 : index
    %402 = memref.load %arg4[%c63] : memref<98xf32, #tpu.memory_space<smem>>
    %403 = vector.extract_strided_slice %391 {offsets = [2, 0], sizes = [16, 16], strides = [1, 1]} : vector<22x16xf32> to vector<16x16xf32>
    %404 = vector.broadcast %402 : f32 to vector<16x16xf32>
    %405 = arith.mulf %403, %404 : vector<16x16xf32>
    %406 = arith.addf %401, %405 : vector<16x16xf32>
    %c70 = arith.constant 70 : index
    %407 = memref.load %arg4[%c70] : memref<98xf32, #tpu.memory_space<smem>>
    %408 = vector.extract_strided_slice %391 {offsets = [3, 0], sizes = [16, 16], strides = [1, 1]} : vector<22x16xf32> to vector<16x16xf32>
    %409 = vector.broadcast %407 : f32 to vector<16x16xf32>
    %410 = arith.mulf %408, %409 : vector<16x16xf32>
    %411 = arith.addf %406, %410 : vector<16x16xf32>
    %c77 = arith.constant 77 : index
    %412 = memref.load %arg4[%c77] : memref<98xf32, #tpu.memory_space<smem>>
    %413 = vector.extract_strided_slice %391 {offsets = [4, 0], sizes = [16, 16], strides = [1, 1]} : vector<22x16xf32> to vector<16x16xf32>
    %414 = vector.broadcast %412 : f32 to vector<16x16xf32>
    %415 = arith.mulf %413, %414 : vector<16x16xf32>
    %416 = arith.addf %411, %415 : vector<16x16xf32>
    %c84 = arith.constant 84 : index
    %417 = memref.load %arg4[%c84] : memref<98xf32, #tpu.memory_space<smem>>
    %418 = vector.extract_strided_slice %391 {offsets = [5, 0], sizes = [16, 16], strides = [1, 1]} : vector<22x16xf32> to vector<16x16xf32>
    %419 = vector.broadcast %417 : f32 to vector<16x16xf32>
    %420 = arith.mulf %418, %419 : vector<16x16xf32>
    %421 = arith.addf %416, %420 : vector<16x16xf32>
    %c91 = arith.constant 91 : index
    %422 = memref.load %arg4[%c91] : memref<98xf32, #tpu.memory_space<smem>>
    %423 = vector.extract_strided_slice %391 {offsets = [6, 0], sizes = [16, 16], strides = [1, 1]} : vector<22x16xf32> to vector<16x16xf32>
    %424 = vector.broadcast %422 : f32 to vector<16x16xf32>
    %425 = arith.mulf %423, %424 : vector<16x16xf32>
    %426 = arith.addf %421, %425 : vector<16x16xf32>
    %427 = vector.extract_strided_slice %129 {offsets = [1, 0, 1], sizes = [1, 22, 16], strides = [1, 1, 1]} : vector<2x22x22xf32> to vector<1x22x16xf32>
    %428 = vector.shape_cast %427 : vector<1x22x16xf32> to vector<22x16xf32>
    %c50 = arith.constant 50 : index
    %429 = memref.load %arg4[%c50] : memref<98xf32, #tpu.memory_space<smem>>
    %430 = vector.extract_strided_slice %428 {offsets = [0, 0], sizes = [16, 16], strides = [1, 1]} : vector<22x16xf32> to vector<16x16xf32>
    %431 = vector.broadcast %429 : f32 to vector<16x16xf32>
    %432 = arith.mulf %430, %431 : vector<16x16xf32>
    %433 = arith.addf %426, %432 : vector<16x16xf32>
    %c57 = arith.constant 57 : index
    %434 = memref.load %arg4[%c57] : memref<98xf32, #tpu.memory_space<smem>>
    %435 = vector.extract_strided_slice %428 {offsets = [1, 0], sizes = [16, 16], strides = [1, 1]} : vector<22x16xf32> to vector<16x16xf32>
    %436 = vector.broadcast %434 : f32 to vector<16x16xf32>
    %437 = arith.mulf %435, %436 : vector<16x16xf32>
    %438 = arith.addf %433, %437 : vector<16x16xf32>
    %c64 = arith.constant 64 : index
    %439 = memref.load %arg4[%c64] : memref<98xf32, #tpu.memory_space<smem>>
    %440 = vector.extract_strided_slice %428 {offsets = [2, 0], sizes = [16, 16], strides = [1, 1]} : vector<22x16xf32> to vector<16x16xf32>
    %441 = vector.broadcast %439 : f32 to vector<16x16xf32>
    %442 = arith.mulf %440, %441 : vector<16x16xf32>
    %443 = arith.addf %438, %442 : vector<16x16xf32>
    %c71 = arith.constant 71 : index
    %444 = memref.load %arg4[%c71] : memref<98xf32, #tpu.memory_space<smem>>
    %445 = vector.extract_strided_slice %428 {offsets = [3, 0], sizes = [16, 16], strides = [1, 1]} : vector<22x16xf32> to vector<16x16xf32>
    %446 = vector.broadcast %444 : f32 to vector<16x16xf32>
    %447 = arith.mulf %445, %446 : vector<16x16xf32>
    %448 = arith.addf %443, %447 : vector<16x16xf32>
    %c78 = arith.constant 78 : index
    %449 = memref.load %arg4[%c78] : memref<98xf32, #tpu.memory_space<smem>>
    %450 = vector.extract_strided_slice %428 {offsets = [4, 0], sizes = [16, 16], strides = [1, 1]} : vector<22x16xf32> to vector<16x16xf32>
    %451 = vector.broadcast %449 : f32 to vector<16x16xf32>
    %452 = arith.mulf %450, %451 : vector<16x16xf32>
    %453 = arith.addf %448, %452 : vector<16x16xf32>
    %c85 = arith.constant 85 : index
    %454 = memref.load %arg4[%c85] : memref<98xf32, #tpu.memory_space<smem>>
    %455 = vector.extract_strided_slice %428 {offsets = [5, 0], sizes = [16, 16], strides = [1, 1]} : vector<22x16xf32> to vector<16x16xf32>
    %456 = vector.broadcast %454 : f32 to vector<16x16xf32>
    %457 = arith.mulf %455, %456 : vector<16x16xf32>
    %458 = arith.addf %453, %457 : vector<16x16xf32>
    %c92 = arith.constant 92 : index
    %459 = memref.load %arg4[%c92] : memref<98xf32, #tpu.memory_space<smem>>
    %460 = vector.extract_strided_slice %428 {offsets = [6, 0], sizes = [16, 16], strides = [1, 1]} : vector<22x16xf32> to vector<16x16xf32>
    %461 = vector.broadcast %459 : f32 to vector<16x16xf32>
    %462 = arith.mulf %460, %461 : vector<16x16xf32>
    %463 = arith.addf %458, %462 : vector<16x16xf32>
    %464 = vector.extract_strided_slice %129 {offsets = [1, 0, 2], sizes = [1, 22, 16], strides = [1, 1, 1]} : vector<2x22x22xf32> to vector<1x22x16xf32>
    %465 = vector.shape_cast %464 : vector<1x22x16xf32> to vector<22x16xf32>
    %c51 = arith.constant 51 : index
    %466 = memref.load %arg4[%c51] : memref<98xf32, #tpu.memory_space<smem>>
    %467 = vector.extract_strided_slice %465 {offsets = [0, 0], sizes = [16, 16], strides = [1, 1]} : vector<22x16xf32> to vector<16x16xf32>
    %468 = vector.broadcast %466 : f32 to vector<16x16xf32>
    %469 = arith.mulf %467, %468 : vector<16x16xf32>
    %470 = arith.addf %463, %469 : vector<16x16xf32>
    %c58 = arith.constant 58 : index
    %471 = memref.load %arg4[%c58] : memref<98xf32, #tpu.memory_space<smem>>
    %472 = vector.extract_strided_slice %465 {offsets = [1, 0], sizes = [16, 16], strides = [1, 1]} : vector<22x16xf32> to vector<16x16xf32>
    %473 = vector.broadcast %471 : f32 to vector<16x16xf32>
    %474 = arith.mulf %472, %473 : vector<16x16xf32>
    %475 = arith.addf %470, %474 : vector<16x16xf32>
    %c65 = arith.constant 65 : index
    %476 = memref.load %arg4[%c65] : memref<98xf32, #tpu.memory_space<smem>>
    %477 = vector.extract_strided_slice %465 {offsets = [2, 0], sizes = [16, 16], strides = [1, 1]} : vector<22x16xf32> to vector<16x16xf32>
    %478 = vector.broadcast %476 : f32 to vector<16x16xf32>
    %479 = arith.mulf %477, %478 : vector<16x16xf32>
    %480 = arith.addf %475, %479 : vector<16x16xf32>
    %c72 = arith.constant 72 : index
    %481 = memref.load %arg4[%c72] : memref<98xf32, #tpu.memory_space<smem>>
    %482 = vector.extract_strided_slice %465 {offsets = [3, 0], sizes = [16, 16], strides = [1, 1]} : vector<22x16xf32> to vector<16x16xf32>
    %483 = vector.broadcast %481 : f32 to vector<16x16xf32>
    %484 = arith.mulf %482, %483 : vector<16x16xf32>
    %485 = arith.addf %480, %484 : vector<16x16xf32>
    %c79 = arith.constant 79 : index
    %486 = memref.load %arg4[%c79] : memref<98xf32, #tpu.memory_space<smem>>
    %487 = vector.extract_strided_slice %465 {offsets = [4, 0], sizes = [16, 16], strides = [1, 1]} : vector<22x16xf32> to vector<16x16xf32>
    %488 = vector.broadcast %486 : f32 to vector<16x16xf32>
    %489 = arith.mulf %487, %488 : vector<16x16xf32>
    %490 = arith.addf %485, %489 : vector<16x16xf32>
    %c86 = arith.constant 86 : index
    %491 = memref.load %arg4[%c86] : memref<98xf32, #tpu.memory_space<smem>>
    %492 = vector.extract_strided_slice %465 {offsets = [5, 0], sizes = [16, 16], strides = [1, 1]} : vector<22x16xf32> to vector<16x16xf32>
    %493 = vector.broadcast %491 : f32 to vector<16x16xf32>
    %494 = arith.mulf %492, %493 : vector<16x16xf32>
    %495 = arith.addf %490, %494 : vector<16x16xf32>
    %c93 = arith.constant 93 : index
    %496 = memref.load %arg4[%c93] : memref<98xf32, #tpu.memory_space<smem>>
    %497 = vector.extract_strided_slice %465 {offsets = [6, 0], sizes = [16, 16], strides = [1, 1]} : vector<22x16xf32> to vector<16x16xf32>
    %498 = vector.broadcast %496 : f32 to vector<16x16xf32>
    %499 = arith.mulf %497, %498 : vector<16x16xf32>
    %500 = arith.addf %495, %499 : vector<16x16xf32>
    %501 = vector.extract_strided_slice %129 {offsets = [1, 0, 3], sizes = [1, 22, 16], strides = [1, 1, 1]} : vector<2x22x22xf32> to vector<1x22x16xf32>
    %502 = vector.shape_cast %501 : vector<1x22x16xf32> to vector<22x16xf32>
    %c52 = arith.constant 52 : index
    %503 = memref.load %arg4[%c52] : memref<98xf32, #tpu.memory_space<smem>>
    %504 = vector.extract_strided_slice %502 {offsets = [0, 0], sizes = [16, 16], strides = [1, 1]} : vector<22x16xf32> to vector<16x16xf32>
    %505 = vector.broadcast %503 : f32 to vector<16x16xf32>
    %506 = arith.mulf %504, %505 : vector<16x16xf32>
    %507 = arith.addf %500, %506 : vector<16x16xf32>
    %c59 = arith.constant 59 : index
    %508 = memref.load %arg4[%c59] : memref<98xf32, #tpu.memory_space<smem>>
    %509 = vector.extract_strided_slice %502 {offsets = [1, 0], sizes = [16, 16], strides = [1, 1]} : vector<22x16xf32> to vector<16x16xf32>
    %510 = vector.broadcast %508 : f32 to vector<16x16xf32>
    %511 = arith.mulf %509, %510 : vector<16x16xf32>
    %512 = arith.addf %507, %511 : vector<16x16xf32>
    %c66 = arith.constant 66 : index
    %513 = memref.load %arg4[%c66] : memref<98xf32, #tpu.memory_space<smem>>
    %514 = vector.extract_strided_slice %502 {offsets = [2, 0], sizes = [16, 16], strides = [1, 1]} : vector<22x16xf32> to vector<16x16xf32>
    %515 = vector.broadcast %513 : f32 to vector<16x16xf32>
    %516 = arith.mulf %514, %515 : vector<16x16xf32>
    %517 = arith.addf %512, %516 : vector<16x16xf32>
    %c73 = arith.constant 73 : index
    %518 = memref.load %arg4[%c73] : memref<98xf32, #tpu.memory_space<smem>>
    %519 = vector.extract_strided_slice %502 {offsets = [3, 0], sizes = [16, 16], strides = [1, 1]} : vector<22x16xf32> to vector<16x16xf32>
    %520 = vector.broadcast %518 : f32 to vector<16x16xf32>
    %521 = arith.mulf %519, %520 : vector<16x16xf32>
    %522 = arith.addf %517, %521 : vector<16x16xf32>
    %c80 = arith.constant 80 : index
    %523 = memref.load %arg4[%c80] : memref<98xf32, #tpu.memory_space<smem>>
    %524 = vector.extract_strided_slice %502 {offsets = [4, 0], sizes = [16, 16], strides = [1, 1]} : vector<22x16xf32> to vector<16x16xf32>
    %525 = vector.broadcast %523 : f32 to vector<16x16xf32>
    %526 = arith.mulf %524, %525 : vector<16x16xf32>
    %527 = arith.addf %522, %526 : vector<16x16xf32>
    %c87 = arith.constant 87 : index
    %528 = memref.load %arg4[%c87] : memref<98xf32, #tpu.memory_space<smem>>
    %529 = vector.extract_strided_slice %502 {offsets = [5, 0], sizes = [16, 16], strides = [1, 1]} : vector<22x16xf32> to vector<16x16xf32>
    %530 = vector.broadcast %528 : f32 to vector<16x16xf32>
    %531 = arith.mulf %529, %530 : vector<16x16xf32>
    %532 = arith.addf %527, %531 : vector<16x16xf32>
    %c94 = arith.constant 94 : index
    %533 = memref.load %arg4[%c94] : memref<98xf32, #tpu.memory_space<smem>>
    %534 = vector.extract_strided_slice %502 {offsets = [6, 0], sizes = [16, 16], strides = [1, 1]} : vector<22x16xf32> to vector<16x16xf32>
    %535 = vector.broadcast %533 : f32 to vector<16x16xf32>
    %536 = arith.mulf %534, %535 : vector<16x16xf32>
    %537 = arith.addf %532, %536 : vector<16x16xf32>
    %538 = vector.extract_strided_slice %129 {offsets = [1, 0, 4], sizes = [1, 22, 16], strides = [1, 1, 1]} : vector<2x22x22xf32> to vector<1x22x16xf32>
    %539 = vector.shape_cast %538 : vector<1x22x16xf32> to vector<22x16xf32>
    %c53 = arith.constant 53 : index
    %540 = memref.load %arg4[%c53] : memref<98xf32, #tpu.memory_space<smem>>
    %541 = vector.extract_strided_slice %539 {offsets = [0, 0], sizes = [16, 16], strides = [1, 1]} : vector<22x16xf32> to vector<16x16xf32>
    %542 = vector.broadcast %540 : f32 to vector<16x16xf32>
    %543 = arith.mulf %541, %542 : vector<16x16xf32>
    %544 = arith.addf %537, %543 : vector<16x16xf32>
    %c60 = arith.constant 60 : index
    %545 = memref.load %arg4[%c60] : memref<98xf32, #tpu.memory_space<smem>>
    %546 = vector.extract_strided_slice %539 {offsets = [1, 0], sizes = [16, 16], strides = [1, 1]} : vector<22x16xf32> to vector<16x16xf32>
    %547 = vector.broadcast %545 : f32 to vector<16x16xf32>
    %548 = arith.mulf %546, %547 : vector<16x16xf32>
    %549 = arith.addf %544, %548 : vector<16x16xf32>
    %c67 = arith.constant 67 : index
    %550 = memref.load %arg4[%c67] : memref<98xf32, #tpu.memory_space<smem>>
    %551 = vector.extract_strided_slice %539 {offsets = [2, 0], sizes = [16, 16], strides = [1, 1]} : vector<22x16xf32> to vector<16x16xf32>
    %552 = vector.broadcast %550 : f32 to vector<16x16xf32>
    %553 = arith.mulf %551, %552 : vector<16x16xf32>
    %554 = arith.addf %549, %553 : vector<16x16xf32>
    %c74 = arith.constant 74 : index
    %555 = memref.load %arg4[%c74] : memref<98xf32, #tpu.memory_space<smem>>
    %556 = vector.extract_strided_slice %539 {offsets = [3, 0], sizes = [16, 16], strides = [1, 1]} : vector<22x16xf32> to vector<16x16xf32>
    %557 = vector.broadcast %555 : f32 to vector<16x16xf32>
    %558 = arith.mulf %556, %557 : vector<16x16xf32>
    %559 = arith.addf %554, %558 : vector<16x16xf32>
    %c81 = arith.constant 81 : index
    %560 = memref.load %arg4[%c81] : memref<98xf32, #tpu.memory_space<smem>>
    %561 = vector.extract_strided_slice %539 {offsets = [4, 0], sizes = [16, 16], strides = [1, 1]} : vector<22x16xf32> to vector<16x16xf32>
    %562 = vector.broadcast %560 : f32 to vector<16x16xf32>
    %563 = arith.mulf %561, %562 : vector<16x16xf32>
    %564 = arith.addf %559, %563 : vector<16x16xf32>
    %c88 = arith.constant 88 : index
    %565 = memref.load %arg4[%c88] : memref<98xf32, #tpu.memory_space<smem>>
    %566 = vector.extract_strided_slice %539 {offsets = [5, 0], sizes = [16, 16], strides = [1, 1]} : vector<22x16xf32> to vector<16x16xf32>
    %567 = vector.broadcast %565 : f32 to vector<16x16xf32>
    %568 = arith.mulf %566, %567 : vector<16x16xf32>
    %569 = arith.addf %564, %568 : vector<16x16xf32>
    %c95 = arith.constant 95 : index
    %570 = memref.load %arg4[%c95] : memref<98xf32, #tpu.memory_space<smem>>
    %571 = vector.extract_strided_slice %539 {offsets = [6, 0], sizes = [16, 16], strides = [1, 1]} : vector<22x16xf32> to vector<16x16xf32>
    %572 = vector.broadcast %570 : f32 to vector<16x16xf32>
    %573 = arith.mulf %571, %572 : vector<16x16xf32>
    %574 = arith.addf %569, %573 : vector<16x16xf32>
    %575 = vector.extract_strided_slice %129 {offsets = [1, 0, 5], sizes = [1, 22, 16], strides = [1, 1, 1]} : vector<2x22x22xf32> to vector<1x22x16xf32>
    %576 = vector.shape_cast %575 : vector<1x22x16xf32> to vector<22x16xf32>
    %c54 = arith.constant 54 : index
    %577 = memref.load %arg4[%c54] : memref<98xf32, #tpu.memory_space<smem>>
    %578 = vector.extract_strided_slice %576 {offsets = [0, 0], sizes = [16, 16], strides = [1, 1]} : vector<22x16xf32> to vector<16x16xf32>
    %579 = vector.broadcast %577 : f32 to vector<16x16xf32>
    %580 = arith.mulf %578, %579 : vector<16x16xf32>
    %581 = arith.addf %574, %580 : vector<16x16xf32>
    %c61 = arith.constant 61 : index
    %582 = memref.load %arg4[%c61] : memref<98xf32, #tpu.memory_space<smem>>
    %583 = vector.extract_strided_slice %576 {offsets = [1, 0], sizes = [16, 16], strides = [1, 1]} : vector<22x16xf32> to vector<16x16xf32>
    %584 = vector.broadcast %582 : f32 to vector<16x16xf32>
    %585 = arith.mulf %583, %584 : vector<16x16xf32>
    %586 = arith.addf %581, %585 : vector<16x16xf32>
    %c68 = arith.constant 68 : index
    %587 = memref.load %arg4[%c68] : memref<98xf32, #tpu.memory_space<smem>>
    %588 = vector.extract_strided_slice %576 {offsets = [2, 0], sizes = [16, 16], strides = [1, 1]} : vector<22x16xf32> to vector<16x16xf32>
    %589 = vector.broadcast %587 : f32 to vector<16x16xf32>
    %590 = arith.mulf %588, %589 : vector<16x16xf32>
    %591 = arith.addf %586, %590 : vector<16x16xf32>
    %c75 = arith.constant 75 : index
    %592 = memref.load %arg4[%c75] : memref<98xf32, #tpu.memory_space<smem>>
    %593 = vector.extract_strided_slice %576 {offsets = [3, 0], sizes = [16, 16], strides = [1, 1]} : vector<22x16xf32> to vector<16x16xf32>
    %594 = vector.broadcast %592 : f32 to vector<16x16xf32>
    %595 = arith.mulf %593, %594 : vector<16x16xf32>
    %596 = arith.addf %591, %595 : vector<16x16xf32>
    %c82 = arith.constant 82 : index
    %597 = memref.load %arg4[%c82] : memref<98xf32, #tpu.memory_space<smem>>
    %598 = vector.extract_strided_slice %576 {offsets = [4, 0], sizes = [16, 16], strides = [1, 1]} : vector<22x16xf32> to vector<16x16xf32>
    %599 = vector.broadcast %597 : f32 to vector<16x16xf32>
    %600 = arith.mulf %598, %599 : vector<16x16xf32>
    %601 = arith.addf %596, %600 : vector<16x16xf32>
    %c89 = arith.constant 89 : index
    %602 = memref.load %arg4[%c89] : memref<98xf32, #tpu.memory_space<smem>>
    %603 = vector.extract_strided_slice %576 {offsets = [5, 0], sizes = [16, 16], strides = [1, 1]} : vector<22x16xf32> to vector<16x16xf32>
    %604 = vector.broadcast %602 : f32 to vector<16x16xf32>
    %605 = arith.mulf %603, %604 : vector<16x16xf32>
    %606 = arith.addf %601, %605 : vector<16x16xf32>
    %c96 = arith.constant 96 : index
    %607 = memref.load %arg4[%c96] : memref<98xf32, #tpu.memory_space<smem>>
    %608 = vector.extract_strided_slice %576 {offsets = [6, 0], sizes = [16, 16], strides = [1, 1]} : vector<22x16xf32> to vector<16x16xf32>
    %609 = vector.broadcast %607 : f32 to vector<16x16xf32>
    %610 = arith.mulf %608, %609 : vector<16x16xf32>
    %611 = arith.addf %606, %610 : vector<16x16xf32>
    %612 = vector.extract_strided_slice %129 {offsets = [1, 0, 6], sizes = [1, 22, 16], strides = [1, 1, 1]} : vector<2x22x22xf32> to vector<1x22x16xf32>
    %613 = vector.shape_cast %612 : vector<1x22x16xf32> to vector<22x16xf32>
    %c55 = arith.constant 55 : index
    %614 = memref.load %arg4[%c55] : memref<98xf32, #tpu.memory_space<smem>>
    %615 = vector.extract_strided_slice %613 {offsets = [0, 0], sizes = [16, 16], strides = [1, 1]} : vector<22x16xf32> to vector<16x16xf32>
    %616 = vector.broadcast %614 : f32 to vector<16x16xf32>
    %617 = arith.mulf %615, %616 : vector<16x16xf32>
    %618 = arith.addf %611, %617 : vector<16x16xf32>
    %c62 = arith.constant 62 : index
    %619 = memref.load %arg4[%c62] : memref<98xf32, #tpu.memory_space<smem>>
    %620 = vector.extract_strided_slice %613 {offsets = [1, 0], sizes = [16, 16], strides = [1, 1]} : vector<22x16xf32> to vector<16x16xf32>
    %621 = vector.broadcast %619 : f32 to vector<16x16xf32>
    %622 = arith.mulf %620, %621 : vector<16x16xf32>
    %623 = arith.addf %618, %622 : vector<16x16xf32>
    %c69 = arith.constant 69 : index
    %624 = memref.load %arg4[%c69] : memref<98xf32, #tpu.memory_space<smem>>
    %625 = vector.extract_strided_slice %613 {offsets = [2, 0], sizes = [16, 16], strides = [1, 1]} : vector<22x16xf32> to vector<16x16xf32>
    %626 = vector.broadcast %624 : f32 to vector<16x16xf32>
    %627 = arith.mulf %625, %626 : vector<16x16xf32>
    %628 = arith.addf %623, %627 : vector<16x16xf32>
    %c76 = arith.constant 76 : index
    %629 = memref.load %arg4[%c76] : memref<98xf32, #tpu.memory_space<smem>>
    %630 = vector.extract_strided_slice %613 {offsets = [3, 0], sizes = [16, 16], strides = [1, 1]} : vector<22x16xf32> to vector<16x16xf32>
    %631 = vector.broadcast %629 : f32 to vector<16x16xf32>
    %632 = arith.mulf %630, %631 : vector<16x16xf32>
    %633 = arith.addf %628, %632 : vector<16x16xf32>
    %c83 = arith.constant 83 : index
    %634 = memref.load %arg4[%c83] : memref<98xf32, #tpu.memory_space<smem>>
    %635 = vector.extract_strided_slice %613 {offsets = [4, 0], sizes = [16, 16], strides = [1, 1]} : vector<22x16xf32> to vector<16x16xf32>
    %636 = vector.broadcast %634 : f32 to vector<16x16xf32>
    %637 = arith.mulf %635, %636 : vector<16x16xf32>
    %638 = arith.addf %633, %637 : vector<16x16xf32>
    %c90 = arith.constant 90 : index
    %639 = memref.load %arg4[%c90] : memref<98xf32, #tpu.memory_space<smem>>
    %640 = vector.extract_strided_slice %613 {offsets = [5, 0], sizes = [16, 16], strides = [1, 1]} : vector<22x16xf32> to vector<16x16xf32>
    %641 = vector.broadcast %639 : f32 to vector<16x16xf32>
    %642 = arith.mulf %640, %641 : vector<16x16xf32>
    %643 = arith.addf %638, %642 : vector<16x16xf32>
    %c97 = arith.constant 97 : index
    %644 = memref.load %arg4[%c97] : memref<98xf32, #tpu.memory_space<smem>>
    %645 = vector.extract_strided_slice %613 {offsets = [6, 0], sizes = [16, 16], strides = [1, 1]} : vector<22x16xf32> to vector<16x16xf32>
    %646 = vector.broadcast %644 : f32 to vector<16x16xf32>
    %647 = arith.mulf %645, %646 : vector<16x16xf32>
    %648 = arith.addf %643, %647 : vector<16x16xf32>
    %649 = arith.negf %648 : vector<16x16xf32>
    %650 = math.exp %649 : vector<16x16xf32>
    %cst_120 = arith.constant 1.000000e+00 : f32
    %651 = vector.broadcast %cst_120 : f32 to vector<16x16xf32>
    %652 = arith.addf %651, %650 : vector<16x16xf32>
    %653 = arith.divf %651, %652 : vector<16x16xf32>
    %654 = vector.extract_strided_slice %653 {offsets = [0, 0], sizes = [1, 16], strides = [1, 1]} : vector<16x16xf32> to vector<1x16xf32>
    %c0_121 = arith.constant 0 : index
    %c0_122 = arith.constant 0 : index
    %655 = vector.load %arg7[%c0_121, %c0_122] : memref<1x256xf32, #tpu.memory_space<vmem>>, vector<1x16xf32>
    tpu.vector_store %arg7[%c0_121, %c0_122], %654 {strides = array<i32>} : memref<1x256xf32, #tpu.memory_space<vmem>>, vector<1x16xf32>,
    %656 = vector.extract_strided_slice %653 {offsets = [1, 0], sizes = [1, 16], strides = [1, 1]} : vector<16x16xf32> to vector<1x16xf32>
    %c0_123 = arith.constant 0 : index
    %c16_124 = arith.constant 16 : index
    %657 = vector.load %arg7[%c0_123, %c16_124] : memref<1x256xf32, #tpu.memory_space<vmem>>, vector<1x16xf32>
    tpu.vector_store %arg7[%c0_123, %c16_124], %656 {strides = array<i32>} : memref<1x256xf32, #tpu.memory_space<vmem>>, vector<1x16xf32>,
    %658 = vector.extract_strided_slice %653 {offsets = [2, 0], sizes = [1, 16], strides = [1, 1]} : vector<16x16xf32> to vector<1x16xf32>
    %c0_125 = arith.constant 0 : index
    %c32_126 = arith.constant 32 : index
    %659 = vector.load %arg7[%c0_125, %c32_126] : memref<1x256xf32, #tpu.memory_space<vmem>>, vector<1x16xf32>
    tpu.vector_store %arg7[%c0_125, %c32_126], %658 {strides = array<i32>} : memref<1x256xf32, #tpu.memory_space<vmem>>, vector<1x16xf32>,
    %660 = vector.extract_strided_slice %653 {offsets = [3, 0], sizes = [1, 16], strides = [1, 1]} : vector<16x16xf32> to vector<1x16xf32>
    %c0_127 = arith.constant 0 : index
    %c48_128 = arith.constant 48 : index
    %661 = vector.load %arg7[%c0_127, %c48_128] : memref<1x256xf32, #tpu.memory_space<vmem>>, vector<1x16xf32>
    tpu.vector_store %arg7[%c0_127, %c48_128], %660 {strides = array<i32>} : memref<1x256xf32, #tpu.memory_space<vmem>>, vector<1x16xf32>,
    %662 = vector.extract_strided_slice %653 {offsets = [4, 0], sizes = [1, 16], strides = [1, 1]} : vector<16x16xf32> to vector<1x16xf32>
    %c0_129 = arith.constant 0 : index
    %c64_130 = arith.constant 64 : index
    %663 = vector.load %arg7[%c0_129, %c64_130] : memref<1x256xf32, #tpu.memory_space<vmem>>, vector<1x16xf32>
    tpu.vector_store %arg7[%c0_129, %c64_130], %662 {strides = array<i32>} : memref<1x256xf32, #tpu.memory_space<vmem>>, vector<1x16xf32>,
    %664 = vector.extract_strided_slice %653 {offsets = [5, 0], sizes = [1, 16], strides = [1, 1]} : vector<16x16xf32> to vector<1x16xf32>
    %c0_131 = arith.constant 0 : index
    %c80_132 = arith.constant 80 : index
    %665 = vector.load %arg7[%c0_131, %c80_132] : memref<1x256xf32, #tpu.memory_space<vmem>>, vector<1x16xf32>
    tpu.vector_store %arg7[%c0_131, %c80_132], %664 {strides = array<i32>} : memref<1x256xf32, #tpu.memory_space<vmem>>, vector<1x16xf32>,
    %666 = vector.extract_strided_slice %653 {offsets = [6, 0], sizes = [1, 16], strides = [1, 1]} : vector<16x16xf32> to vector<1x16xf32>
    %c0_133 = arith.constant 0 : index
    %c96_134 = arith.constant 96 : index
    %667 = vector.load %arg7[%c0_133, %c96_134] : memref<1x256xf32, #tpu.memory_space<vmem>>, vector<1x16xf32>
    tpu.vector_store %arg7[%c0_133, %c96_134], %666 {strides = array<i32>} : memref<1x256xf32, #tpu.memory_space<vmem>>, vector<1x16xf32>,
    %668 = vector.extract_strided_slice %653 {offsets = [7, 0], sizes = [1, 16], strides = [1, 1]} : vector<16x16xf32> to vector<1x16xf32>
    %c0_135 = arith.constant 0 : index
    %c112 = arith.constant 112 : index
    %669 = vector.load %arg7[%c0_135, %c112] : memref<1x256xf32, #tpu.memory_space<vmem>>, vector<1x16xf32>
    tpu.vector_store %arg7[%c0_135, %c112], %668 {strides = array<i32>} : memref<1x256xf32, #tpu.memory_space<vmem>>, vector<1x16xf32>,
    %670 = vector.extract_strided_slice %653 {offsets = [8, 0], sizes = [1, 16], strides = [1, 1]} : vector<16x16xf32> to vector<1x16xf32>
    %c0_136 = arith.constant 0 : index
    %c128 = arith.constant 128 : index
    %671 = vector.load %arg7[%c0_136, %c128] : memref<1x256xf32, #tpu.memory_space<vmem>>, vector<1x16xf32>
    tpu.vector_store %arg7[%c0_136, %c128], %670 {strides = array<i32>} : memref<1x256xf32, #tpu.memory_space<vmem>>, vector<1x16xf32>,
    %672 = vector.extract_strided_slice %653 {offsets = [9, 0], sizes = [1, 16], strides = [1, 1]} : vector<16x16xf32> to vector<1x16xf32>
    %c0_137 = arith.constant 0 : index
    %c144 = arith.constant 144 : index
    %673 = vector.load %arg7[%c0_137, %c144] : memref<1x256xf32, #tpu.memory_space<vmem>>, vector<1x16xf32>
    tpu.vector_store %arg7[%c0_137, %c144], %672 {strides = array<i32>} : memref<1x256xf32, #tpu.memory_space<vmem>>, vector<1x16xf32>,
    %674 = vector.extract_strided_slice %653 {offsets = [10, 0], sizes = [1, 16], strides = [1, 1]} : vector<16x16xf32> to vector<1x16xf32>
    %c0_138 = arith.constant 0 : index
    %c160 = arith.constant 160 : index
    %675 = vector.load %arg7[%c0_138, %c160] : memref<1x256xf32, #tpu.memory_space<vmem>>, vector<1x16xf32>
    tpu.vector_store %arg7[%c0_138, %c160], %674 {strides = array<i32>} : memref<1x256xf32, #tpu.memory_space<vmem>>, vector<1x16xf32>,
    %676 = vector.extract_strided_slice %653 {offsets = [11, 0], sizes = [1, 16], strides = [1, 1]} : vector<16x16xf32> to vector<1x16xf32>
    %c0_139 = arith.constant 0 : index
    %c176 = arith.constant 176 : index
    %677 = vector.load %arg7[%c0_139, %c176] : memref<1x256xf32, #tpu.memory_space<vmem>>, vector<1x16xf32>
    tpu.vector_store %arg7[%c0_139, %c176], %676 {strides = array<i32>} : memref<1x256xf32, #tpu.memory_space<vmem>>, vector<1x16xf32>,
    %678 = vector.extract_strided_slice %653 {offsets = [12, 0], sizes = [1, 16], strides = [1, 1]} : vector<16x16xf32> to vector<1x16xf32>
    %c0_140 = arith.constant 0 : index
    %c192 = arith.constant 192 : index
    %679 = vector.load %arg7[%c0_140, %c192] : memref<1x256xf32, #tpu.memory_space<vmem>>, vector<1x16xf32>
    tpu.vector_store %arg7[%c0_140, %c192], %678 {strides = array<i32>} : memref<1x256xf32, #tpu.memory_space<vmem>>, vector<1x16xf32>,
    %680 = vector.extract_strided_slice %653 {offsets = [13, 0], sizes = [1, 16], strides = [1, 1]} : vector<16x16xf32> to vector<1x16xf32>
    %c0_141 = arith.constant 0 : index
    %c208 = arith.constant 208 : index
    %681 = vector.load %arg7[%c0_141, %c208] : memref<1x256xf32, #tpu.memory_space<vmem>>, vector<1x16xf32>
    tpu.vector_store %arg7[%c0_141, %c208], %680 {strides = array<i32>} : memref<1x256xf32, #tpu.memory_space<vmem>>, vector<1x16xf32>,
    %682 = vector.extract_strided_slice %653 {offsets = [14, 0], sizes = [1, 16], strides = [1, 1]} : vector<16x16xf32> to vector<1x16xf32>
    %c0_142 = arith.constant 0 : index
    %c224 = arith.constant 224 : index
    %683 = vector.load %arg7[%c0_142, %c224] : memref<1x256xf32, #tpu.memory_space<vmem>>, vector<1x16xf32>
    tpu.vector_store %arg7[%c0_142, %c224], %682 {strides = array<i32>} : memref<1x256xf32, #tpu.memory_space<vmem>>, vector<1x16xf32>,
    %684 = vector.extract_strided_slice %653 {offsets = [15, 0], sizes = [1, 16], strides = [1, 1]} : vector<16x16xf32> to vector<1x16xf32>
    %c0_143 = arith.constant 0 : index
    %c240 = arith.constant 240 : index
    %685 = vector.load %arg7[%c0_143, %c240] : memref<1x256xf32, #tpu.memory_space<vmem>>, vector<1x16xf32>
    tpu.vector_store %arg7[%c0_143, %c240], %684 {strides = array<i32>} : memref<1x256xf32, #tpu.memory_space<vmem>>, vector<1x16xf32>,
    %c0_144 = arith.constant 0 : index
    %c0_145 = arith.constant 0 : index
    %686 = vector.load %arg7[%c0_144, %c0_145] : memref<1x256xf32, #tpu.memory_space<vmem>>, vector<1x256xf32>
    %687 = vector.broadcast %686 : vector<1x256xf32> to vector<4x256xf32>
    %688 = arith.mulf %26, %687 : vector<4x256xf32>
    %c0_146 = arith.constant 0 : index
    %c0_147 = arith.constant 0 : index
    %c0_148 = arith.constant 0 : index
    %689 = vector.load %arg5[%c0_146, %c0_147, %c0_148] : memref<1x4x256xf32, #tpu.memory_space<vmem>>, vector<1x4x256xf32>
    %690 = vector.shape_cast %689 : vector<1x4x256xf32> to vector<4x256xf32>
    %691 = vector.shape_cast %688 : vector<4x256xf32> to vector<1x4x256xf32>
    tpu.vector_store %arg5[%c0_146, %c0_147, %c0_148], %691 {strides = array<i32>} : memref<1x4x256xf32, #tpu.memory_space<vmem>>, vector<1x4x256xf32>,
    return
  }
  func.func @transform_0(%arg0: i32) -> (i32, i32, i32) {
    %c0_i32 = arith.constant 0 : i32
    %c0_i32_0 = arith.constant 0 : i32
    %c0_i32_1 = arith.constant 0 : i32
    return %arg0, %c0_i32, %c0_i32_0 : i32, i32, i32
  }
  func.func @transform_1(%arg0: i32) -> (i32, i32) {
    %c0_i32 = arith.constant 0 : i32
    %c0_i32_0 = arith.constant 0 : i32
    %c0_i32_1 = arith.constant 0 : i32
    return %c0_i32, %c0_i32_0 : i32, i32
  }
  func.func @transform_2(%arg0: i32) -> (i32, i32) {
    %c0_i32 = arith.constant 0 : i32
    %c0_i32_0 = arith.constant 0 : i32
    %c0_i32_1 = arith.constant 0 : i32
    return %c0_i32, %c0_i32_0 : i32, i32
  }
  func.func @transform_3(%arg0: i32) -> i32 {
    %c0_i32 = arith.constant 0 : i32
    %c0_i32_0 = arith.constant 0 : i32
    return %c0_i32 : i32
  }
  func.func @transform_4(%arg0: i32) -> (i32, i32, i32) {
    %c0_i32 = arith.constant 0 : i32
    %c0_i32_0 = arith.constant 0 : i32
    %c0_i32_1 = arith.constant 0 : i32
    return %arg0, %c0_i32, %c0_i32_0 : i32, i32, i32
  }
}

</mosaic_0001>

<llo_original>
// kernel: tpu_custom_call.1
$region0: #{tpu_custom_call.1}
  #allocation0 [shape = 'u32[]', space=smem, size = 0x4, offset = 0x4, fixed_abs, tag = 'smem constant byte address 0x4 - core index']
  #allocation1 [shape = 'u32[144,128]{1,0:T(1,128)}', space=vmem, size = 0x12000, scoped, tag = 'internal scratch']
  #allocation2 [shape = 'f32[2,22,22]{2,1,0:T(8,128)}', space=vmem, size = 0x6000, scoped, tag = 'scratch operand']
  #allocation3 [shape = 'f32[1,256]{1,0:T(1,128)}', space=vmem, size = 0x400, scoped, tag = 'scratch operand']
  %s0 = inlined_call_operand.hbm [shape: f32[2,4,256], index: 0, kind: input, shape index: {}]
  %s1 = inlined_call_operand.vmem [shape: f32[8,4], index: 1, kind: input, shape index: {}]
  %s2 = inlined_call_operand.vmem [shape: f32[4,8], index: 2, kind: input, shape index: {}]
  %s3 = inlined_call_operand.vmem [shape: f32[98], index: 3, kind: input, shape index: {}]
  %s4 = inlined_call_operand.hbm [shape: f32[2,4,256], index: 4, kind: output, shape index: {}]
  %s5 = sld [smem:[#allocation0]]
  $region57: #{tpu_custom_call.1} parent=0
    _
  %s7 = ssub.s32 1, %s5
  %s8 = scalar_select 0, %s7, %s5
  $region1: #{tpu_custom_call.1} parent=0
    #allocation4 [shape = 'u8[8192]{0}', space=vmem, size = 0x2000, scoped, tag = 'input window, operand 0']
    #allocation5 [shape = 's32[2]{0}', space=sflag, size = 0x8, scoped, tag = 'scoped memory for tpu_custom_call.1']
    #allocation6 [shape = 's32[2]{0}', space=sflag, size = 0x8, scoped, tag = 'scoped memory for tpu_custom_call.1']
    #allocation7 [shape = 's32[2]{0}', space=sflag, size = 0x8, scoped, tag = 'scoped memory for tpu_custom_call.1']
    #allocation8 [shape = 'u8[512]{0}', space=smem, size = 0x200, scoped, tag = 'input window, operand 3, single buffered']
    #allocation9 [shape = 'u8[8192]{0}', space=vmem, size = 0x2000, scoped, tag = 'output window, operand 0']
    %9 = vsyncpa [#allocation5], 0
    %s10 = scalar_lea.sflag [#allocation5], 1
    %11 = vsyncpa %s10, 0
    %12 = vsyncpa [#allocation7], 0
    %13 = vsyncpa [#allocation6], 0
    %s14 = scalar_lea.sflag [#allocation6], 1
    %15 = vsyncpa %s14, 0
    loop: start=0, step=1, limit=4
    $region2: #{tpu_custom_call.1} parent=1 // loop_pre_header
      _
    $region3: #{tpu_custom_call.1} parent=1 // loop_header
      %s17 = sphi 0, %s21
      %p18 = scmp.ge.s32.totalorder %s17, 4
      %s27 = sphi 0, %s29
      %s30 = sphi 0, %s27
      %s31 = sphi 0, %s30
      %s47 = sphi 0, %s31
      %s51 = sphi 0, %s51
      %s53 = sphi 0, %s51
      %s54 = sphi 0, %s53
      %s68 = sphi 0, %s54
      %s72 = sphi 0, %s72
      %s74 = sphi 0, %s72
      %s75 = sphi 0, %s74
      %s89 = sphi 0, %s75
      %s93 = sphi 0, %s93
      %s95 = sphi 0, %s93
      %s96 = sphi 0, %s95
      %s110 = sphi 0, %s96
      %s116 = sphi 0, %s118
      %s119 = sphi 0, %s116
      %s120 = sphi 0, %s119
      %s136 = sphi 0, %s120
    $region4: #{tpu_custom_call.1} parent=1 // loop_header_branch
      %20 = sbr.rel (%p18) target = $region8
    $region5: #{tpu_custom_call.1} parent=1 // loop_body
      %s22 = ssub.s32 %s17, 1
      %s23 = ssub.s32 %s17, 2
      %s24 = sadd.s32 %s17, 1
      %s25 = ssub.s32 %s17, %s24
      %p26 = scmp.eq.s32.totalorder %s25, 0
      %s28 = sadd.s32 %s27, 1
      %s29 = scalar_select %p26, %s27, %s28
      %p32 = pneg %p26
      %p33 = scmp.eq.s32.totalorder %s17, 1
      %p34 = por %p32, %p33
      %p35 = scmp.ne.s32.totalorder %s27, %s30
      %p36 = scmp.eq.s32.totalorder %s17, 0
      %p37 = por %p35, %p36
      %p38 = scmp.ne.s32.totalorder %s27, %s30
      %p39 = scmp.eq.s32.totalorder %s22, 1
      %p40 = por %p38, %p39
      %p41 = scmp.ne.s32.totalorder %s30, %s31
      %p42 = scmp.eq.s32.totalorder %s22, 0
      %p43 = por %p41, %p42
      %p44 = scmp.ne.s32.totalorder %s30, %s31
      %p45 = scmp.eq.s32.totalorder %s23, 1
      %p46 = por %p44, %p45
      %p48 = scmp.ne.s32.totalorder %s31, %s47
      %p49 = scmp.eq.s32.totalorder %s23, 0
      %p50 = por %p48, %p49
      %s52 = sadd.s32 %s51, 1
      %p55 = scmp.eq.s32.totalorder %s17, 1
      %p56 = scmp.ne.s32.totalorder %s51, %s53
      %p57 = scmp.eq.s32.totalorder %s17, 0
      %p58 = por %p56, %p57
      %p59 = scmp.ne.s32.totalorder %s51, %s53
      %p60 = scmp.eq.s32.totalorder %s22, 1
      %p61 = por %p59, %p60
      %p62 = scmp.ne.s32.totalorder %s53, %s54
      %p63 = scmp.eq.s32.totalorder %s22, 0
      %p64 = por %p62, %p63
      %p65 = scmp.ne.s32.totalorder %s53, %s54
      %p66 = scmp.eq.s32.totalorder %s23, 1
      %p67 = por %p65, %p66
      %p69 = scmp.ne.s32.totalorder %s54, %s68
      %p70 = scmp.eq.s32.totalorder %s23, 0
      %p71 = por %p69, %p70
      %s73 = sadd.s32 %s72, 1
      %p76 = scmp.eq.s32.totalorder %s17, 1
      %p77 = scmp.ne.s32.totalorder %s72, %s74
      %p78 = scmp.eq.s32.totalorder %s17, 0
      %p79 = por %p77, %p78
      %p80 = scmp.ne.s32.totalorder %s72, %s74
      %p81 = scmp.eq.s32.totalorder %s22, 1
      %p82 = por %p80, %p81
      %p83 = scmp.ne.s32.totalorder %s74, %s75
      %p84 = scmp.eq.s32.totalorder %s22, 0
      %p85 = por %p83, %p84
      %p86 = scmp.ne.s32.totalorder %s74, %s75
      %p87 = scmp.eq.s32.totalorder %s23, 1
      %p88 = por %p86, %p87
      %p90 = scmp.ne.s32.totalorder %s75, %s89
      %p91 = scmp.eq.s32.totalorder %s23, 0
      %p92 = por %p90, %p91
      %s94 = sadd.s32 %s93, 1
      %p97 = scmp.eq.s32.totalorder %s17, 1
      %p98 = scmp.ne.s32.totalorder %s93, %s95
      %p99 = scmp.eq.s32.totalorder %s17, 0
      %p100 = por %p98, %p99
      %p101 = scmp.ne.s32.totalorder %s93, %s95
      %p102 = scmp.eq.s32.totalorder %s22, 1
      %p103 = por %p101, %p102
      %p104 = scmp.ne.s32.totalorder %s95, %s96
      %p105 = scmp.eq.s32.totalorder %s22, 0
      %p106 = por %p104, %p105
      %p107 = scmp.ne.s32.totalorder %s95, %s96
      %p108 = scmp.eq.s32.totalorder %s23, 1
      %p109 = por %p107, %p108
      %p111 = scmp.ne.s32.totalorder %s96, %s110
      %p112 = scmp.eq.s32.totalorder %s23, 0
      %p113 = por %p111, %p112
      %s114 = ssub.s32 %s17, %s24
      %p115 = scmp.eq.s32.totalorder %s114, 0
      %s117 = sadd.s32 %s116, 1
      %s118 = scalar_select %p115, %s116, %s117
      %p121 = pneg %p115
      %p122 = scmp.eq.s32.totalorder %s17, 1
      %p123 = por %p121, %p122
      %p124 = scmp.ne.s32.totalorder %s116, %s119
      %p125 = scmp.eq.s32.totalorder %s17, 0
      %p126 = por %p124, %p125
      %p127 = scmp.ne.s32.totalorder %s116, %s119
      %p128 = scmp.eq.s32.totalorder %s22, 1
      %p129 = por %p127, %p128
      %p130 = scmp.ne.s32.totalorder %s119, %s120
      %p131 = scmp.eq.s32.totalorder %s22, 0
      %p132 = por %p130, %p131
      %p133 = scmp.ne.s32.totalorder %s119, %s120
      %p134 = scmp.eq.s32.totalorder %s23, 1
      %p135 = por %p133, %p134
      %p137 = scmp.ne.s32.totalorder %s120, %s136
      %p138 = scmp.eq.s32.totalorder %s23, 0
      %p139 = por %p137, %p138
      %p140 = scmp.le.s32.totalorder 1, %s17
      %p141 = scmp.lt.s32.totalorder %s17, 3
      %p142 = pnand %p140, %p141
      %p143 = pneg %p142
      // Predicated region
      $region9: #{tpu_custom_call.1} parent=5 // pred_check
        _
      $region10: #{tpu_custom_call.1} parent=5 // pred_check_branch
        %145 = sbr.rel (%p142) target = $region12
      $region11: #{tpu_custom_call.1} parent=5 // pred_region
        %s146 = ssub.s32 %s17, 1
        // Predicated region
        $region13: #{tpu_custom_call.1} parent=11 // pred_check
          %p147 = pneg %p64
        $region14: #{tpu_custom_call.1} parent=11 // pred_check_branch
          %149 = sbr.rel (%p147) target = $region16
        $region15: #{tpu_custom_call.1} parent=11 // pred_region
          _
        $region16: #{tpu_custom_call.1} parent=11 // pred_fallthru
          _
        // Predicated region
        $region17: #{tpu_custom_call.1} parent=11 // pred_check
          %p150 = pneg %p85
        $region18: #{tpu_custom_call.1} parent=11 // pred_check_branch
          %152 = sbr.rel (%p150) target = $region20
        $region19: #{tpu_custom_call.1} parent=11 // pred_region
          _
        $region20: #{tpu_custom_call.1} parent=11 // pred_fallthru
          _
        // Predicated region
        $region21: #{tpu_custom_call.1} parent=11 // pred_check
          %p153 = pneg %p106
        $region22: #{tpu_custom_call.1} parent=11 // pred_check_branch
          %155 = sbr.rel (%p153) target = $region24
        $region23: #{tpu_custom_call.1} parent=11 // pred_region
          %s157 = ssub.s32 16, 16
          %158 = vsyncadd [#allocation7], %s157
          %s160 = sshll.u32 %s3, 4
          %s161 = int_to_ptr.vmem [resolvable:$true] %s160
          %163 = dma.vmem_to_smem %s161, 16, [#allocation8], [#allocation7]
        $region24: #{tpu_custom_call.1} parent=11 // pred_fallthru
          _
      $region12: #{tpu_custom_call.1} parent=5 // pred_fallthru
        _
      %p164 = scmp.lt.s32.totalorder %s17, 2
      // Predicated region
      $region25: #{tpu_custom_call.1} parent=5 // pred_check
        %p165 = pneg %p164
      $region26: #{tpu_custom_call.1} parent=5 // pred_check_branch
        %167 = sbr.rel (%p165) target = $region28
      $region27: #{tpu_custom_call.1} parent=5 // pred_region
        // Predicated region
        $region29: #{tpu_custom_call.1} parent=27 // pred_check
          %p168 = pneg %p37
        $region30: #{tpu_custom_call.1} parent=27 // pred_check_branch
          %170 = sbr.rel (%p168) target = $region32
        $region31: #{tpu_custom_call.1} parent=27 // pred_region
          %s171 = sand.u32 %s27, 1
          %s172 = scalar_lea.sflag [#allocation5], %s171
          %s173 = sand.u32 %s27, 1
          %s174 = smul.addr %s173, 8
          %s175 = scalar_lea.vmem [#allocation4], %s174
          %s177 = ssub.s32 128, 128
          %178 = vsyncadd %s172, %s177
          %s179 = smul.addr %s17, 2
          %s180 = smul.addr %s179, 64
          %s181 = scalar_lea.hbm %s0, %s180
          %s183 = sshll.u32 %s175, 4
          %s184 = int_to_ptr.vmem [resolvable:$true] %s183
          %186 = dma.hbm_to_vmem [thread:$0]  %s181, 128, %s184, %s172
        $region32: #{tpu_custom_call.1} parent=27 // pred_fallthru
          _
      $region28: #{tpu_custom_call.1} parent=5 // pred_fallthru
        _
      %p187 = scmp.le.s32.totalorder 1, %s17
      %p188 = scmp.lt.s32.totalorder %s17, 3
      %p189 = pnand %p187, %p188
      %p190 = pneg %p189
      // Predicated region
      $region33: #{tpu_custom_call.1} parent=5 // pred_check
        _
      $region34: #{tpu_custom_call.1} parent=5 // pred_check_branch
        %192 = sbr.rel (%p189) target = $region36
      $region35: #{tpu_custom_call.1} parent=5 // pred_region
        %s193 = ssub.s32 %s17, 1
        %s194 = sand.u32 %s30, 1
        %s195 = scalar_lea.sflag [#allocation5], %s194
        %s196 = sand.u32 %s30, 1
        %s197 = smul.addr %s196, 8
        %s198 = scalar_lea.vmem [#allocation4], %s197
        // Predicated region
        $region37: #{tpu_custom_call.1} parent=35 // pred_check
          %p199 = pneg %p43
        $region38: #{tpu_custom_call.1} parent=35 // pred_check_branch
          %201 = sbr.rel (%p199) target = $region40
        $region39: #{tpu_custom_call.1} parent=35 // pred_region
          %202 = dma.done %s195, 128
        $region40: #{tpu_custom_call.1} parent=35 // pred_fallthru
          _
        // Predicated region
        $region41: #{tpu_custom_call.1} parent=35 // pred_check
          %p203 = pneg %p106
        $region42: #{tpu_custom_call.1} parent=35 // pred_check_branch
          %205 = sbr.rel (%p203) target = $region44
        $region43: #{tpu_custom_call.1} parent=35 // pred_region
          %206 = dma.done [#allocation7], 16
        $region44: #{tpu_custom_call.1} parent=35 // pred_fallthru
          _
        %207 = sfence
        %s208 = sand.u32 %s30, 1
        %s209 = scalar_lea.sflag [#allocation5], %s208
        %s210 = sand.u32 %s30, 1
        %s211 = smul.addr %s210, 8
        %s212 = scalar_lea.vmem [#allocation4], %s211
        %p213 = pneg %p43
        %p214 = pneg %p40
        %p215 = pneg %p64
        %p216 = pneg %p61
        %p217 = pneg %p85
        %p218 = pneg %p82
        %p219 = pneg %p106
        %p220 = pneg %p103
        %p221 = pneg %p132
        %p222 = pneg %p129
        %s223 = sand.u32 %s119, 1
        %s224 = scalar_lea.sflag [#allocation6], %s223
        %s225 = sand.u32 %s119, 1
        %s226 = smul.addr %s225, 8
        %s227 = scalar_lea.vmem [#allocation9], %s226
        %v228 = vld [vmem:[%s198] sm:$0xff]
        %v229 = vld [vmem:[%s1] sm:$0xff]
        %v230 = vld [vmem:[%s2] sm:$0xf]
        %v232 = vcombine.high %v228, %v228
        %vm234 = vcmask 1043456
        %v235 = vsel %vm234, %v228, 0.0
        %v236 = vsel %vm234, %v232, 0.0
        %v237 = vadd.f32 %v235, %v236
        %238 = vadd.xlane.f32.xlu0 %v237
        %v239 = vpop.xlane.xlu0 %238
        %v240 = vrcp.pop 256.0
        %v241 = vmul.f32 %v239, %v240
        %v242 = vsel %vm234, %v228, -inf
        %v243 = vsel %vm234, %v232, -inf
        %v244 = vmax.f32 %v242, %v243
        %245 = vmax.xlane.f32.xlu0 %v244
        %v246 = vpop.xlane.xlu0 %245
        %vm247 = vcmask 7168
        %v248 = vsel %vm247, %v241, %v246
        %vm249 = vcmask 31744
        %v251 = vsel %vm249, %v229, 0
        %v254 = vsel %vm234, %v248, 0
        %256 = vmatprep.subr.mxu0 0.0
        %257 = vmatpush1.msra.mxu0 0.0
        %258 = vmatprep.subr.mxu0 0.0
        %259 = vmatpush1.msra.mxu0 0.0
        %260 = vmatprep.subr.mxu0 0.0
        %261 = vmatpush1.msra.mxu0 0.0
        %262 = vmatprep.subr.mxu0 0.0
        %263 = vmatpush1.msra.mxu0 0.0
        %264 = vmatprep.subr.mxu0 0.0
        %265 = vmatpush1.msra.mxu0 0.0
        %266 = vmatprep.subr.mxu0 0.0
        %267 = vmatpush1.msra.mxu0 0.0
        %268 = vmatprep.subr.mxu0 0.0
        %269 = vmatpush1.msra.mxu0 0.0
        %270 = vmatprep.subr.mxu0 0.0
        %271 = vmatpush1.msra.mxu0 0.0
        %272 = vmatprep.subr.mxu0 0.0
        %273 = vmatpush1.msra.mxu0 0.0
        %274 = vmatprep.subr.mxu0 0.0
        %275 = vmatpush1.msra.mxu0 0.0
        %276 = vmatprep.subr.mxu0 0.0
        %277 = vmatpush1.msra.mxu0 0.0
        %278 = vmatprep.subr.mxu0 0.0
        %279 = vmatpush1.msra.mxu0 0.0
        %280 = vmatprep.subr.mxu0 0.0
        %281 = vmatpush1.msra.mxu0 0.0
        %282 = vmatprep.subr.mxu0 0.0
        %283 = vmatpush1.msra.mxu0 0.0
        %284 = vmatprep.subr.mxu0 0.0
        %285 = vmatpush1.msra.mxu0 0.0
        %286 = vmatprep.subr.mxu0 0.0
        %287 = vmatpush1.msra.mxu0 %v254
        %288 = vmatprep.subr.mxu0 0.0
        %289 = vmatpush2.msra.mxu0 0.0
        %290 = vmatprep.subr.mxu0 0.0
        %291 = vmatpush2.msra.mxu0 0.0
        %292 = vmatprep.subr.mxu0 0.0
        %293 = vmatpush2.msra.mxu0 0.0
        %294 = vmatprep.subr.mxu0 0.0
        %295 = vmatpush2.msra.mxu0 0.0
        %296 = vmatprep.subr.mxu0 0.0
        %297 = vmatpush2.msra.mxu0 0.0
        %298 = vmatprep.subr.mxu0 0.0
        %299 = vmatpush2.msra.mxu0 0.0
        %300 = vmatprep.subr.mxu0 0.0
        %301 = vmatpush2.msra.mxu0 0.0
        %302 = vmatprep.subr.mxu0 0.0
        %303 = vmatpush2.msra.mxu0 0.0
        %304 = vmatprep.subr.mxu0 0.0
        %305 = vmatpush2.msra.mxu0 0.0
        %306 = vmatprep.subr.mxu0 0.0
        %307 = vmatpush2.msra.mxu0 0.0
        %308 = vmatprep.subr.mxu0 0.0
        %309 = vmatpush2.msra.mxu0 0.0
        %310 = vmatprep.subr.mxu0 0.0
        %311 = vmatpush2.msra.mxu0 0.0
        %312 = vmatprep.subr.mxu0 0.0
        %313 = vmatpush2.msra.mxu0 0.0
        %314 = vmatprep.subr.mxu0 0.0
        %315 = vmatpush2.msra.mxu0 0.0
        %316 = vmatprep.subr.mxu0 0.0
        %317 = vmatpush2.msra.mxu0 0.0
        %318 = vmatprep.subr.mxu0 0.0
        %319 = vmatpush2.msra.mxu0 0.0
        %320 = vmatprep.mubr.f32.mxu0 0.0
        %321 = vmatmul.mubr.f32.gmra.mxu0 %v251
        %v322 = vpop.f32.mrf.mxu0
        %v323 = vadd.f32 0.0, %v322
        %v324 = vpop.f32.mrf.mxu0
        %325 = vdwg.mxu0
        %v326 = vmax.f32 %v323, 0.0
        %vm327 = vcmask 64512
        %v329 = vsel %vm327, %v230, 0
        %331 = vmatprep.subr.mxu0 0.0
        %332 = vmatpush1.msra.mxu0 0.0
        %333 = vmatprep.subr.mxu0 0.0
        %334 = vmatpush1.msra.mxu0 0.0
        %335 = vmatprep.subr.mxu0 0.0
        %336 = vmatpush1.msra.mxu0 0.0
        %337 = vmatprep.subr.mxu0 0.0
        %338 = vmatpush1.msra.mxu0 0.0
        %339 = vmatprep.subr.mxu0 0.0
        %340 = vmatpush1.msra.mxu0 0.0
        %341 = vmatprep.subr.mxu0 0.0
        %342 = vmatpush1.msra.mxu0 0.0
        %343 = vmatprep.subr.mxu0 0.0
        %344 = vmatpush1.msra.mxu0 0.0
        %345 = vmatprep.subr.mxu0 0.0
        %346 = vmatpush1.msra.mxu0 0.0
        %347 = vmatprep.subr.mxu0 0.0
        %348 = vmatpush1.msra.mxu0 0.0
        %349 = vmatprep.subr.mxu0 0.0
        %350 = vmatpush1.msra.mxu0 0.0
        %351 = vmatprep.subr.mxu0 0.0
        %352 = vmatpush1.msra.mxu0 0.0
        %353 = vmatprep.subr.mxu0 0.0
        %354 = vmatpush1.msra.mxu0 0.0
        %355 = vmatprep.subr.mxu0 0.0
        %356 = vmatpush1.msra.mxu0 0.0
        %357 = vmatprep.subr.mxu0 0.0
        %358 = vmatpush1.msra.mxu0 0.0
        %359 = vmatprep.subr.mxu0 0.0
        %360 = vmatpush1.msra.mxu0 0.0
        %361 = vmatprep.subr.mxu0 0.0
        %362 = vmatpush1.msra.mxu0 %v326
        %363 = vmatprep.subr.mxu0 0.0
        %364 = vmatpush2.msra.mxu0 0.0
        %365 = vmatprep.subr.mxu0 0.0
        %366 = vmatpush2.msra.mxu0 0.0
        %367 = vmatprep.subr.mxu0 0.0
        %368 = vmatpush2.msra.mxu0 0.0
        %369 = vmatprep.subr.mxu0 0.0
        %370 = vmatpush2.msra.mxu0 0.0
        %371 = vmatprep.subr.mxu0 0.0
        %372 = vmatpush2.msra.mxu0 0.0
        %373 = vmatprep.subr.mxu0 0.0
        %374 = vmatpush2.msra.mxu0 0.0
        %375 = vmatprep.subr.mxu0 0.0
        %376 = vmatpush2.msra.mxu0 0.0
        %377 = vmatprep.subr.mxu0 0.0
        %378 = vmatpush2.msra.mxu0 0.0
        %379 = vmatprep.subr.mxu0 0.0
        %380 = vmatpush2.msra.mxu0 0.0
        %381 = vmatprep.subr.mxu0 0.0
        %382 = vmatpush2.msra.mxu0 0.0
        %383 = vmatprep.subr.mxu0 0.0
        %384 = vmatpush2.msra.mxu0 0.0
        %385 = vmatprep.subr.mxu0 0.0
        %386 = vmatpush2.msra.mxu0 0.0
        %387 = vmatprep.subr.mxu0 0.0
        %388 = vmatpush2.msra.mxu0 0.0
        %389 = vmatprep.subr.mxu0 0.0
        %390 = vmatpush2.msra.mxu0 0.0
        %391 = vmatprep.subr.mxu0 0.0
        %392 = vmatpush2.msra.mxu0 0.0
        %393 = vmatprep.subr.mxu0 0.0
        %394 = vmatpush2.msra.mxu0 0.0
        %395 = vmatprep.mubr.f32.mxu0 0.0
        %396 = vmatmul.mubr.f32.gmra.mxu0 %v329
        %v397 = vpop.f32.mrf.mxu0
        %v398 = vadd.f32 0.0, %v397
        %v399 = vpop.f32.mrf.mxu0
        %400 = vdwg.mxu0
        %vm401 = vcmask 179200
        %402 = vst.msk [vmem:[#allocation2] sm:$0xff] %vm401, 0.0
        %403 = vst.msk [vmem:[#allocation2 + $0x8] sm:$0xff] %vm401, 0.0
        %vm404 = vcmask 177152
        %405 = vst.msk [vmem:[#allocation2 + $0x10] sm:$0x3f] %vm404, 0.0
        %406 = vst.msk [vmem:[#allocation2 + $0x18] sm:$0xff] %vm401, 0.0
        %407 = vst.msk [vmem:[#allocation2 + $0x20] sm:$0xff] %vm401, 0.0
        %408 = vst.msk [vmem:[#allocation2 + $0x28] sm:$0x3f] %vm404, 0.0
        %410 = vrot.lane.b32.xlu0 %v398, 127
        %v411 = vpop.permute.xlu0 %410
        %v413 = vadd.f32 %v398, %v411
        %v414 = vxor.u32 %v413, 2147483648
        %v415 = vmul.f32 %v414, 1.442695
        %v416 = vpow.pop %v415
        %v417 = vadd.f32 %v416, 1.0
        %v418 = vrcp.pop %v417
        %v419 = vmul.f32 1.0, %v418
        %421 = vset.pattern.permute.xlu0 0
        %422 = vperm.xlu0 %421, %v419
        %v423 = vpop.permute.xlu0 %422
        %v425 = vunpack.c.l.s4 839922192
        %v426 = vunpack.c.0.s8 %v425
        %v427 = vlaneseq
        %v428 = vshrl.u32 %v427, 7
        %v429 = vsub.s32 %v426, %v428
        %v430 = vrot.slane %v423, %v429
        %v432 = vmul.f32 %v228, %v430
        %v434 = vcombine.high %v432, %v432
        %v436 = vsel %vm234, %v432, 0.0
        %v437 = vrot.slane %v436, 4
        %v438 = vadd.f32 %v436, %v437
        %v439 = vrot.slane %v438, 2
        %v440 = vadd.f32 %v438, %v439
        %v441 = vrot.slane %v440, 1
        %v442 = vadd.f32 %v440, %v441
        %v443 = vsel %vm234, %v434, 0.0
        %v444 = vrot.slane %v443, 4
        %v445 = vadd.f32 %v443, %v444
        %v446 = vrot.slane %v445, 2
        %v447 = vadd.f32 %v445, %v446
        %v448 = vrot.slane %v447, 1
        %v449 = vadd.f32 %v447, %v448
        %v450 = vrcp.pop 4.0
        %v451 = vmul.f32 %v442, %v450
        %v452 = vmul.f32 %v449, %v450
        %v453 = vsel %vm234, %v432, -inf
        %v454 = vrot.slane %v453, 4
        %v455 = vmax.f32 %v453, %v454
        %v456 = vrot.slane %v455, 2
        %v457 = vmax.f32 %v455, %v456
        %v458 = vrot.slane %v457, 1
        %v459 = vmax.f32 %v457, %v458
        %v460 = vsel %vm234, %v434, -inf
        %v461 = vrot.slane %v460, 4
        %v462 = vmax.f32 %v460, %v461
        %v463 = vrot.slane %v462, 2
        %v464 = vmax.f32 %v462, %v463
        %v465 = vrot.slane %v464, 1
        %v466 = vmax.f32 %v464, %v465
        %468 = vrot.lane.b32.xlu0 %v451, 3
        %v469 = vpop.permute.xlu0 %468
        %vm471 = vcmask 147480
        %472 = vst.msk [vmem:[#allocation2 + $0x3] sm:$0x1] %vm471, %v469
        %474 = vrot.lane.b32.xlu0 %v459, 3
        %v475 = vpop.permute.xlu0 %474
        %s477 = scalar_lea.vmem [#allocation2], 24
        %478 = vst.msk [vmem:[%s477 + $0x3] sm:$0x1] %vm471, %v475
        %479 = vrot.lane.b32.xlu0 %v451, 115
        %v480 = vpop.permute.xlu0 %479
        %482 = vst.msk [vmem:[#allocation2 + $0x4] sm:$0x1] %vm471, %v480
        %483 = vrot.lane.b32.xlu0 %v459, 115
        %v484 = vpop.permute.xlu0 %483
        %486 = vst.msk [vmem:[%s477 + $0x4] sm:$0x1] %vm471, %v484
        %487 = vrot.lane.b32.xlu0 %v451, 99
        %v488 = vpop.permute.xlu0 %487
        %490 = vst.msk [vmem:[#allocation2 + $0x5] sm:$0x1] %vm471, %v488
        %491 = vrot.lane.b32.xlu0 %v459, 99
        %v492 = vpop.permute.xlu0 %491
        %494 = vst.msk [vmem:[%s477 + $0x5] sm:$0x1] %vm471, %v492
        %495 = vrot.lane.b32.xlu0 %v451, 83
        %v496 = vpop.permute.xlu0 %495
        %498 = vst.msk [vmem:[#allocation2 + $0x6] sm:$0x1] %vm471, %v496
        %499 = vrot.lane.b32.xlu0 %v459, 83
        %v500 = vpop.permute.xlu0 %499
        %502 = vst.msk [vmem:[%s477 + $0x6] sm:$0x1] %vm471, %v500
        %503 = vrot.lane.b32.xlu0 %v451, 67
        %v504 = vpop.permute.xlu0 %503
        %506 = vst.msk [vmem:[#allocation2 + $0x7] sm:$0x1] %vm471, %v504
        %507 = vrot.lane.b32.xlu0 %v459, 67
        %v508 = vpop.permute.xlu0 %507
        %510 = vst.msk [vmem:[%s477 + $0x7] sm:$0x1] %vm471, %v508
        %511 = vrot.lane.b32.xlu0 %v451, 51
        %v512 = vpop.permute.xlu0 %511
        %514 = vst.msk [vmem:[#allocation2 + $0x8] sm:$0x1] %vm471, %v512
        %515 = vrot.lane.b32.xlu0 %v459, 51
        %v516 = vpop.permute.xlu0 %515
        %518 = vst.msk [vmem:[%s477 + $0x8] sm:$0x1] %vm471, %v516
        %519 = vrot.lane.b32.xlu0 %v451, 35
        %v520 = vpop.permute.xlu0 %519
        %522 = vst.msk [vmem:[#allocation2 + $0x9] sm:$0x1] %vm471, %v520
        %523 = vrot.lane.b32.xlu0 %v459, 35
        %v524 = vpop.permute.xlu0 %523
        %526 = vst.msk [vmem:[%s477 + $0x9] sm:$0x1] %vm471, %v524
        %527 = vrot.lane.b32.xlu0 %v451, 19
        %v528 = vpop.permute.xlu0 %527
        %530 = vst.msk [vmem:[#allocation2 + $0xa] sm:$0x1] %vm471, %v528
        %531 = vrot.lane.b32.xlu0 %v459, 19
        %v532 = vpop.permute.xlu0 %531
        %534 = vst.msk [vmem:[%s477 + $0xa] sm:$0x1] %vm471, %v532
        %536 = vrot.lane.b32.xlu0 %v452, 3
        %v537 = vpop.permute.xlu0 %536
        %539 = vst.msk [vmem:[#allocation2 + $0xb] sm:$0x1] %vm471, %v537
        %541 = vrot.lane.b32.xlu0 %v466, 3
        %v542 = vpop.permute.xlu0 %541
        %544 = vst.msk [vmem:[%s477 + $0xb] sm:$0x1] %vm471, %v542
        %545 = vrot.lane.b32.xlu0 %v452, 115
        %v546 = vpop.permute.xlu0 %545
        %548 = vst.msk [vmem:[#allocation2 + $0xc] sm:$0x1] %vm471, %v546
        %549 = vrot.lane.b32.xlu0 %v466, 115
        %v550 = vpop.permute.xlu0 %549
        %552 = vst.msk [vmem:[%s477 + $0xc] sm:$0x1] %vm471, %v550
        %553 = vrot.lane.b32.xlu0 %v452, 99
        %v554 = vpop.permute.xlu0 %553
        %556 = vst.msk [vmem:[#allocation2 + $0xd] sm:$0x1] %vm471, %v554
        %557 = vrot.lane.b32.xlu0 %v466, 99
        %v558 = vpop.permute.xlu0 %557
        %560 = vst.msk [vmem:[%s477 + $0xd] sm:$0x1] %vm471, %v558
        %561 = vrot.lane.b32.xlu0 %v452, 83
        %v562 = vpop.permute.xlu0 %561
        %564 = vst.msk [vmem:[#allocation2 + $0xe] sm:$0x1] %vm471, %v562
        %565 = vrot.lane.b32.xlu0 %v466, 83
        %v566 = vpop.permute.xlu0 %565
        %568 = vst.msk [vmem:[%s477 + $0xe] sm:$0x1] %vm471, %v566
        %569 = vrot.lane.b32.xlu0 %v452, 67
        %v570 = vpop.permute.xlu0 %569
        %572 = vst.msk [vmem:[#allocation2 + $0xf] sm:$0x1] %vm471, %v570
        %573 = vrot.lane.b32.xlu0 %v466, 67
        %v574 = vpop.permute.xlu0 %573
        %576 = vst.msk [vmem:[%s477 + $0xf] sm:$0x1] %vm471, %v574
        %577 = vrot.lane.b32.xlu0 %v452, 51
        %v578 = vpop.permute.xlu0 %577
        %580 = vst.msk [vmem:[#allocation2 + $0x10] sm:$0x1] %vm471, %v578
        %581 = vrot.lane.b32.xlu0 %v466, 51
        %v582 = vpop.permute.xlu0 %581
        %584 = vst.msk [vmem:[%s477 + $0x10] sm:$0x1] %vm471, %v582
        %585 = vrot.lane.b32.xlu0 %v452, 35
        %v586 = vpop.permute.xlu0 %585
        %588 = vst.msk [vmem:[#allocation2 + $0x11] sm:$0x1] %vm471, %v586
        %589 = vrot.lane.b32.xlu0 %v466, 35
        %v590 = vpop.permute.xlu0 %589
        %592 = vst.msk [vmem:[%s477 + $0x11] sm:$0x1] %vm471, %v590
        %593 = vrot.lane.b32.xlu0 %v452, 19
        %v594 = vpop.permute.xlu0 %593
        %596 = vst.msk [vmem:[#allocation2 + $0x12] sm:$0x1] %vm471, %v594
        %597 = vrot.lane.b32.xlu0 %v466, 19
        %v598 = vpop.permute.xlu0 %597
        %600 = vst.msk [vmem:[%s477 + $0x12] sm:$0x1] %vm471, %v598
        %v601 = vld [vmem:[#allocation2] sm:$0xff]
        %v602 = vld [vmem:[#allocation2 + $0x8] sm:$0xff]
        %v603 = vld [vmem:[#allocation2 + $0x10] sm:$0x3f]
        %v604 = vld [vmem:[#allocation2 + $0x18] sm:$0xff]
        %v605 = vld [vmem:[#allocation2 + $0x20] sm:$0xff]
        %v606 = vld [vmem:[#allocation2 + $0x28] sm:$0x3f]
        %s607 = sld [smem:[#allocation8]]
        %v608 = vstv %s607
        %v609 = vmul.f32 %v601, %v608
        %v610 = vmul.f32 %v602, %v608
        %v611 = vadd.f32 %v609, 0.0
        %v612 = vadd.f32 %v610, 0.0
        %s613 = sld [smem:[#allocation8 + $0x7]]
        %v614 = vstv %s613
        %v615 = vmul.f32 %v601, %v614
        %v616 = vmul.f32 %v602, %v614
        %v617 = vmul.f32 %v603, %v614
        %vm621 = vcmask 1046528
        %v622 = vrot.slane %v615, 1
        %v623 = vrot.slane %v616, 1
        %v624 = vsel %vm621, %v622, %v623
        %v625 = vrot.slane %v617, 1
        %v626 = vsel %vm621, %v623, %v625
        %v629 = vadd.f32 %v611, %v624
        %v630 = vadd.f32 %v612, %v626
        %s631 = sld [smem:[#allocation8 + $0xe]]
        %v632 = vstv %s631
        %v633 = vmul.f32 %v601, %v632
        %v634 = vmul.f32 %v602, %v632
        %v635 = vmul.f32 %v603, %v632
        %vm639 = vcmask 1045504
        %v640 = vrot.slane %v633, 2
        %v641 = vrot.slane %v634, 2
        %v642 = vsel %vm639, %v640, %v641
        %v643 = vrot.slane %v635, 2
        %v644 = vsel %vm639, %v641, %v643
        %v647 = vadd.f32 %v629, %v642
        %v648 = vadd.f32 %v630, %v644
        %s649 = sld [smem:[#allocation8 + $0x15]]
        %v650 = vstv %s649
        %v651 = vmul.f32 %v601, %v650
        %v652 = vmul.f32 %v602, %v650
        %v653 = vmul.f32 %v603, %v650
        %vm657 = vcmask 1044480
        %v658 = vrot.slane %v651, 3
        %v659 = vrot.slane %v652, 3
        %v660 = vsel %vm657, %v658, %v659
        %v661 = vrot.slane %v653, 3
        %v662 = vsel %vm657, %v659, %v661
        %v665 = vadd.f32 %v647, %v660
        %v666 = vadd.f32 %v648, %v662
        %s667 = sld [smem:[#allocation8 + $0x1c]]
        %v668 = vstv %s667
        %v669 = vmul.f32 %v601, %v668
        %v670 = vmul.f32 %v602, %v668
        %v671 = vmul.f32 %v603, %v668
        %v675 = vrot.slane %v669, 4
        %v676 = vrot.slane %v670, 4
        %v677 = vsel %vm234, %v675, %v676
        %v678 = vrot.slane %v671, 4
        %v679 = vsel %vm234, %v676, %v678
        %v682 = vadd.f32 %v665, %v677
        %v683 = vadd.f32 %v666, %v679
        %s684 = sld [smem:[#allocation8 + $0x23]]
        %v685 = vstv %s684
        %v686 = vmul.f32 %v601, %v685
        %v687 = vmul.f32 %v602, %v685
        %v688 = vmul.f32 %v603, %v685
        %vm692 = vcmask 1042432
        %v693 = vrot.slane %v686, 5
        %v694 = vrot.slane %v687, 5
        %v695 = vsel %vm692, %v693, %v694
        %v696 = vrot.slane %v688, 5
        %v697 = vsel %vm692, %v694, %v696
        %v700 = vadd.f32 %v682, %v695
        %v701 = vadd.f32 %v683, %v697
        %s702 = sld [smem:[#allocation8 + $0x2a]]
        %v703 = vstv %s702
        %v704 = vmul.f32 %v601, %v703
        %v705 = vmul.f32 %v602, %v703
        %v706 = vmul.f32 %v603, %v703
        %vm710 = vcmask 1041408
        %v711 = vrot.slane %v704, 6
        %v712 = vrot.slane %v705, 6
        %v713 = vsel %vm710, %v711, %v712
        %v714 = vrot.slane %v706, 6
        %v715 = vsel %vm710, %v712, %v714
        %v718 = vadd.f32 %v700, %v713
        %v719 = vadd.f32 %v701, %v715
        %s720 = sld [smem:[#allocation8 + $0x1]]
        %v721 = vstv %s720
        %v722 = vmul.f32 %v601, %v721
        %v723 = vmul.f32 %v602, %v721
        %726 = vrot.lane.b32.xlu0 %v722, 127
        %v727 = vpop.permute.xlu0 %726
        %728 = vrot.lane.b32.xlu0 %v723, 127
        %v729 = vpop.permute.xlu0 %728
        %v732 = vadd.f32 %v718, %v727
        %v733 = vadd.f32 %v719, %v729
        %s734 = sld [smem:[#allocation8 + $0x8]]
        %v735 = vstv %s734
        %v736 = vmul.f32 %v601, %v735
        %v737 = vmul.f32 %v602, %v735
        %v738 = vmul.f32 %v603, %v735
        %v742 = vrot.slane %v736, 1
        %v743 = vrot.slane %v737, 1
        %v744 = vsel %vm621, %v742, %v743
        %v745 = vrot.slane %v738, 1
        %v746 = vsel %vm621, %v743, %v745
        %747 = vrot.lane.b32.xlu0 %v744, 127
        %v748 = vpop.permute.xlu0 %747
        %749 = vrot.lane.b32.xlu0 %v746, 127
        %v750 = vpop.permute.xlu0 %749
        %v753 = vadd.f32 %v732, %v748
        %v754 = vadd.f32 %v733, %v750
        %s755 = sld [smem:[#allocation8 + $0xf]]
        %v756 = vstv %s755
        %v757 = vmul.f32 %v601, %v756
        %v758 = vmul.f32 %v602, %v756
        %v759 = vmul.f32 %v603, %v756
        %v763 = vrot.slane %v757, 2
        %v764 = vrot.slane %v758, 2
        %v765 = vsel %vm639, %v763, %v764
        %v766 = vrot.slane %v759, 2
        %v767 = vsel %vm639, %v764, %v766
        %768 = vrot.lane.b32.xlu0 %v765, 127
        %v769 = vpop.permute.xlu0 %768
        %770 = vrot.lane.b32.xlu0 %v767, 127
        %v771 = vpop.permute.xlu0 %770
        %v774 = vadd.f32 %v753, %v769
        %v775 = vadd.f32 %v754, %v771
        %s776 = sld [smem:[#allocation8 + $0x16]]
        %v777 = vstv %s776
        %v778 = vmul.f32 %v601, %v777
        %v779 = vmul.f32 %v602, %v777
        %v780 = vmul.f32 %v603, %v777
        %v784 = vrot.slane %v778, 3
        %v785 = vrot.slane %v779, 3
        %v786 = vsel %vm657, %v784, %v785
        %v787 = vrot.slane %v780, 3
        %v788 = vsel %vm657, %v785, %v787
        %789 = vrot.lane.b32.xlu0 %v786, 127
        %v790 = vpop.permute.xlu0 %789
        %791 = vrot.lane.b32.xlu0 %v788, 127
        %v792 = vpop.permute.xlu0 %791
        %v795 = vadd.f32 %v774, %v790
        %v796 = vadd.f32 %v775, %v792
        %s797 = sld [smem:[#allocation8 + $0x1d]]
        %v798 = vstv %s797
        %v799 = vmul.f32 %v601, %v798
        %v800 = vmul.f32 %v602, %v798
        %v801 = vmul.f32 %v603, %v798
        %v805 = vrot.slane %v799, 4
        %v806 = vrot.slane %v800, 4
        %v807 = vsel %vm234, %v805, %v806
        %v808 = vrot.slane %v801, 4
        %v809 = vsel %vm234, %v806, %v808
        %810 = vrot.lane.b32.xlu0 %v807, 127
        %v811 = vpop.permute.xlu0 %810
        %812 = vrot.lane.b32.xlu0 %v809, 127
        %v813 = vpop.permute.xlu0 %812
        %v816 = vadd.f32 %v795, %v811
        %v817 = vadd.f32 %v796, %v813
        %s818 = sld [smem:[#allocation8 + $0x24]]
        %v819 = vstv %s818
        %v820 = vmul.f32 %v601, %v819
        %v821 = vmul.f32 %v602, %v819
        %v822 = vmul.f32 %v603, %v819
        %v826 = vrot.slane %v820, 5
        %v827 = vrot.slane %v821, 5
        %v828 = vsel %vm692, %v826, %v827
        %v829 = vrot.slane %v822, 5
        %v830 = vsel %vm692, %v827, %v829
        %831 = vrot.lane.b32.xlu0 %v828, 127
        %v832 = vpop.permute.xlu0 %831
        %833 = vrot.lane.b32.xlu0 %v830, 127
        %v834 = vpop.permute.xlu0 %833
        %v837 = vadd.f32 %v816, %v832
        %v838 = vadd.f32 %v817, %v834
        %s839 = sld [smem:[#allocation8 + $0x2b]]
        %v840 = vstv %s839
        %v841 = vmul.f32 %v601, %v840
        %v842 = vmul.f32 %v602, %v840
        %v843 = vmul.f32 %v603, %v840
        %v847 = vrot.slane %v841, 6
        %v848 = vrot.slane %v842, 6
        %v849 = vsel %vm710, %v847, %v848
        %v850 = vrot.slane %v843, 6
        %v851 = vsel %vm710, %v848, %v850
        %852 = vrot.lane.b32.xlu0 %v849, 127
        %v853 = vpop.permute.xlu0 %852
        %854 = vrot.lane.b32.xlu0 %v851, 127
        %v855 = vpop.permute.xlu0 %854
        %v858 = vadd.f32 %v837, %v853
        %v859 = vadd.f32 %v838, %v855
        %s860 = sld [smem:[#allocation8 + $0x2]]
        %v861 = vstv %s860
        %v862 = vmul.f32 %v601, %v861
        %v863 = vmul.f32 %v602, %v861
        %866 = vrot.lane.b32.xlu0 %v862, 126
        %v867 = vpop.permute.xlu0 %866
        %868 = vrot.lane.b32.xlu0 %v863, 126
        %v869 = vpop.permute.xlu0 %868
        %v872 = vadd.f32 %v858, %v867
        %v873 = vadd.f32 %v859, %v869
        %s874 = sld [smem:[#allocation8 + $0x9]]
        %v875 = vstv %s874
        %v876 = vmul.f32 %v601, %v875
        %v877 = vmul.f32 %v602, %v875
        %v878 = vmul.f32 %v603, %v875
        %v882 = vrot.slane %v876, 1
        %v883 = vrot.slane %v877, 1
        %v884 = vsel %vm621, %v882, %v883
        %v885 = vrot.slane %v878, 1
        %v886 = vsel %vm621, %v883, %v885
        %887 = vrot.lane.b32.xlu0 %v884, 126
        %v888 = vpop.permute.xlu0 %887
        %889 = vrot.lane.b32.xlu0 %v886, 126
        %v890 = vpop.permute.xlu0 %889
        %v893 = vadd.f32 %v872, %v888
        %v894 = vadd.f32 %v873, %v890
        %s895 = sld [smem:[#allocation8 + $0x10]]
        %v896 = vstv %s895
        %v897 = vmul.f32 %v601, %v896
        %v898 = vmul.f32 %v602, %v896
        %v899 = vmul.f32 %v603, %v896
        %v903 = vrot.slane %v897, 2
        %v904 = vrot.slane %v898, 2
        %v905 = vsel %vm639, %v903, %v904
        %v906 = vrot.slane %v899, 2
        %v907 = vsel %vm639, %v904, %v906
        %908 = vrot.lane.b32.xlu0 %v905, 126
        %v909 = vpop.permute.xlu0 %908
        %910 = vrot.lane.b32.xlu0 %v907, 126
        %v911 = vpop.permute.xlu0 %910
        %v914 = vadd.f32 %v893, %v909
        %v915 = vadd.f32 %v894, %v911
        %s916 = sld [smem:[#allocation8 + $0x17]]
        %v917 = vstv %s916
        %v918 = vmul.f32 %v601, %v917
        %v919 = vmul.f32 %v602, %v917
        %v920 = vmul.f32 %v603, %v917
        %v924 = vrot.slane %v918, 3
        %v925 = vrot.slane %v919, 3
        %v926 = vsel %vm657, %v924, %v925
        %v927 = vrot.slane %v920, 3
        %v928 = vsel %vm657, %v925, %v927
        %929 = vrot.lane.b32.xlu0 %v926, 126
        %v930 = vpop.permute.xlu0 %929
        %931 = vrot.lane.b32.xlu0 %v928, 126
        %v932 = vpop.permute.xlu0 %931
        %v935 = vadd.f32 %v914, %v930
        %v936 = vadd.f32 %v915, %v932
        %s937 = sld [smem:[#allocation8 + $0x1e]]
        %v938 = vstv %s937
        %v939 = vmul.f32 %v601, %v938
        %v940 = vmul.f32 %v602, %v938
        %v941 = vmul.f32 %v603, %v938
        %v945 = vrot.slane %v939, 4
        %v946 = vrot.slane %v940, 4
        %v947 = vsel %vm234, %v945, %v946
        %v948 = vrot.slane %v941, 4
        %v949 = vsel %vm234, %v946, %v948
        %950 = vrot.lane.b32.xlu0 %v947, 126
        %v951 = vpop.permute.xlu0 %950
        %952 = vrot.lane.b32.xlu0 %v949, 126
        %v953 = vpop.permute.xlu0 %952
        %v956 = vadd.f32 %v935, %v951
        %v957 = vadd.f32 %v936, %v953
        %s958 = sld [smem:[#allocation8 + $0x25]]
        %v959 = vstv %s958
        %v960 = vmul.f32 %v601, %v959
        %v961 = vmul.f32 %v602, %v959
        %v962 = vmul.f32 %v603, %v959
        %v966 = vrot.slane %v960, 5
        %v967 = vrot.slane %v961, 5
        %v968 = vsel %vm692, %v966, %v967
        %v969 = vrot.slane %v962, 5
        %v970 = vsel %vm692, %v967, %v969
        %971 = vrot.lane.b32.xlu0 %v968, 126
        %v972 = vpop.permute.xlu0 %971
        %973 = vrot.lane.b32.xlu0 %v970, 126
        %v974 = vpop.permute.xlu0 %973
        %v977 = vadd.f32 %v956, %v972
        %v978 = vadd.f32 %v957, %v974
        %s979 = sld [smem:[#allocation8 + $0x2c]]
        %v980 = vstv %s979
        %v981 = vmul.f32 %v601, %v980
        %v982 = vmul.f32 %v602, %v980
        %v983 = vmul.f32 %v603, %v980
        %v987 = vrot.slane %v981, 6
        %v988 = vrot.slane %v982, 6
        %v989 = vsel %vm710, %v987, %v988
        %v990 = vrot.slane %v983, 6
        %v991 = vsel %vm710, %v988, %v990
        %992 = vrot.lane.b32.xlu0 %v989, 126
        %v993 = vpop.permute.xlu0 %992
        %994 = vrot.lane.b32.xlu0 %v991, 126
        %v995 = vpop.permute.xlu0 %994
        %v998 = vadd.f32 %v977, %v993
        %v999 = vadd.f32 %v978, %v995
        %s1000 = sld [smem:[#allocation8 + $0x3]]
        %v1001 = vstv %s1000
        %v1002 = vmul.f32 %v601, %v1001
        %v1003 = vmul.f32 %v602, %v1001
        %1006 = vrot.lane.b32.xlu0 %v1002, 125
        %v1007 = vpop.permute.xlu0 %1006
        %1008 = vrot.lane.b32.xlu0 %v1003, 125
        %v1009 = vpop.permute.xlu0 %1008
        %v1012 = vadd.f32 %v998, %v1007
        %v1013 = vadd.f32 %v999, %v1009
        %s1014 = sld [smem:[#allocation8 + $0xa]]
        %v1015 = vstv %s1014
        %v1016 = vmul.f32 %v601, %v1015
        %v1017 = vmul.f32 %v602, %v1015
        %v1018 = vmul.f32 %v603, %v1015
        %v1022 = vrot.slane %v1016, 1
        %v1023 = vrot.slane %v1017, 1
        %v1024 = vsel %vm621, %v1022, %v1023
        %v1025 = vrot.slane %v1018, 1
        %v1026 = vsel %vm621, %v1023, %v1025
        %1027 = vrot.lane.b32.xlu0 %v1024, 125
        %v1028 = vpop.permute.xlu0 %1027
        %1029 = vrot.lane.b32.xlu0 %v1026, 125
        %v1030 = vpop.permute.xlu0 %1029
        %v1033 = vadd.f32 %v1012, %v1028
        %v1034 = vadd.f32 %v1013, %v1030
        %s1035 = sld [smem:[#allocation8 + $0x11]]
        %v1036 = vstv %s1035
        %v1037 = vmul.f32 %v601, %v1036
        %v1038 = vmul.f32 %v602, %v1036
        %v1039 = vmul.f32 %v603, %v1036
        %v1043 = vrot.slane %v1037, 2
        %v1044 = vrot.slane %v1038, 2
        %v1045 = vsel %vm639, %v1043, %v1044
        %v1046 = vrot.slane %v1039, 2
        %v1047 = vsel %vm639, %v1044, %v1046
        %1048 = vrot.lane.b32.xlu0 %v1045, 125
        %v1049 = vpop.permute.xlu0 %1048
        %1050 = vrot.lane.b32.xlu0 %v1047, 125
        %v1051 = vpop.permute.xlu0 %1050
        %v1054 = vadd.f32 %v1033, %v1049
        %v1055 = vadd.f32 %v1034, %v1051
        %s1056 = sld [smem:[#allocation8 + $0x18]]
        %v1057 = vstv %s1056
        %v1058 = vmul.f32 %v601, %v1057
        %v1059 = vmul.f32 %v602, %v1057
        %v1060 = vmul.f32 %v603, %v1057
        %v1064 = vrot.slane %v1058, 3
        %v1065 = vrot.slane %v1059, 3
        %v1066 = vsel %vm657, %v1064, %v1065
        %v1067 = vrot.slane %v1060, 3
        %v1068 = vsel %vm657, %v1065, %v1067
        %1069 = vrot.lane.b32.xlu0 %v1066, 125
        %v1070 = vpop.permute.xlu0 %1069
        %1071 = vrot.lane.b32.xlu0 %v1068, 125
        %v1072 = vpop.permute.xlu0 %1071
        %v1075 = vadd.f32 %v1054, %v1070
        %v1076 = vadd.f32 %v1055, %v1072
        %s1077 = sld [smem:[#allocation8 + $0x1f]]
        %v1078 = vstv %s1077
        %v1079 = vmul.f32 %v601, %v1078
        %v1080 = vmul.f32 %v602, %v1078
        %v1081 = vmul.f32 %v603, %v1078
        %v1085 = vrot.slane %v1079, 4
        %v1086 = vrot.slane %v1080, 4
        %v1087 = vsel %vm234, %v1085, %v1086
        %v1088 = vrot.slane %v1081, 4
        %v1089 = vsel %vm234, %v1086, %v1088
        %1090 = vrot.lane.b32.xlu0 %v1087, 125
        %v1091 = vpop.permute.xlu0 %1090
        %1092 = vrot.lane.b32.xlu0 %v1089, 125
        %v1093 = vpop.permute.xlu0 %1092
        %v1096 = vadd.f32 %v1075, %v1091
        %v1097 = vadd.f32 %v1076, %v1093
        %s1098 = sld [smem:[#allocation8 + $0x26]]
        %v1099 = vstv %s1098
        %v1100 = vmul.f32 %v601, %v1099
        %v1101 = vmul.f32 %v602, %v1099
        %v1102 = vmul.f32 %v603, %v1099
        %v1106 = vrot.slane %v1100, 5
        %v1107 = vrot.slane %v1101, 5
        %v1108 = vsel %vm692, %v1106, %v1107
        %v1109 = vrot.slane %v1102, 5
        %v1110 = vsel %vm692, %v1107, %v1109
        %1111 = vrot.lane.b32.xlu0 %v1108, 125
        %v1112 = vpop.permute.xlu0 %1111
        %1113 = vrot.lane.b32.xlu0 %v1110, 125
        %v1114 = vpop.permute.xlu0 %1113
        %v1117 = vadd.f32 %v1096, %v1112
        %v1118 = vadd.f32 %v1097, %v1114
        %s1119 = sld [smem:[#allocation8 + $0x2d]]
        %v1120 = vstv %s1119
        %v1121 = vmul.f32 %v601, %v1120
        %v1122 = vmul.f32 %v602, %v1120
        %v1123 = vmul.f32 %v603, %v1120
        %v1127 = vrot.slane %v1121, 6
        %v1128 = vrot.slane %v1122, 6
        %v1129 = vsel %vm710, %v1127, %v1128
        %v1130 = vrot.slane %v1123, 6
        %v1131 = vsel %vm710, %v1128, %v1130
        %1132 = vrot.lane.b32.xlu0 %v1129, 125
        %v1133 = vpop.permute.xlu0 %1132
        %1134 = vrot.lane.b32.xlu0 %v1131, 125
        %v1135 = vpop.permute.xlu0 %1134
        %v1138 = vadd.f32 %v1117, %v1133
        %v1139 = vadd.f32 %v1118, %v1135
        %s1140 = sld [smem:[#allocation8 + $0x4]]
        %v1141 = vstv %s1140
        %v1142 = vmul.f32 %v601, %v1141
        %v1143 = vmul.f32 %v602, %v1141
        %1146 = vrot.lane.b32.xlu0 %v1142, 124
        %v1147 = vpop.permute.xlu0 %1146
        %1148 = vrot.lane.b32.xlu0 %v1143, 124
        %v1149 = vpop.permute.xlu0 %1148
        %v1152 = vadd.f32 %v1138, %v1147
        %v1153 = vadd.f32 %v1139, %v1149
        %s1154 = sld [smem:[#allocation8 + $0xb]]
        %v1155 = vstv %s1154
        %v1156 = vmul.f32 %v601, %v1155
        %v1157 = vmul.f32 %v602, %v1155
        %v1158 = vmul.f32 %v603, %v1155
        %v1162 = vrot.slane %v1156, 1
        %v1163 = vrot.slane %v1157, 1
        %v1164 = vsel %vm621, %v1162, %v1163
        %v1165 = vrot.slane %v1158, 1
        %v1166 = vsel %vm621, %v1163, %v1165
        %1167 = vrot.lane.b32.xlu0 %v1164, 124
        %v1168 = vpop.permute.xlu0 %1167
        %1169 = vrot.lane.b32.xlu0 %v1166, 124
        %v1170 = vpop.permute.xlu0 %1169
        %v1173 = vadd.f32 %v1152, %v1168
        %v1174 = vadd.f32 %v1153, %v1170
        %s1175 = sld [smem:[#allocation8 + $0x12]]
        %v1176 = vstv %s1175
        %v1177 = vmul.f32 %v601, %v1176
        %v1178 = vmul.f32 %v602, %v1176
        %v1179 = vmul.f32 %v603, %v1176
        %v1183 = vrot.slane %v1177, 2
        %v1184 = vrot.slane %v1178, 2
        %v1185 = vsel %vm639, %v1183, %v1184
        %v1186 = vrot.slane %v1179, 2
        %v1187 = vsel %vm639, %v1184, %v1186
        %1188 = vrot.lane.b32.xlu0 %v1185, 124
        %v1189 = vpop.permute.xlu0 %1188
        %1190 = vrot.lane.b32.xlu0 %v1187, 124
        %v1191 = vpop.permute.xlu0 %1190
        %v1194 = vadd.f32 %v1173, %v1189
        %v1195 = vadd.f32 %v1174, %v1191
        %s1196 = sld [smem:[#allocation8 + $0x19]]
        %v1197 = vstv %s1196
        %v1198 = vmul.f32 %v601, %v1197
        %v1199 = vmul.f32 %v602, %v1197
        %v1200 = vmul.f32 %v603, %v1197
        %v1204 = vrot.slane %v1198, 3
        %v1205 = vrot.slane %v1199, 3
        %v1206 = vsel %vm657, %v1204, %v1205
        %v1207 = vrot.slane %v1200, 3
        %v1208 = vsel %vm657, %v1205, %v1207
        %1209 = vrot.lane.b32.xlu0 %v1206, 124
        %v1210 = vpop.permute.xlu0 %1209
        %1211 = vrot.lane.b32.xlu0 %v1208, 124
        %v1212 = vpop.permute.xlu0 %1211
        %v1215 = vadd.f32 %v1194, %v1210
        %v1216 = vadd.f32 %v1195, %v1212
        %s1217 = sld [smem:[#allocation8 + $0x20]]
        %v1218 = vstv %s1217
        %v1219 = vmul.f32 %v601, %v1218
        %v1220 = vmul.f32 %v602, %v1218
        %v1221 = vmul.f32 %v603, %v1218
        %v1225 = vrot.slane %v1219, 4
        %v1226 = vrot.slane %v1220, 4
        %v1227 = vsel %vm234, %v1225, %v1226
        %v1228 = vrot.slane %v1221, 4
        %v1229 = vsel %vm234, %v1226, %v1228
        %1230 = vrot.lane.b32.xlu0 %v1227, 124
        %v1231 = vpop.permute.xlu0 %1230
        %1232 = vrot.lane.b32.xlu0 %v1229, 124
        %v1233 = vpop.permute.xlu0 %1232
        %v1236 = vadd.f32 %v1215, %v1231
        %v1237 = vadd.f32 %v1216, %v1233
        %s1238 = sld [smem:[#allocation8 + $0x27]]
        %v1239 = vstv %s1238
        %v1240 = vmul.f32 %v601, %v1239
        %v1241 = vmul.f32 %v602, %v1239
        %v1242 = vmul.f32 %v603, %v1239
        %v1246 = vrot.slane %v1240, 5
        %v1247 = vrot.slane %v1241, 5
        %v1248 = vsel %vm692, %v1246, %v1247
        %v1249 = vrot.slane %v1242, 5
        %v1250 = vsel %vm692, %v1247, %v1249
        %1251 = vrot.lane.b32.xlu0 %v1248, 124
        %v1252 = vpop.permute.xlu0 %1251
        %1253 = vrot.lane.b32.xlu0 %v1250, 124
        %v1254 = vpop.permute.xlu0 %1253
        %v1257 = vadd.f32 %v1236, %v1252
        %v1258 = vadd.f32 %v1237, %v1254
        %s1259 = sld [smem:[#allocation8 + $0x2e]]
        %v1260 = vstv %s1259
        %v1261 = vmul.f32 %v601, %v1260
        %v1262 = vmul.f32 %v602, %v1260
        %v1263 = vmul.f32 %v603, %v1260
        %v1267 = vrot.slane %v1261, 6
        %v1268 = vrot.slane %v1262, 6
        %v1269 = vsel %vm710, %v1267, %v1268
        %v1270 = vrot.slane %v1263, 6
        %v1271 = vsel %vm710, %v1268, %v1270
        %1272 = vrot.lane.b32.xlu0 %v1269, 124
        %v1273 = vpop.permute.xlu0 %1272
        %1274 = vrot.lane.b32.xlu0 %v1271, 124
        %v1275 = vpop.permute.xlu0 %1274
        %v1278 = vadd.f32 %v1257, %v1273
        %v1279 = vadd.f32 %v1258, %v1275
        %s1280 = sld [smem:[#allocation8 + $0x5]]
        %v1281 = vstv %s1280
        %v1282 = vmul.f32 %v601, %v1281
        %v1283 = vmul.f32 %v602, %v1281
        %1286 = vrot.lane.b32.xlu0 %v1282, 123
        %v1287 = vpop.permute.xlu0 %1286
        %1288 = vrot.lane.b32.xlu0 %v1283, 123
        %v1289 = vpop.permute.xlu0 %1288
        %v1292 = vadd.f32 %v1278, %v1287
        %v1293 = vadd.f32 %v1279, %v1289
        %s1294 = sld [smem:[#allocation8 + $0xc]]
        %v1295 = vstv %s1294
        %v1296 = vmul.f32 %v601, %v1295
        %v1297 = vmul.f32 %v602, %v1295
        %v1298 = vmul.f32 %v603, %v1295
        %v1302 = vrot.slane %v1296, 1
        %v1303 = vrot.slane %v1297, 1
        %v1304 = vsel %vm621, %v1302, %v1303
        %v1305 = vrot.slane %v1298, 1
        %v1306 = vsel %vm621, %v1303, %v1305
        %1307 = vrot.lane.b32.xlu0 %v1304, 123
        %v1308 = vpop.permute.xlu0 %1307
        %1309 = vrot.lane.b32.xlu0 %v1306, 123
        %v1310 = vpop.permute.xlu0 %1309
        %v1313 = vadd.f32 %v1292, %v1308
        %v1314 = vadd.f32 %v1293, %v1310
        %s1315 = sld [smem:[#allocation8 + $0x13]]
        %v1316 = vstv %s1315
        %v1317 = vmul.f32 %v601, %v1316
        %v1318 = vmul.f32 %v602, %v1316
        %v1319 = vmul.f32 %v603, %v1316
        %v1323 = vrot.slane %v1317, 2
        %v1324 = vrot.slane %v1318, 2
        %v1325 = vsel %vm639, %v1323, %v1324
        %v1326 = vrot.slane %v1319, 2
        %v1327 = vsel %vm639, %v1324, %v1326
        %1328 = vrot.lane.b32.xlu0 %v1325, 123
        %v1329 = vpop.permute.xlu0 %1328
        %1330 = vrot.lane.b32.xlu0 %v1327, 123
        %v1331 = vpop.permute.xlu0 %1330
        %v1334 = vadd.f32 %v1313, %v1329
        %v1335 = vadd.f32 %v1314, %v1331
        %s1336 = sld [smem:[#allocation8 + $0x1a]]
        %v1337 = vstv %s1336
        %v1338 = vmul.f32 %v601, %v1337
        %v1339 = vmul.f32 %v602, %v1337
        %v1340 = vmul.f32 %v603, %v1337
        %v1344 = vrot.slane %v1338, 3
        %v1345 = vrot.slane %v1339, 3
        %v1346 = vsel %vm657, %v1344, %v1345
        %v1347 = vrot.slane %v1340, 3
        %v1348 = vsel %vm657, %v1345, %v1347
        %1349 = vrot.lane.b32.xlu0 %v1346, 123
        %v1350 = vpop.permute.xlu0 %1349
        %1351 = vrot.lane.b32.xlu0 %v1348, 123
        %v1352 = vpop.permute.xlu0 %1351
        %v1355 = vadd.f32 %v1334, %v1350
        %v1356 = vadd.f32 %v1335, %v1352
        %s1357 = sld [smem:[#allocation8 + $0x21]]
        %v1358 = vstv %s1357
        %v1359 = vmul.f32 %v601, %v1358
        %v1360 = vmul.f32 %v602, %v1358
        %v1361 = vmul.f32 %v603, %v1358
        %v1365 = vrot.slane %v1359, 4
        %v1366 = vrot.slane %v1360, 4
        %v1367 = vsel %vm234, %v1365, %v1366
        %v1368 = vrot.slane %v1361, 4
        %v1369 = vsel %vm234, %v1366, %v1368
        %1370 = vrot.lane.b32.xlu0 %v1367, 123
        %v1371 = vpop.permute.xlu0 %1370
        %1372 = vrot.lane.b32.xlu0 %v1369, 123
        %v1373 = vpop.permute.xlu0 %1372
        %v1376 = vadd.f32 %v1355, %v1371
        %v1377 = vadd.f32 %v1356, %v1373
        %s1378 = sld [smem:[#allocation8 + $0x28]]
        %v1379 = vstv %s1378
        %v1380 = vmul.f32 %v601, %v1379
        %v1381 = vmul.f32 %v602, %v1379
        %v1382 = vmul.f32 %v603, %v1379
        %v1386 = vrot.slane %v1380, 5
        %v1387 = vrot.slane %v1381, 5
        %v1388 = vsel %vm692, %v1386, %v1387
        %v1389 = vrot.slane %v1382, 5
        %v1390 = vsel %vm692, %v1387, %v1389
        %1391 = vrot.lane.b32.xlu0 %v1388, 123
        %v1392 = vpop.permute.xlu0 %1391
        %1393 = vrot.lane.b32.xlu0 %v1390, 123
        %v1394 = vpop.permute.xlu0 %1393
        %v1397 = vadd.f32 %v1376, %v1392
        %v1398 = vadd.f32 %v1377, %v1394
        %s1399 = sld [smem:[#allocation8 + $0x2f]]
        %v1400 = vstv %s1399
        %v1401 = vmul.f32 %v601, %v1400
        %v1402 = vmul.f32 %v602, %v1400
        %v1403 = vmul.f32 %v603, %v1400
        %v1407 = vrot.slane %v1401, 6
        %v1408 = vrot.slane %v1402, 6
        %v1409 = vsel %vm710, %v1407, %v1408
        %v1410 = vrot.slane %v1403, 6
        %v1411 = vsel %vm710, %v1408, %v1410
        %1412 = vrot.lane.b32.xlu0 %v1409, 123
        %v1413 = vpop.permute.xlu0 %1412
        %1414 = vrot.lane.b32.xlu0 %v1411, 123
        %v1415 = vpop.permute.xlu0 %1414
        %v1418 = vadd.f32 %v1397, %v1413
        %v1419 = vadd.f32 %v1398, %v1415
        %s1420 = sld [smem:[#allocation8 + $0x6]]
        %v1421 = vstv %s1420
        %v1422 = vmul.f32 %v601, %v1421
        %v1423 = vmul.f32 %v602, %v1421
        %1426 = vrot.lane.b32.xlu0 %v1422, 122
        %v1427 = vpop.permute.xlu0 %1426
        %1428 = vrot.lane.b32.xlu0 %v1423, 122
        %v1429 = vpop.permute.xlu0 %1428
        %v1432 = vadd.f32 %v1418, %v1427
        %v1433 = vadd.f32 %v1419, %v1429
        %s1434 = sld [smem:[#allocation8 + $0xd]]
        %v1435 = vstv %s1434
        %v1436 = vmul.f32 %v601, %v1435
        %v1437 = vmul.f32 %v602, %v1435
        %v1438 = vmul.f32 %v603, %v1435
        %v1442 = vrot.slane %v1436, 1
        %v1443 = vrot.slane %v1437, 1
        %v1444 = vsel %vm621, %v1442, %v1443
        %v1445 = vrot.slane %v1438, 1
        %v1446 = vsel %vm621, %v1443, %v1445
        %1447 = vrot.lane.b32.xlu0 %v1444, 122
        %v1448 = vpop.permute.xlu0 %1447
        %1449 = vrot.lane.b32.xlu0 %v1446, 122
        %v1450 = vpop.permute.xlu0 %1449
        %v1453 = vadd.f32 %v1432, %v1448
        %v1454 = vadd.f32 %v1433, %v1450
        %s1455 = sld [smem:[#allocation8 + $0x14]]
        %v1456 = vstv %s1455
        %v1457 = vmul.f32 %v601, %v1456
        %v1458 = vmul.f32 %v602, %v1456
        %v1459 = vmul.f32 %v603, %v1456
        %v1463 = vrot.slane %v1457, 2
        %v1464 = vrot.slane %v1458, 2
        %v1465 = vsel %vm639, %v1463, %v1464
        %v1466 = vrot.slane %v1459, 2
        %v1467 = vsel %vm639, %v1464, %v1466
        %1468 = vrot.lane.b32.xlu0 %v1465, 122
        %v1469 = vpop.permute.xlu0 %1468
        %1470 = vrot.lane.b32.xlu0 %v1467, 122
        %v1471 = vpop.permute.xlu0 %1470
        %v1474 = vadd.f32 %v1453, %v1469
        %v1475 = vadd.f32 %v1454, %v1471
        %s1476 = sld [smem:[#allocation8 + $0x1b]]
        %v1477 = vstv %s1476
        %v1478 = vmul.f32 %v601, %v1477
        %v1479 = vmul.f32 %v602, %v1477
        %v1480 = vmul.f32 %v603, %v1477
        %v1484 = vrot.slane %v1478, 3
        %v1485 = vrot.slane %v1479, 3
        %v1486 = vsel %vm657, %v1484, %v1485
        %v1487 = vrot.slane %v1480, 3
        %v1488 = vsel %vm657, %v1485, %v1487
        %1489 = vrot.lane.b32.xlu0 %v1486, 122
        %v1490 = vpop.permute.xlu0 %1489
        %1491 = vrot.lane.b32.xlu0 %v1488, 122
        %v1492 = vpop.permute.xlu0 %1491
        %v1495 = vadd.f32 %v1474, %v1490
        %v1496 = vadd.f32 %v1475, %v1492
        %s1497 = sld [smem:[#allocation8 + $0x22]]
        %v1498 = vstv %s1497
        %v1499 = vmul.f32 %v601, %v1498
        %v1500 = vmul.f32 %v602, %v1498
        %v1501 = vmul.f32 %v603, %v1498
        %v1505 = vrot.slane %v1499, 4
        %v1506 = vrot.slane %v1500, 4
        %v1507 = vsel %vm234, %v1505, %v1506
        %v1508 = vrot.slane %v1501, 4
        %v1509 = vsel %vm234, %v1506, %v1508
        %1510 = vrot.lane.b32.xlu0 %v1507, 122
        %v1511 = vpop.permute.xlu0 %1510
        %1512 = vrot.lane.b32.xlu0 %v1509, 122
        %v1513 = vpop.permute.xlu0 %1512
        %v1516 = vadd.f32 %v1495, %v1511
        %v1517 = vadd.f32 %v1496, %v1513
        %s1518 = sld [smem:[#allocation8 + $0x29]]
        %v1519 = vstv %s1518
        %v1520 = vmul.f32 %v601, %v1519
        %v1521 = vmul.f32 %v602, %v1519
        %v1522 = vmul.f32 %v603, %v1519
        %v1526 = vrot.slane %v1520, 5
        %v1527 = vrot.slane %v1521, 5
        %v1528 = vsel %vm692, %v1526, %v1527
        %v1529 = vrot.slane %v1522, 5
        %v1530 = vsel %vm692, %v1527, %v1529
        %1531 = vrot.lane.b32.xlu0 %v1528, 122
        %v1532 = vpop.permute.xlu0 %1531
        %1533 = vrot.lane.b32.xlu0 %v1530, 122
        %v1534 = vpop.permute.xlu0 %1533
        %v1537 = vadd.f32 %v1516, %v1532
        %v1538 = vadd.f32 %v1517, %v1534
        %s1539 = sld [smem:[#allocation8 + $0x30]]
        %v1540 = vstv %s1539
        %v1541 = vmul.f32 %v601, %v1540
        %v1542 = vmul.f32 %v602, %v1540
        %v1543 = vmul.f32 %v603, %v1540
        %v1547 = vrot.slane %v1541, 6
        %v1548 = vrot.slane %v1542, 6
        %v1549 = vsel %vm710, %v1547, %v1548
        %v1550 = vrot.slane %v1543, 6
        %v1551 = vsel %vm710, %v1548, %v1550
        %1552 = vrot.lane.b32.xlu0 %v1549, 122
        %v1553 = vpop.permute.xlu0 %1552
        %1554 = vrot.lane.b32.xlu0 %v1551, 122
        %v1555 = vpop.permute.xlu0 %1554
        %v1558 = vadd.f32 %v1537, %v1553
        %v1559 = vadd.f32 %v1538, %v1555
        %s1560 = sld [smem:[#allocation8 + $0x31]]
        %v1561 = vstv %s1560
        %v1562 = vmul.f32 %v604, %v1561
        %v1563 = vmul.f32 %v605, %v1561
        %v1564 = vadd.f32 %v1558, %v1562
        %v1565 = vadd.f32 %v1559, %v1563
        %s1566 = sld [smem:[#allocation8 + $0x38]]
        %v1567 = vstv %s1566
        %v1568 = vmul.f32 %v604, %v1567
        %v1569 = vmul.f32 %v605, %v1567
        %v1570 = vmul.f32 %v606, %v1567
        %v1574 = vrot.slane %v1568, 1
        %v1575 = vrot.slane %v1569, 1
        %v1576 = vsel %vm621, %v1574, %v1575
        %v1577 = vrot.slane %v1570, 1
        %v1578 = vsel %vm621, %v1575, %v1577
        %v1581 = vadd.f32 %v1564, %v1576
        %v1582 = vadd.f32 %v1565, %v1578
        %s1583 = sld [smem:[#allocation8 + $0x3f]]
        %v1584 = vstv %s1583
        %v1585 = vmul.f32 %v604, %v1584
        %v1586 = vmul.f32 %v605, %v1584
        %v1587 = vmul.f32 %v606, %v1584
        %v1591 = vrot.slane %v1585, 2
        %v1592 = vrot.slane %v1586, 2
        %v1593 = vsel %vm639, %v1591, %v1592
        %v1594 = vrot.slane %v1587, 2
        %v1595 = vsel %vm639, %v1592, %v1594
        %v1598 = vadd.f32 %v1581, %v1593
        %v1599 = vadd.f32 %v1582, %v1595
        %s1600 = sld [smem:[#allocation8 + $0x46]]
        %v1601 = vstv %s1600
        %v1602 = vmul.f32 %v604, %v1601
        %v1603 = vmul.f32 %v605, %v1601
        %v1604 = vmul.f32 %v606, %v1601
        %v1608 = vrot.slane %v1602, 3
        %v1609 = vrot.slane %v1603, 3
        %v1610 = vsel %vm657, %v1608, %v1609
        %v1611 = vrot.slane %v1604, 3
        %v1612 = vsel %vm657, %v1609, %v1611
        %v1615 = vadd.f32 %v1598, %v1610
        %v1616 = vadd.f32 %v1599, %v1612
        %s1617 = sld [smem:[#allocation8 + $0x4d]]
        %v1618 = vstv %s1617
        %v1619 = vmul.f32 %v604, %v1618
        %v1620 = vmul.f32 %v605, %v1618
        %v1621 = vmul.f32 %v606, %v1618
        %v1625 = vrot.slane %v1619, 4
        %v1626 = vrot.slane %v1620, 4
        %v1627 = vsel %vm234, %v1625, %v1626
        %v1628 = vrot.slane %v1621, 4
        %v1629 = vsel %vm234, %v1626, %v1628
        %v1632 = vadd.f32 %v1615, %v1627
        %v1633 = vadd.f32 %v1616, %v1629
        %s1634 = sld [smem:[#allocation8 + $0x54]]
        %v1635 = vstv %s1634
        %v1636 = vmul.f32 %v604, %v1635
        %v1637 = vmul.f32 %v605, %v1635
        %v1638 = vmul.f32 %v606, %v1635
        %v1642 = vrot.slane %v1636, 5
        %v1643 = vrot.slane %v1637, 5
        %v1644 = vsel %vm692, %v1642, %v1643
        %v1645 = vrot.slane %v1638, 5
        %v1646 = vsel %vm692, %v1643, %v1645
        %v1649 = vadd.f32 %v1632, %v1644
        %v1650 = vadd.f32 %v1633, %v1646
        %s1651 = sld [smem:[#allocation8 + $0x5b]]
        %v1652 = vstv %s1651
        %v1653 = vmul.f32 %v604, %v1652
        %v1654 = vmul.f32 %v605, %v1652
        %v1655 = vmul.f32 %v606, %v1652
        %v1659 = vrot.slane %v1653, 6
        %v1660 = vrot.slane %v1654, 6
        %v1661 = vsel %vm710, %v1659, %v1660
        %v1662 = vrot.slane %v1655, 6
        %v1663 = vsel %vm710, %v1660, %v1662
        %v1666 = vadd.f32 %v1649, %v1661
        %v1667 = vadd.f32 %v1650, %v1663
        %s1668 = sld [smem:[#allocation8 + $0x32]]
        %v1669 = vstv %s1668
        %v1670 = vmul.f32 %v604, %v1669
        %v1671 = vmul.f32 %v605, %v1669
        %1674 = vrot.lane.b32.xlu0 %v1670, 127
        %v1675 = vpop.permute.xlu0 %1674
        %1676 = vrot.lane.b32.xlu0 %v1671, 127
        %v1677 = vpop.permute.xlu0 %1676
        %v1680 = vadd.f32 %v1666, %v1675
        %v1681 = vadd.f32 %v1667, %v1677
        %s1682 = sld [smem:[#allocation8 + $0x39]]
        %v1683 = vstv %s1682
        %v1684 = vmul.f32 %v604, %v1683
        %v1685 = vmul.f32 %v605, %v1683
        %v1686 = vmul.f32 %v606, %v1683
        %v1690 = vrot.slane %v1684, 1
        %v1691 = vrot.slane %v1685, 1
        %v1692 = vsel %vm621, %v1690, %v1691
        %v1693 = vrot.slane %v1686, 1
        %v1694 = vsel %vm621, %v1691, %v1693
        %1695 = vrot.lane.b32.xlu0 %v1692, 127
        %v1696 = vpop.permute.xlu0 %1695
        %1697 = vrot.lane.b32.xlu0 %v1694, 127
        %v1698 = vpop.permute.xlu0 %1697
        %v1701 = vadd.f32 %v1680, %v1696
        %v1702 = vadd.f32 %v1681, %v1698
        %s1703 = sld [smem:[#allocation8 + $0x40]]
        %v1704 = vstv %s1703
        %v1705 = vmul.f32 %v604, %v1704
        %v1706 = vmul.f32 %v605, %v1704
        %v1707 = vmul.f32 %v606, %v1704
        %v1711 = vrot.slane %v1705, 2
        %v1712 = vrot.slane %v1706, 2
        %v1713 = vsel %vm639, %v1711, %v1712
        %v1714 = vrot.slane %v1707, 2
        %v1715 = vsel %vm639, %v1712, %v1714
        %1716 = vrot.lane.b32.xlu0 %v1713, 127
        %v1717 = vpop.permute.xlu0 %1716
        %1718 = vrot.lane.b32.xlu0 %v1715, 127
        %v1719 = vpop.permute.xlu0 %1718
        %v1722 = vadd.f32 %v1701, %v1717
        %v1723 = vadd.f32 %v1702, %v1719
        %s1724 = sld [smem:[#allocation8 + $0x47]]
        %v1725 = vstv %s1724
        %v1726 = vmul.f32 %v604, %v1725
        %v1727 = vmul.f32 %v605, %v1725
        %v1728 = vmul.f32 %v606, %v1725
        %v1732 = vrot.slane %v1726, 3
        %v1733 = vrot.slane %v1727, 3
        %v1734 = vsel %vm657, %v1732, %v1733
        %v1735 = vrot.slane %v1728, 3
        %v1736 = vsel %vm657, %v1733, %v1735
        %1737 = vrot.lane.b32.xlu0 %v1734, 127
        %v1738 = vpop.permute.xlu0 %1737
        %1739 = vrot.lane.b32.xlu0 %v1736, 127
        %v1740 = vpop.permute.xlu0 %1739
        %v1743 = vadd.f32 %v1722, %v1738
        %v1744 = vadd.f32 %v1723, %v1740
        %s1745 = sld [smem:[#allocation8 + $0x4e]]
        %v1746 = vstv %s1745
        %v1747 = vmul.f32 %v604, %v1746
        %v1748 = vmul.f32 %v605, %v1746
        %v1749 = vmul.f32 %v606, %v1746
        %v1753 = vrot.slane %v1747, 4
        %v1754 = vrot.slane %v1748, 4
        %v1755 = vsel %vm234, %v1753, %v1754
        %v1756 = vrot.slane %v1749, 4
        %v1757 = vsel %vm234, %v1754, %v1756
        %1758 = vrot.lane.b32.xlu0 %v1755, 127
        %v1759 = vpop.permute.xlu0 %1758
        %1760 = vrot.lane.b32.xlu0 %v1757, 127
        %v1761 = vpop.permute.xlu0 %1760
        %v1764 = vadd.f32 %v1743, %v1759
        %v1765 = vadd.f32 %v1744, %v1761
        %s1766 = sld [smem:[#allocation8 + $0x55]]
        %v1767 = vstv %s1766
        %v1768 = vmul.f32 %v604, %v1767
        %v1769 = vmul.f32 %v605, %v1767
        %v1770 = vmul.f32 %v606, %v1767
        %v1774 = vrot.slane %v1768, 5
        %v1775 = vrot.slane %v1769, 5
        %v1776 = vsel %vm692, %v1774, %v1775
        %v1777 = vrot.slane %v1770, 5
        %v1778 = vsel %vm692, %v1775, %v1777
        %1779 = vrot.lane.b32.xlu0 %v1776, 127
        %v1780 = vpop.permute.xlu0 %1779
        %1781 = vrot.lane.b32.xlu0 %v1778, 127
        %v1782 = vpop.permute.xlu0 %1781
        %v1785 = vadd.f32 %v1764, %v1780
        %v1786 = vadd.f32 %v1765, %v1782
        %s1787 = sld [smem:[#allocation8 + $0x5c]]
        %v1788 = vstv %s1787
        %v1789 = vmul.f32 %v604, %v1788
        %v1790 = vmul.f32 %v605, %v1788
        %v1791 = vmul.f32 %v606, %v1788
        %v1795 = vrot.slane %v1789, 6
        %v1796 = vrot.slane %v1790, 6
        %v1797 = vsel %vm710, %v1795, %v1796
        %v1798 = vrot.slane %v1791, 6
        %v1799 = vsel %vm710, %v1796, %v1798
        %1800 = vrot.lane.b32.xlu0 %v1797, 127
        %v1801 = vpop.permute.xlu0 %1800
        %1802 = vrot.lane.b32.xlu0 %v1799, 127
        %v1803 = vpop.permute.xlu0 %1802
        %v1806 = vadd.f32 %v1785, %v1801
        %v1807 = vadd.f32 %v1786, %v1803
        %s1808 = sld [smem:[#allocation8 + $0x33]]
        %v1809 = vstv %s1808
        %v1810 = vmul.f32 %v604, %v1809
        %v1811 = vmul.f32 %v605, %v1809
        %1814 = vrot.lane.b32.xlu0 %v1810, 126
        %v1815 = vpop.permute.xlu0 %1814
        %1816 = vrot.lane.b32.xlu0 %v1811, 126
        %v1817 = vpop.permute.xlu0 %1816
        %v1820 = vadd.f32 %v1806, %v1815
        %v1821 = vadd.f32 %v1807, %v1817
        %s1822 = sld [smem:[#allocation8 + $0x3a]]
        %v1823 = vstv %s1822
        %v1824 = vmul.f32 %v604, %v1823
        %v1825 = vmul.f32 %v605, %v1823
        %v1826 = vmul.f32 %v606, %v1823
        %v1830 = vrot.slane %v1824, 1
        %v1831 = vrot.slane %v1825, 1
        %v1832 = vsel %vm621, %v1830, %v1831
        %v1833 = vrot.slane %v1826, 1
        %v1834 = vsel %vm621, %v1831, %v1833
        %1835 = vrot.lane.b32.xlu0 %v1832, 126
        %v1836 = vpop.permute.xlu0 %1835
        %1837 = vrot.lane.b32.xlu0 %v1834, 126
        %v1838 = vpop.permute.xlu0 %1837
        %v1841 = vadd.f32 %v1820, %v1836
        %v1842 = vadd.f32 %v1821, %v1838
        %s1843 = sld [smem:[#allocation8 + $0x41]]
        %v1844 = vstv %s1843
        %v1845 = vmul.f32 %v604, %v1844
        %v1846 = vmul.f32 %v605, %v1844
        %v1847 = vmul.f32 %v606, %v1844
        %v1851 = vrot.slane %v1845, 2
        %v1852 = vrot.slane %v1846, 2
        %v1853 = vsel %vm639, %v1851, %v1852
        %v1854 = vrot.slane %v1847, 2
        %v1855 = vsel %vm639, %v1852, %v1854
        %1856 = vrot.lane.b32.xlu0 %v1853, 126
        %v1857 = vpop.permute.xlu0 %1856
        %1858 = vrot.lane.b32.xlu0 %v1855, 126
        %v1859 = vpop.permute.xlu0 %1858
        %v1862 = vadd.f32 %v1841, %v1857
        %v1863 = vadd.f32 %v1842, %v1859
        %s1864 = sld [smem:[#allocation8 + $0x48]]
        %v1865 = vstv %s1864
        %v1866 = vmul.f32 %v604, %v1865
        %v1867 = vmul.f32 %v605, %v1865
        %v1868 = vmul.f32 %v606, %v1865
        %v1872 = vrot.slane %v1866, 3
        %v1873 = vrot.slane %v1867, 3
        %v1874 = vsel %vm657, %v1872, %v1873
        %v1875 = vrot.slane %v1868, 3
        %v1876 = vsel %vm657, %v1873, %v1875
        %1877 = vrot.lane.b32.xlu0 %v1874, 126
        %v1878 = vpop.permute.xlu0 %1877
        %1879 = vrot.lane.b32.xlu0 %v1876, 126
        %v1880 = vpop.permute.xlu0 %1879
        %v1883 = vadd.f32 %v1862, %v1878
        %v1884 = vadd.f32 %v1863, %v1880
        %s1885 = sld [smem:[#allocation8 + $0x4f]]
        %v1886 = vstv %s1885
        %v1887 = vmul.f32 %v604, %v1886
        %v1888 = vmul.f32 %v605, %v1886
        %v1889 = vmul.f32 %v606, %v1886
        %v1893 = vrot.slane %v1887, 4
        %v1894 = vrot.slane %v1888, 4
        %v1895 = vsel %vm234, %v1893, %v1894
        %v1896 = vrot.slane %v1889, 4
        %v1897 = vsel %vm234, %v1894, %v1896
        %1898 = vrot.lane.b32.xlu0 %v1895, 126
        %v1899 = vpop.permute.xlu0 %1898
        %1900 = vrot.lane.b32.xlu0 %v1897, 126
        %v1901 = vpop.permute.xlu0 %1900
        %v1904 = vadd.f32 %v1883, %v1899
        %v1905 = vadd.f32 %v1884, %v1901
        %s1906 = sld [smem:[#allocation8 + $0x56]]
        %v1907 = vstv %s1906
        %v1908 = vmul.f32 %v604, %v1907
        %v1909 = vmul.f32 %v605, %v1907
        %v1910 = vmul.f32 %v606, %v1907
        %v1914 = vrot.slane %v1908, 5
        %v1915 = vrot.slane %v1909, 5
        %v1916 = vsel %vm692, %v1914, %v1915
        %v1917 = vrot.slane %v1910, 5
        %v1918 = vsel %vm692, %v1915, %v1917
        %1919 = vrot.lane.b32.xlu0 %v1916, 126
        %v1920 = vpop.permute.xlu0 %1919
        %1921 = vrot.lane.b32.xlu0 %v1918, 126
        %v1922 = vpop.permute.xlu0 %1921
        %v1925 = vadd.f32 %v1904, %v1920
        %v1926 = vadd.f32 %v1905, %v1922
        %s1927 = sld [smem:[#allocation8 + $0x5d]]
        %v1928 = vstv %s1927
        %v1929 = vmul.f32 %v604, %v1928
        %v1930 = vmul.f32 %v605, %v1928
        %v1931 = vmul.f32 %v606, %v1928
        %v1935 = vrot.slane %v1929, 6
        %v1936 = vrot.slane %v1930, 6
        %v1937 = vsel %vm710, %v1935, %v1936
        %v1938 = vrot.slane %v1931, 6
        %v1939 = vsel %vm710, %v1936, %v1938
        %1940 = vrot.lane.b32.xlu0 %v1937, 126
        %v1941 = vpop.permute.xlu0 %1940
        %1942 = vrot.lane.b32.xlu0 %v1939, 126
        %v1943 = vpop.permute.xlu0 %1942
        %v1946 = vadd.f32 %v1925, %v1941
        %v1947 = vadd.f32 %v1926, %v1943
        %s1948 = sld [smem:[#allocation8 + $0x34]]
        %v1949 = vstv %s1948
        %v1950 = vmul.f32 %v604, %v1949
        %v1951 = vmul.f32 %v605, %v1949
        %1954 = vrot.lane.b32.xlu0 %v1950, 125
        %v1955 = vpop.permute.xlu0 %1954
        %1956 = vrot.lane.b32.xlu0 %v1951, 125
        %v1957 = vpop.permute.xlu0 %1956
        %v1960 = vadd.f32 %v1946, %v1955
        %v1961 = vadd.f32 %v1947, %v1957
        %s1962 = sld [smem:[#allocation8 + $0x3b]]
        %v1963 = vstv %s1962
        %v1964 = vmul.f32 %v604, %v1963
        %v1965 = vmul.f32 %v605, %v1963
        %v1966 = vmul.f32 %v606, %v1963
        %v1970 = vrot.slane %v1964, 1
        %v1971 = vrot.slane %v1965, 1
        %v1972 = vsel %vm621, %v1970, %v1971
        %v1973 = vrot.slane %v1966, 1
        %v1974 = vsel %vm621, %v1971, %v1973
        %1975 = vrot.lane.b32.xlu0 %v1972, 125
        %v1976 = vpop.permute.xlu0 %1975
        %1977 = vrot.lane.b32.xlu0 %v1974, 125
        %v1978 = vpop.permute.xlu0 %1977
        %v1981 = vadd.f32 %v1960, %v1976
        %v1982 = vadd.f32 %v1961, %v1978
        %s1983 = sld [smem:[#allocation8 + $0x42]]
        %v1984 = vstv %s1983
        %v1985 = vmul.f32 %v604, %v1984
        %v1986 = vmul.f32 %v605, %v1984
        %v1987 = vmul.f32 %v606, %v1984
        %v1991 = vrot.slane %v1985, 2
        %v1992 = vrot.slane %v1986, 2
        %v1993 = vsel %vm639, %v1991, %v1992
        %v1994 = vrot.slane %v1987, 2
        %v1995 = vsel %vm639, %v1992, %v1994
        %1996 = vrot.lane.b32.xlu0 %v1993, 125
        %v1997 = vpop.permute.xlu0 %1996
        %1998 = vrot.lane.b32.xlu0 %v1995, 125
        %v1999 = vpop.permute.xlu0 %1998
        %v2002 = vadd.f32 %v1981, %v1997
        %v2003 = vadd.f32 %v1982, %v1999
        %s2004 = sld [smem:[#allocation8 + $0x49]]
        %v2005 = vstv %s2004
        %v2006 = vmul.f32 %v604, %v2005
        %v2007 = vmul.f32 %v605, %v2005
        %v2008 = vmul.f32 %v606, %v2005
        %v2012 = vrot.slane %v2006, 3
        %v2013 = vrot.slane %v2007, 3
        %v2014 = vsel %vm657, %v2012, %v2013
        %v2015 = vrot.slane %v2008, 3
        %v2016 = vsel %vm657, %v2013, %v2015
        %2017 = vrot.lane.b32.xlu0 %v2014, 125
        %v2018 = vpop.permute.xlu0 %2017
        %2019 = vrot.lane.b32.xlu0 %v2016, 125
        %v2020 = vpop.permute.xlu0 %2019
        %v2023 = vadd.f32 %v2002, %v2018
        %v2024 = vadd.f32 %v2003, %v2020
        %s2025 = sld [smem:[#allocation8 + $0x50]]
        %v2026 = vstv %s2025
        %v2027 = vmul.f32 %v604, %v2026
        %v2028 = vmul.f32 %v605, %v2026
        %v2029 = vmul.f32 %v606, %v2026
        %v2033 = vrot.slane %v2027, 4
        %v2034 = vrot.slane %v2028, 4
        %v2035 = vsel %vm234, %v2033, %v2034
        %v2036 = vrot.slane %v2029, 4
        %v2037 = vsel %vm234, %v2034, %v2036
        %2038 = vrot.lane.b32.xlu0 %v2035, 125
        %v2039 = vpop.permute.xlu0 %2038
        %2040 = vrot.lane.b32.xlu0 %v2037, 125
        %v2041 = vpop.permute.xlu0 %2040
        %v2044 = vadd.f32 %v2023, %v2039
        %v2045 = vadd.f32 %v2024, %v2041
        %s2046 = sld [smem:[#allocation8 + $0x57]]
        %v2047 = vstv %s2046
        %v2048 = vmul.f32 %v604, %v2047
        %v2049 = vmul.f32 %v605, %v2047
        %v2050 = vmul.f32 %v606, %v2047
        %v2054 = vrot.slane %v2048, 5
        %v2055 = vrot.slane %v2049, 5
        %v2056 = vsel %vm692, %v2054, %v2055
        %v2057 = vrot.slane %v2050, 5
        %v2058 = vsel %vm692, %v2055, %v2057
        %2059 = vrot.lane.b32.xlu0 %v2056, 125
        %v2060 = vpop.permute.xlu0 %2059
        %2061 = vrot.lane.b32.xlu0 %v2058, 125
        %v2062 = vpop.permute.xlu0 %2061
        %v2065 = vadd.f32 %v2044, %v2060
        %v2066 = vadd.f32 %v2045, %v2062
        %s2067 = sld [smem:[#allocation8 + $0x5e]]
        %v2068 = vstv %s2067
        %v2069 = vmul.f32 %v604, %v2068
        %v2070 = vmul.f32 %v605, %v2068
        %v2071 = vmul.f32 %v606, %v2068
        %v2075 = vrot.slane %v2069, 6
        %v2076 = vrot.slane %v2070, 6
        %v2077 = vsel %vm710, %v2075, %v2076
        %v2078 = vrot.slane %v2071, 6
        %v2079 = vsel %vm710, %v2076, %v2078
        %2080 = vrot.lane.b32.xlu0 %v2077, 125
        %v2081 = vpop.permute.xlu0 %2080
        %2082 = vrot.lane.b32.xlu0 %v2079, 125
        %v2083 = vpop.permute.xlu0 %2082
        %v2086 = vadd.f32 %v2065, %v2081
        %v2087 = vadd.f32 %v2066, %v2083
        %s2088 = sld [smem:[#allocation8 + $0x35]]
        %v2089 = vstv %s2088
        %v2090 = vmul.f32 %v604, %v2089
        %v2091 = vmul.f32 %v605, %v2089
        %2094 = vrot.lane.b32.xlu0 %v2090, 124
        %v2095 = vpop.permute.xlu0 %2094
        %2096 = vrot.lane.b32.xlu0 %v2091, 124
        %v2097 = vpop.permute.xlu0 %2096
        %v2100 = vadd.f32 %v2086, %v2095
        %v2101 = vadd.f32 %v2087, %v2097
        %s2102 = sld [smem:[#allocation8 + $0x3c]]
        %v2103 = vstv %s2102
        %v2104 = vmul.f32 %v604, %v2103
        %v2105 = vmul.f32 %v605, %v2103
        %v2106 = vmul.f32 %v606, %v2103
        %v2110 = vrot.slane %v2104, 1
        %v2111 = vrot.slane %v2105, 1
        %v2112 = vsel %vm621, %v2110, %v2111
        %v2113 = vrot.slane %v2106, 1
        %v2114 = vsel %vm621, %v2111, %v2113
        %2115 = vrot.lane.b32.xlu0 %v2112, 124
        %v2116 = vpop.permute.xlu0 %2115
        %2117 = vrot.lane.b32.xlu0 %v2114, 124
        %v2118 = vpop.permute.xlu0 %2117
        %v2121 = vadd.f32 %v2100, %v2116
        %v2122 = vadd.f32 %v2101, %v2118
        %s2123 = sld [smem:[#allocation8 + $0x43]]
        %v2124 = vstv %s2123
        %v2125 = vmul.f32 %v604, %v2124
        %v2126 = vmul.f32 %v605, %v2124
        %v2127 = vmul.f32 %v606, %v2124
        %v2131 = vrot.slane %v2125, 2
        %v2132 = vrot.slane %v2126, 2
        %v2133 = vsel %vm639, %v2131, %v2132
        %v2134 = vrot.slane %v2127, 2
        %v2135 = vsel %vm639, %v2132, %v2134
        %2136 = vrot.lane.b32.xlu0 %v2133, 124
        %v2137 = vpop.permute.xlu0 %2136
        %2138 = vrot.lane.b32.xlu0 %v2135, 124
        %v2139 = vpop.permute.xlu0 %2138
        %v2142 = vadd.f32 %v2121, %v2137
        %v2143 = vadd.f32 %v2122, %v2139
        %s2144 = sld [smem:[#allocation8 + $0x4a]]
        %v2145 = vstv %s2144
        %v2146 = vmul.f32 %v604, %v2145
        %v2147 = vmul.f32 %v605, %v2145
        %v2148 = vmul.f32 %v606, %v2145
        %v2152 = vrot.slane %v2146, 3
        %v2153 = vrot.slane %v2147, 3
        %v2154 = vsel %vm657, %v2152, %v2153
        %v2155 = vrot.slane %v2148, 3
        %v2156 = vsel %vm657, %v2153, %v2155
        %2157 = vrot.lane.b32.xlu0 %v2154, 124
        %v2158 = vpop.permute.xlu0 %2157
        %2159 = vrot.lane.b32.xlu0 %v2156, 124
        %v2160 = vpop.permute.xlu0 %2159
        %v2163 = vadd.f32 %v2142, %v2158
        %v2164 = vadd.f32 %v2143, %v2160
        %s2165 = sld [smem:[#allocation8 + $0x51]]
        %v2166 = vstv %s2165
        %v2167 = vmul.f32 %v604, %v2166
        %v2168 = vmul.f32 %v605, %v2166
        %v2169 = vmul.f32 %v606, %v2166
        %v2173 = vrot.slane %v2167, 4
        %v2174 = vrot.slane %v2168, 4
        %v2175 = vsel %vm234, %v2173, %v2174
        %v2176 = vrot.slane %v2169, 4
        %v2177 = vsel %vm234, %v2174, %v2176
        %2178 = vrot.lane.b32.xlu0 %v2175, 124
        %v2179 = vpop.permute.xlu0 %2178
        %2180 = vrot.lane.b32.xlu0 %v2177, 124
        %v2181 = vpop.permute.xlu0 %2180
        %v2184 = vadd.f32 %v2163, %v2179
        %v2185 = vadd.f32 %v2164, %v2181
        %s2186 = sld [smem:[#allocation8 + $0x58]]
        %v2187 = vstv %s2186
        %v2188 = vmul.f32 %v604, %v2187
        %v2189 = vmul.f32 %v605, %v2187
        %v2190 = vmul.f32 %v606, %v2187
        %v2194 = vrot.slane %v2188, 5
        %v2195 = vrot.slane %v2189, 5
        %v2196 = vsel %vm692, %v2194, %v2195
        %v2197 = vrot.slane %v2190, 5
        %v2198 = vsel %vm692, %v2195, %v2197
        %2199 = vrot.lane.b32.xlu0 %v2196, 124
        %v2200 = vpop.permute.xlu0 %2199
        %2201 = vrot.lane.b32.xlu0 %v2198, 124
        %v2202 = vpop.permute.xlu0 %2201
        %v2205 = vadd.f32 %v2184, %v2200
        %v2206 = vadd.f32 %v2185, %v2202
        %s2207 = sld [smem:[#allocation8 + $0x5f]]
        %v2208 = vstv %s2207
        %v2209 = vmul.f32 %v604, %v2208
        %v2210 = vmul.f32 %v605, %v2208
        %v2211 = vmul.f32 %v606, %v2208
        %v2215 = vrot.slane %v2209, 6
        %v2216 = vrot.slane %v2210, 6
        %v2217 = vsel %vm710, %v2215, %v2216
        %v2218 = vrot.slane %v2211, 6
        %v2219 = vsel %vm710, %v2216, %v2218
        %2220 = vrot.lane.b32.xlu0 %v2217, 124
        %v2221 = vpop.permute.xlu0 %2220
        %2222 = vrot.lane.b32.xlu0 %v2219, 124
        %v2223 = vpop.permute.xlu0 %2222
        %v2226 = vadd.f32 %v2205, %v2221
        %v2227 = vadd.f32 %v2206, %v2223
        %s2228 = sld [smem:[#allocation8 + $0x36]]
        %v2229 = vstv %s2228
        %v2230 = vmul.f32 %v604, %v2229
        %v2231 = vmul.f32 %v605, %v2229
        %2234 = vrot.lane.b32.xlu0 %v2230, 123
        %v2235 = vpop.permute.xlu0 %2234
        %2236 = vrot.lane.b32.xlu0 %v2231, 123
        %v2237 = vpop.permute.xlu0 %2236
        %v2240 = vadd.f32 %v2226, %v2235
        %v2241 = vadd.f32 %v2227, %v2237
        %s2242 = sld [smem:[#allocation8 + $0x3d]]
        %v2243 = vstv %s2242
        %v2244 = vmul.f32 %v604, %v2243
        %v2245 = vmul.f32 %v605, %v2243
        %v2246 = vmul.f32 %v606, %v2243
        %v2250 = vrot.slane %v2244, 1
        %v2251 = vrot.slane %v2245, 1
        %v2252 = vsel %vm621, %v2250, %v2251
        %v2253 = vrot.slane %v2246, 1
        %v2254 = vsel %vm621, %v2251, %v2253
        %2255 = vrot.lane.b32.xlu0 %v2252, 123
        %v2256 = vpop.permute.xlu0 %2255
        %2257 = vrot.lane.b32.xlu0 %v2254, 123
        %v2258 = vpop.permute.xlu0 %2257
        %v2261 = vadd.f32 %v2240, %v2256
        %v2262 = vadd.f32 %v2241, %v2258
        %s2263 = sld [smem:[#allocation8 + $0x44]]
        %v2264 = vstv %s2263
        %v2265 = vmul.f32 %v604, %v2264
        %v2266 = vmul.f32 %v605, %v2264
        %v2267 = vmul.f32 %v606, %v2264
        %v2271 = vrot.slane %v2265, 2
        %v2272 = vrot.slane %v2266, 2
        %v2273 = vsel %vm639, %v2271, %v2272
        %v2274 = vrot.slane %v2267, 2
        %v2275 = vsel %vm639, %v2272, %v2274
        %2276 = vrot.lane.b32.xlu0 %v2273, 123
        %v2277 = vpop.permute.xlu0 %2276
        %2278 = vrot.lane.b32.xlu0 %v2275, 123
        %v2279 = vpop.permute.xlu0 %2278
        %v2282 = vadd.f32 %v2261, %v2277
        %v2283 = vadd.f32 %v2262, %v2279
        %s2284 = sld [smem:[#allocation8 + $0x4b]]
        %v2285 = vstv %s2284
        %v2286 = vmul.f32 %v604, %v2285
        %v2287 = vmul.f32 %v605, %v2285
        %v2288 = vmul.f32 %v606, %v2285
        %v2292 = vrot.slane %v2286, 3
        %v2293 = vrot.slane %v2287, 3
        %v2294 = vsel %vm657, %v2292, %v2293
        %v2295 = vrot.slane %v2288, 3
        %v2296 = vsel %vm657, %v2293, %v2295
        %2297 = vrot.lane.b32.xlu0 %v2294, 123
        %v2298 = vpop.permute.xlu0 %2297
        %2299 = vrot.lane.b32.xlu0 %v2296, 123
        %v2300 = vpop.permute.xlu0 %2299
        %v2303 = vadd.f32 %v2282, %v2298
        %v2304 = vadd.f32 %v2283, %v2300
        %s2305 = sld [smem:[#allocation8 + $0x52]]
        %v2306 = vstv %s2305
        %v2307 = vmul.f32 %v604, %v2306
        %v2308 = vmul.f32 %v605, %v2306
        %v2309 = vmul.f32 %v606, %v2306
        %v2313 = vrot.slane %v2307, 4
        %v2314 = vrot.slane %v2308, 4
        %v2315 = vsel %vm234, %v2313, %v2314
        %v2316 = vrot.slane %v2309, 4
        %v2317 = vsel %vm234, %v2314, %v2316
        %2318 = vrot.lane.b32.xlu0 %v2315, 123
        %v2319 = vpop.permute.xlu0 %2318
        %2320 = vrot.lane.b32.xlu0 %v2317, 123
        %v2321 = vpop.permute.xlu0 %2320
        %v2324 = vadd.f32 %v2303, %v2319
        %v2325 = vadd.f32 %v2304, %v2321
        %s2326 = sld [smem:[#allocation8 + $0x59]]
        %v2327 = vstv %s2326
        %v2328 = vmul.f32 %v604, %v2327
        %v2329 = vmul.f32 %v605, %v2327
        %v2330 = vmul.f32 %v606, %v2327
        %v2334 = vrot.slane %v2328, 5
        %v2335 = vrot.slane %v2329, 5
        %v2336 = vsel %vm692, %v2334, %v2335
        %v2337 = vrot.slane %v2330, 5
        %v2338 = vsel %vm692, %v2335, %v2337
        %2339 = vrot.lane.b32.xlu0 %v2336, 123
        %v2340 = vpop.permute.xlu0 %2339
        %2341 = vrot.lane.b32.xlu0 %v2338, 123
        %v2342 = vpop.permute.xlu0 %2341
        %v2345 = vadd.f32 %v2324, %v2340
        %v2346 = vadd.f32 %v2325, %v2342
        %s2347 = sld [smem:[#allocation8 + $0x60]]
        %v2348 = vstv %s2347
        %v2349 = vmul.f32 %v604, %v2348
        %v2350 = vmul.f32 %v605, %v2348
        %v2351 = vmul.f32 %v606, %v2348
        %v2355 = vrot.slane %v2349, 6
        %v2356 = vrot.slane %v2350, 6
        %v2357 = vsel %vm710, %v2355, %v2356
        %v2358 = vrot.slane %v2351, 6
        %v2359 = vsel %vm710, %v2356, %v2358
        %2360 = vrot.lane.b32.xlu0 %v2357, 123
        %v2361 = vpop.permute.xlu0 %2360
        %2362 = vrot.lane.b32.xlu0 %v2359, 123
        %v2363 = vpop.permute.xlu0 %2362
        %v2366 = vadd.f32 %v2345, %v2361
        %v2367 = vadd.f32 %v2346, %v2363
        %s2368 = sld [smem:[#allocation8 + $0x37]]
        %v2369 = vstv %s2368
        %v2370 = vmul.f32 %v604, %v2369
        %v2371 = vmul.f32 %v605, %v2369
        %2374 = vrot.lane.b32.xlu0 %v2370, 122
        %v2375 = vpop.permute.xlu0 %2374
        %2376 = vrot.lane.b32.xlu0 %v2371, 122
        %v2377 = vpop.permute.xlu0 %2376
        %v2380 = vadd.f32 %v2366, %v2375
        %v2381 = vadd.f32 %v2367, %v2377
        %s2382 = sld [smem:[#allocation8 + $0x3e]]
        %v2383 = vstv %s2382
        %v2384 = vmul.f32 %v604, %v2383
        %v2385 = vmul.f32 %v605, %v2383
        %v2386 = vmul.f32 %v606, %v2383
        %v2390 = vrot.slane %v2384, 1
        %v2391 = vrot.slane %v2385, 1
        %v2392 = vsel %vm621, %v2390, %v2391
        %v2393 = vrot.slane %v2386, 1
        %v2394 = vsel %vm621, %v2391, %v2393
        %2395 = vrot.lane.b32.xlu0 %v2392, 122
        %v2396 = vpop.permute.xlu0 %2395
        %2397 = vrot.lane.b32.xlu0 %v2394, 122
        %v2398 = vpop.permute.xlu0 %2397
        %v2401 = vadd.f32 %v2380, %v2396
        %v2402 = vadd.f32 %v2381, %v2398
        %s2403 = sld [smem:[#allocation8 + $0x45]]
        %v2404 = vstv %s2403
        %v2405 = vmul.f32 %v604, %v2404
        %v2406 = vmul.f32 %v605, %v2404
        %v2407 = vmul.f32 %v606, %v2404
        %v2411 = vrot.slane %v2405, 2
        %v2412 = vrot.slane %v2406, 2
        %v2413 = vsel %vm639, %v2411, %v2412
        %v2414 = vrot.slane %v2407, 2
        %v2415 = vsel %vm639, %v2412, %v2414
        %2416 = vrot.lane.b32.xlu0 %v2413, 122
        %v2417 = vpop.permute.xlu0 %2416
        %2418 = vrot.lane.b32.xlu0 %v2415, 122
        %v2419 = vpop.permute.xlu0 %2418
        %v2422 = vadd.f32 %v2401, %v2417
        %v2423 = vadd.f32 %v2402, %v2419
        %s2424 = sld [smem:[#allocation8 + $0x4c]]
        %v2425 = vstv %s2424
        %v2426 = vmul.f32 %v604, %v2425
        %v2427 = vmul.f32 %v605, %v2425
        %v2428 = vmul.f32 %v606, %v2425
        %v2432 = vrot.slane %v2426, 3
        %v2433 = vrot.slane %v2427, 3
        %v2434 = vsel %vm657, %v2432, %v2433
        %v2435 = vrot.slane %v2428, 3
        %v2436 = vsel %vm657, %v2433, %v2435
        %2437 = vrot.lane.b32.xlu0 %v2434, 122
        %v2438 = vpop.permute.xlu0 %2437
        %2439 = vrot.lane.b32.xlu0 %v2436, 122
        %v2440 = vpop.permute.xlu0 %2439
        %v2443 = vadd.f32 %v2422, %v2438
        %v2444 = vadd.f32 %v2423, %v2440
        %s2445 = sld [smem:[#allocation8 + $0x53]]
        %v2446 = vstv %s2445
        %v2447 = vmul.f32 %v604, %v2446
        %v2448 = vmul.f32 %v605, %v2446
        %v2449 = vmul.f32 %v606, %v2446
        %v2453 = vrot.slane %v2447, 4
        %v2454 = vrot.slane %v2448, 4
        %v2455 = vsel %vm234, %v2453, %v2454
        %v2456 = vrot.slane %v2449, 4
        %v2457 = vsel %vm234, %v2454, %v2456
        %2458 = vrot.lane.b32.xlu0 %v2455, 122
        %v2459 = vpop.permute.xlu0 %2458
        %2460 = vrot.lane.b32.xlu0 %v2457, 122
        %v2461 = vpop.permute.xlu0 %2460
        %v2464 = vadd.f32 %v2443, %v2459
        %v2465 = vadd.f32 %v2444, %v2461
        %s2466 = sld [smem:[#allocation8 + $0x5a]]
        %v2467 = vstv %s2466
        %v2468 = vmul.f32 %v604, %v2467
        %v2469 = vmul.f32 %v605, %v2467
        %v2470 = vmul.f32 %v606, %v2467
        %v2474 = vrot.slane %v2468, 5
        %v2475 = vrot.slane %v2469, 5
        %v2476 = vsel %vm692, %v2474, %v2475
        %v2477 = vrot.slane %v2470, 5
        %v2478 = vsel %vm692, %v2475, %v2477
        %2479 = vrot.lane.b32.xlu0 %v2476, 122
        %v2480 = vpop.permute.xlu0 %2479
        %2481 = vrot.lane.b32.xlu0 %v2478, 122
        %v2482 = vpop.permute.xlu0 %2481
        %v2485 = vadd.f32 %v2464, %v2480
        %v2486 = vadd.f32 %v2465, %v2482
        %s2487 = sld [smem:[#allocation8 + $0x61]]
        %v2488 = vstv %s2487
        %v2489 = vmul.f32 %v604, %v2488
        %v2490 = vmul.f32 %v605, %v2488
        %v2491 = vmul.f32 %v606, %v2488
        %v2495 = vrot.slane %v2489, 6
        %v2496 = vrot.slane %v2490, 6
        %v2497 = vsel %vm710, %v2495, %v2496
        %v2498 = vrot.slane %v2491, 6
        %v2499 = vsel %vm710, %v2496, %v2498
        %2500 = vrot.lane.b32.xlu0 %v2497, 122
        %v2501 = vpop.permute.xlu0 %2500
        %2502 = vrot.lane.b32.xlu0 %v2499, 122
        %v2503 = vpop.permute.xlu0 %2502
        %v2506 = vadd.f32 %v2485, %v2501
        %v2507 = vadd.f32 %v2486, %v2503
        %v2508 = vxor.u32 %v2506, 2147483648
        %v2509 = vxor.u32 %v2507, 2147483648
        %v2510 = vmul.f32 %v2508, 1.442695
        %v2511 = vpow.pop %v2510
        %v2512 = vmul.f32 %v2509, 1.442695
        %v2513 = vpow.pop %v2512
        %v2514 = vadd.f32 %v2511, 1.0
        %v2515 = vadd.f32 %v2513, 1.0
        %v2516 = vrcp.pop %v2514
        %v2517 = vmul.f32 1.0, %v2516
        %v2518 = vrcp.pop %v2515
        %v2519 = vmul.f32 1.0, %v2518
        %v2520 = vlaneseq
        %vm2521 = vcmp.ge.s32.totalorder %v2520, 0
        %vm2522 = vcmp.lt.s32.totalorder %v2520, 16
        %vm2523 = vmand %vm2521, %vm2522
        %2524 = vst.msk [vmem:[#allocation3] sm:$0x1] %vm2523, %v2517
        %v2527 = vunpack.c.l.s4 1966171168
        %v2528 = vunpack.c.0.s8 %v2527
        %v2529 = vlaneseq
        %v2530 = vshrl.u32 %v2529, 7
        %v2531 = vsub.s32 %v2528, %v2530
        %v2532 = vrot.slane %v2517, %v2531
        %v2533 = vcombine.high %v2532, %v2532
        %v2535 = vunpack.c.l.s4 1966171168
        %v2536 = vunpack.c.0.s8 %v2535
        %v2537 = vlaneseq
        %v2538 = vshrl.u32 %v2537, 7
        %v2539 = vsub.s32 %v2536, %v2538
        %v2540 = vrot.slane %v2532, %v2539
        %v2542 = vunpack.c.l.s4 1966171168
        %v2543 = vunpack.c.0.s8 %v2542
        %v2544 = vlaneseq
        %v2545 = vshrl.u32 %v2544, 7
        %v2546 = vsub.s32 %v2543, %v2545
        %v2547 = vrot.slane %v2533, %v2546
        %2548 = vrot.lane.b32.xlu0 %v2547, 16
        %v2549 = vpop.permute.xlu0 %2548
        %vm2551 = vcmp.ge.s32.totalorder %v2520, 16
        %vm2552 = vcmp.lt.s32.totalorder %v2520, 32
        %vm2553 = vmand %vm2551, %vm2552
        %2554 = vst.msk [vmem:[#allocation3] sm:$0x1] %vm2553, %v2549
        %v2555 = vcombine.high %v2540, %v2540
        %2556 = vrot.lane.b32.xlu0 %v2555, 32
        %v2557 = vpop.permute.xlu0 %2556
        %vm2559 = vcmp.ge.s32.totalorder %v2520, 32
        %vm2560 = vcmp.lt.s32.totalorder %v2520, 48
        %vm2561 = vmand %vm2559, %vm2560
        %2562 = vst.msk [vmem:[#allocation3] sm:$0x1] %vm2561, %v2557
        %v2563 = vcombine.high %v2547, %v2547
        %2564 = vrot.lane.b32.xlu0 %v2563, 48
        %v2565 = vpop.permute.xlu0 %2564
        %vm2567 = vcmp.ge.s32.totalorder %v2520, 48
        %vm2568 = vcmp.lt.s32.totalorder %v2520, 64
        %vm2569 = vmand %vm2567, %vm2568
        %2570 = vst.msk [vmem:[#allocation3] sm:$0x1] %vm2569, %v2565
        %v2571 = vcombine.high %v2517, %v2517
        %v2573 = vunpack.c.l.s4 1966171168
        %v2574 = vunpack.c.0.s8 %v2573
        %v2575 = vlaneseq
        %v2576 = vshrl.u32 %v2575, 7
        %v2577 = vsub.s32 %v2574, %v2576
        %v2578 = vrot.slane %v2571, %v2577
        %v2580 = vunpack.c.l.s4 1966171168
        %v2581 = vunpack.c.0.s8 %v2580
        %v2582 = vlaneseq
        %v2583 = vshrl.u32 %v2582, 7
        %v2584 = vsub.s32 %v2581, %v2583
        %v2585 = vrot.slane %v2578, %v2584
        %2586 = vrot.lane.b32.xlu0 %v2585, 64
        %v2587 = vpop.permute.xlu0 %2586
        %vm2589 = vcmp.ge.s32.totalorder %v2520, 64
        %vm2590 = vcmp.lt.s32.totalorder %v2520, 80
        %vm2591 = vmand %vm2589, %vm2590
        %2592 = vst.msk [vmem:[#allocation3] sm:$0x1] %vm2591, %v2587
        %v2593 = vcombine.high %v2578, %v2578
        %v2595 = vunpack.c.l.s4 1966171168
        %v2596 = vunpack.c.0.s8 %v2595
        %v2597 = vlaneseq
        %v2598 = vshrl.u32 %v2597, 7
        %v2599 = vsub.s32 %v2596, %v2598
        %v2600 = vrot.slane %v2593, %v2599
        %2601 = vrot.lane.b32.xlu0 %v2600, 80
        %v2602 = vpop.permute.xlu0 %2601
        %vm2604 = vcmp.ge.s32.totalorder %v2520, 80
        %vm2605 = vcmp.lt.s32.totalorder %v2520, 96
        %vm2606 = vmand %vm2604, %vm2605
        %2607 = vst.msk [vmem:[#allocation3] sm:$0x1] %vm2606, %v2602
        %v2608 = vcombine.high %v2585, %v2585
        %2609 = vrot.lane.b32.xlu0 %v2608, 96
        %v2610 = vpop.permute.xlu0 %2609
        %vm2612 = vcmp.ge.s32.totalorder %v2520, 96
        %vm2613 = vcmp.lt.s32.totalorder %v2520, 112
        %vm2614 = vmand %vm2612, %vm2613
        %2615 = vst.msk [vmem:[#allocation3] sm:$0x1] %vm2614, %v2610
        %v2616 = vcombine.high %v2600, %v2600
        %2617 = vrot.lane.b32.xlu0 %v2616, 112
        %v2618 = vpop.permute.xlu0 %2617
        %vm2620 = vcmp.ge.s32.totalorder %v2520, 112
        %vm2621 = vcmp.lt.s32.totalorder %v2520, 128
        %vm2622 = vmand %vm2620, %vm2621
        %2623 = vst.msk [vmem:[#allocation3] sm:$0x1] %vm2622, %v2618
        %2624 = vst.msk [vmem:[#allocation3 + $0x1] sm:$0x1] %vm2523, %v2519
        %v2627 = vunpack.c.l.s4 1966171168
        %v2628 = vunpack.c.0.s8 %v2627
        %v2629 = vlaneseq
        %v2630 = vshrl.u32 %v2629, 7
        %v2631 = vsub.s32 %v2628, %v2630
        %v2632 = vrot.slane %v2519, %v2631
        %v2633 = vcombine.high %v2632, %v2632
        %v2635 = vunpack.c.l.s4 1966171168
        %v2636 = vunpack.c.0.s8 %v2635
        %v2637 = vlaneseq
        %v2638 = vshrl.u32 %v2637, 7
        %v2639 = vsub.s32 %v2636, %v2638
        %v2640 = vrot.slane %v2632, %v2639
        %v2642 = vunpack.c.l.s4 1966171168
        %v2643 = vunpack.c.0.s8 %v2642
        %v2644 = vlaneseq
        %v2645 = vshrl.u32 %v2644, 7
        %v2646 = vsub.s32 %v2643, %v2645
        %v2647 = vrot.slane %v2633, %v2646
        %2648 = vrot.lane.b32.xlu0 %v2647, 16
        %v2649 = vpop.permute.xlu0 %2648
        %2651 = vst.msk [vmem:[#allocation3 + $0x1] sm:$0x1] %vm2553, %v2649
        %v2652 = vcombine.high %v2640, %v2640
        %2653 = vrot.lane.b32.xlu0 %v2652, 32
        %v2654 = vpop.permute.xlu0 %2653
        %2656 = vst.msk [vmem:[#allocation3 + $0x1] sm:$0x1] %vm2561, %v2654
        %v2657 = vcombine.high %v2647, %v2647
        %2658 = vrot.lane.b32.xlu0 %v2657, 48
        %v2659 = vpop.permute.xlu0 %2658
        %2661 = vst.msk [vmem:[#allocation3 + $0x1] sm:$0x1] %vm2569, %v2659
        %v2662 = vcombine.high %v2519, %v2519
        %v2664 = vunpack.c.l.s4 1966171168
        %v2665 = vunpack.c.0.s8 %v2664
        %v2666 = vlaneseq
        %v2667 = vshrl.u32 %v2666, 7
        %v2668 = vsub.s32 %v2665, %v2667
        %v2669 = vrot.slane %v2662, %v2668
        %v2671 = vunpack.c.l.s4 1966171168
        %v2672 = vunpack.c.0.s8 %v2671
        %v2673 = vlaneseq
        %v2674 = vshrl.u32 %v2673, 7
        %v2675 = vsub.s32 %v2672, %v2674
        %v2676 = vrot.slane %v2669, %v2675
        %2677 = vrot.lane.b32.xlu0 %v2676, 64
        %v2678 = vpop.permute.xlu0 %2677
        %2680 = vst.msk [vmem:[#allocation3 + $0x1] sm:$0x1] %vm2591, %v2678
        %v2681 = vcombine.high %v2669, %v2669
        %v2683 = vunpack.c.l.s4 1966171168
        %v2684 = vunpack.c.0.s8 %v2683
        %v2685 = vlaneseq
        %v2686 = vshrl.u32 %v2685, 7
        %v2687 = vsub.s32 %v2684, %v2686
        %v2688 = vrot.slane %v2681, %v2687
        %2689 = vrot.lane.b32.xlu0 %v2688, 80
        %v2690 = vpop.permute.xlu0 %2689
        %2692 = vst.msk [vmem:[#allocation3 + $0x1] sm:$0x1] %vm2606, %v2690
        %v2693 = vcombine.high %v2676, %v2676
        %2694 = vrot.lane.b32.xlu0 %v2693, 96
        %v2695 = vpop.permute.xlu0 %2694
        %2697 = vst.msk [vmem:[#allocation3 + $0x1] sm:$0x1] %vm2614, %v2695
        %v2698 = vcombine.high %v2688, %v2688
        %2699 = vrot.lane.b32.xlu0 %v2698, 112
        %v2700 = vpop.permute.xlu0 %2699
        %2702 = vst.msk [vmem:[#allocation3 + $0x1] sm:$0x1] %vm2622, %v2700
        %v2703 = vld [vmem:[#allocation3] sm:$0x3]
        %v2705 = vlaneseq
        %v2706 = vshrl.u32 %v2705, 7
        %v2707 = vsub.s32 0, %v2706
        %v2708 = vrot.slane %v2703, %v2707
        %v2709 = vlaneseq
        %v2710 = vshrl.u32 %v2709, 7
        %v2711 = vsub.s32 1, %v2710
        %v2712 = vrot.slane %v2703, %v2711
        %v2713 = vcombine.low %v2708, %v2712
        %v2715 = vmul.f32 %v432, %v2713
        %2716 = vst [vmem:[%s227] sm:$0xff] %v2715
        %s2717 = sand.u32 %s119, 1
        %s2718 = scalar_lea.sflag [#allocation6], %s2717
        %s2719 = sand.u32 %s119, 1
        %s2720 = smul.addr %s2719, 8
        %s2721 = scalar_lea.vmem [#allocation9], %s2720
        // Predicated region
        $region45: #{tpu_custom_call.1} parent=35 // pred_check
          %p2722 = pneg %p129
        $region46: #{tpu_custom_call.1} parent=35 // pred_check_branch
          %2724 = sbr.rel (%p2722) target = $region48
        $region47: #{tpu_custom_call.1} parent=35 // pred_region
          %s2726 = ssub.s32 128, 128
          %2727 = vsyncadd %s2718, %s2726
          %s2728 = smul.addr %s22, 2
          %s2729 = smul.addr %s2728, 64
          %s2730 = scalar_lea.hbm %s4, %s2729
          %s2732 = sshll.u32 %s2721, 4
          %s2733 = int_to_ptr.vmem [resolvable:$true] %s2732
          %2735 = dma.vmem_to_hbm [thread:$0]  %s2733, 128, %s2730, %s2718
        $region48: #{tpu_custom_call.1} parent=35 // pred_fallthru
          _
      $region36: #{tpu_custom_call.1} parent=5 // pred_fallthru
        _
      %p2736 = scmp.le.s32.totalorder 2, %s17
      // Predicated region
      $region49: #{tpu_custom_call.1} parent=5 // pred_check
        %p2737 = pneg %p2736
      $region50: #{tpu_custom_call.1} parent=5 // pred_check_branch
        %2739 = sbr.rel (%p2737) target = $region52
      $region51: #{tpu_custom_call.1} parent=5 // pred_region
        %s2740 = ssub.s32 %s17, 2
        // Predicated region
        $region53: #{tpu_custom_call.1} parent=51 // pred_check
          %p2741 = pneg %p135
        $region54: #{tpu_custom_call.1} parent=51 // pred_check_branch
          %2743 = sbr.rel (%p2741) target = $region56
        $region55: #{tpu_custom_call.1} parent=51 // pred_region
          %s2744 = sand.u32 %s120, 1
          %s2745 = scalar_lea.sflag [#allocation6], %s2744
          %s2746 = sand.u32 %s120, 1
          %s2747 = smul.addr %s2746, 8
          %s2748 = scalar_lea.vmem [#allocation9], %s2747
          %2749 = dma.done %s2745, 128
        $region56: #{tpu_custom_call.1} parent=51 // pred_fallthru
          _
      $region52: #{tpu_custom_call.1} parent=5 // pred_fallthru
        _
    $region6: #{tpu_custom_call.1} parent=1 // loop_footer
      %s21 = sadd.s32 1, %s17
    $region7: #{tpu_custom_call.1} parent=1 // loop_footer_branch
      %16 = sbr.rel target = $region3
    $region8: #{tpu_custom_call.1} parent=1 // loop_exit
      _
    %2750 = vsyncpa [#allocation5], 1
    %s2751 = scalar_lea.sflag [#allocation5], 1
    %2752 = vsyncpa %s2751, 1
    %2753 = vsyncpa [#allocation6], 1
    %s2754 = scalar_lea.sflag [#allocation6], 1
    %2755 = vsyncpa %s2754, 1
    %2756 = vsyncpa [#allocation7], 1
    %s2757 = scalar_lea.sflag [#allocation7], 1
    %2758 = vsyncpa %s2757, 1

</llo_original>
